<compile_context>
chip_gen: v6e
topology: v6e:2x2x1
jax: 0.10.0
libtpu: 0.0.40
codegen_flags: <defaults>
</compile_context>

<pallas_src>
import math
import functools

import jax
import jax.numpy as jnp
import numpy as np
from jax.experimental import pallas as pl
from jax.experimental.pallas import tpu as pltpu


# ----------------------------------------------------------------------------
# Fused forward kernel.  Grid = (lane_tiles, num_layers); one step = one layer
# of one lane-packed tile.  Residuals x1/x2 persist in VMEM scratch across the
# layer axis.
# ----------------------------------------------------------------------------
def _inspection_kernel(
    x_ref, cond_ref,
    spw_ref, spb_ref, opw1_ref, opw2_ref, opb_ref,
    w1xa_v_ref, w1xa_g_ref, w1ca_v_ref, w1ca_g_ref,
    wda_ref, bda_ref, w3a_ref, b3a_ref,
    w1xb_v_ref, w1xb_g_ref, w1cb_v_ref, w1cb_g_ref,
    wdb_ref, bdb_ref, w3b_ref, b3b_ref,
    o_ref,
    x1_sc, x2_sc,
    *, features, ksize, seg_len):
    F = features
    K = ksize
    pad = (K - 1) // 2
    W = x1_sc.shape[-1]                       # lane width of this tile
    l = pl.program_id(1)
    n_layers = pl.num_programs(1)
    mxu_dtype = cond_ref.dtype

    # --- first layer step: spec_projection (1x1 conv) into the f32 scratch ---
    @pl.when(l == 0)
    def _():
        x = jnp.dot(spw_ref[...], x_ref[...],
                    preferred_element_type=jnp.float32) + spb_ref[...]   # (2F, W)
        x1_sc[...] = x[:F]
        x2_sc[...] = x[F:]

    # cond (with diffusion projection and a trailing ones row already folded in
    # on the host) stays resident across the layer axis.
    c = cond_ref[...]                                                    # (H+1, W)

    # (1, W) masks implementing the 'same' zero padding AND keeping packed
    # batch segments from leaking into each other at the depthwise taps.
    lane_t = jax.lax.broadcasted_iota(jnp.int32, (1, W), 1) % seg_len
    tap_mask = {d: jnp.logical_and(lane_t + d >= 0, lane_t + d < seg_len)
                for d in range(-pad, pad + 1) if d != 0}

    def f_branch(xi, wv_ref, wg_ref, cv_ref, cg_ref, wd_ref, bd_ref,
                 w3_ref, b3_ref):
        xi = xi.astype(mxu_dtype)
        # 1x1 conv: channel concat replaced by split matmuls; GLU value/gate
        # halves computed separately so the (4F, W) intermediate never exists.
        hv = (jnp.dot(wv_ref[0], xi, preferred_element_type=jnp.float32)
              + jnp.dot(cv_ref[0], c, preferred_element_type=jnp.float32))
        hg = (jnp.dot(wg_ref[0], xi, preferred_element_type=jnp.float32)
              + jnp.dot(cg_ref[0], c, preferred_element_type=jnp.float32))
        h = hv * jax.nn.sigmoid(hg)                                      # (2F, W)
        # depthwise conv1d, padding='same', via masked lane rotations (XLU).
        wd = wd_ref[0]                                                   # (2F, K)
        acc = h * wd[:, pad:pad + 1]                                     # center tap
        for k in range(K):
            d = k - pad
            if d == 0:
                continue
            shifted = pltpu.roll(h, shift=(-d) % W, axis=1)   # shifted[p] = h[p+d]
            shifted = jnp.where(tap_mask[d], shifted, 0.0)
            acc = acc + shifted * wd[:, k:k + 1]
        h = acc + bd_ref[0]                                              # (2F, W)
        h = h[:F] * jax.nn.sigmoid(h[F:])                                # GLU -> (F, W)
        return (jnp.dot(w3_ref[0], h.astype(mxu_dtype),
                        preferred_element_type=jnp.float32) + b3_ref[0])

    # one InspectionRevNet layer (additive coupling), residuals kept in f32
    x1 = x1_sc[...]
    x2 = x2_sc[...]
    x2 = x2 + f_branch(x1, w1xa_v_ref, w1xa_g_ref, w1ca_v_ref, w1ca_g_ref,
                       wda_ref, bda_ref, w3a_ref, b3a_ref)
    x1 = x1 + f_branch(x2, w1xb_v_ref, w1xb_g_ref, w1cb_v_ref, w1cb_g_ref,
                       wdb_ref, bdb_ref, w3b_ref, b3b_ref)
    x1_sc[...] = x1
    x2_sc[...] = x2

    # --- last layer step: out_projection (channel concat folded into split matmul)
    @pl.when(l == n_layers - 1)
    def _():
        o_ref[...] = (jnp.dot(opw1_ref[...], x1.astype(mxu_dtype),
                              preferred_element_type=jnp.float32)
                      + jnp.dot(opw2_ref[...], x2.astype(mxu_dtype),
                                preferred_element_type=jnp.float32)
                      + opb_ref[...])


# ----------------------------------------------------------------------------
# Glue: sinusoidal positional embedding + tiny diffusion MLP ([B, H] sized)
# ----------------------------------------------------------------------------
def sinusoidal_pos_emb(step, dim):
    half = dim // 2
    freqs = jnp.exp(jnp.arange(half, dtype=jnp.float32)
                    * -(math.log(10000.0) / (half - 1)))
    ang = step.astype(jnp.float32)[:, None] * freqs[None, :]
    return jnp.concatenate([jnp.sin(ang), jnp.cos(ang)], axis=-1)  # (B, dim)


def diffusion_projection(step, params):
    H = params["hidden"]
    emb = sinusoidal_pos_emb(step, H)                              # (B, H)
    h = emb @ params["diff_w1"].T + params["diff_b1"]              # (B, 4H)
    h = h[:, :2 * H] * jax.nn.sigmoid(h[:, 2 * H:])                # GLU(-1)
    h = h @ params["diff_w2"].T + params["diff_b2"]                # (B, 2H)
    h = h[:, :H] * jax.nn.sigmoid(h[:, H:])                        # GLU(-1)
    return h                                                       # (B, H)


# ----------------------------------------------------------------------------
# Full Inspection forward (eval path) — single fused pallas_call
# ----------------------------------------------------------------------------
def inspection_forward(params, spec, step, cond, *, n_feats, in_dims, ksize,
                       mxu_dtype=jnp.bfloat16, max_lane_tile=2048):
    B = spec.shape[0]
    T = spec.shape[-1]
    C_in = n_feats * in_dims
    x = spec[:, 0] if n_feats == 1 else spec.reshape(B, C_in, T)

    H = params["hidden"]
    NC = params["spec_proj_w"].shape[0]
    F = NC // 2
    L = len(params["layers"])
    K = ksize

    # Fold the diffusion projection into cond on the host (one fewer input
    # stream); append a ones row so the f1/f2 first-conv bias can be folded
    # into the cond matmul.
    cond = cond + diffusion_projection(step, params)[:, :, None]          # (B, H, T)
    cond = jnp.concatenate(
        [cond, jnp.ones((B, 1, T), cond.dtype)], axis=1)                  # (B, H+1, T)

    # Lane packing: (B, C, T) -> (C, B*T) zero-padded to a 128 multiple.  Lane
    # tiles (if any) are multiples of lcm(T, 128) so tile boundaries coincide
    # with segment boundaries (the tap masks already handle those — no halo).
    total = B * T
    lane_unit = T * 128 // math.gcd(T, 128)
    if total % lane_unit == 0 and total // lane_unit >= 2:
        total_units = total // lane_unit
        units_per_tile = max(1, min(max_lane_tile // lane_unit, total_units))
        while total_units % units_per_tile:
            units_per_tile -= 1
        Wg = units_per_tile * lane_unit
        G = total // Wg
        Lpad = total
    else:
        Lpad = ((total + 127) // 128) * 128
        G = 1
        Wg = Lpad
    pad_l = Lpad - total

    def to_lane(a, dtype):                    # (B, C, T) -> (C, Lpad)
        a = jnp.transpose(a, (1, 0, 2)).reshape(a.shape[1], total)
        return jnp.pad(a, ((0, 0), (0, pad_l))).astype(dtype)

    x_lane = to_lane(x, mxu_dtype)                                   # (C_in, Lpad)
    cond_lane = to_lane(cond, mxu_dtype)                             # (H+1,  Lpad)

    # Stack per-layer weights into [L, ...] arrays (streamed one layer per grid
    # step).  Pre-split the concat/GLU-adjacent weights, fold b1 into the cond
    # matmul, cast all MXU weights to bf16; biases / depthwise taps stay f32.
    def stack_branch(name):
        w1 = jnp.stack([lp[name][0] for lp in params["layers"]])              # (L,4F,F+H)
        b1 = jnp.stack([lp[name][1] for lp in params["layers"]])              # (L,4F)
        wd = jnp.stack([lp[name][2] for lp in params["layers"]])              # (L,2F,K)
        bd = jnp.stack([lp[name][3] for lp in params["layers"]])[..., None]   # (L,2F,1)
        w3 = jnp.stack([lp[name][4] for lp in params["layers"]])              # (L,F,F)
        b3 = jnp.stack([lp[name][5] for lp in params["layers"]])[..., None]   # (L,F,1)
        w1x, w1c = w1[:, :, :F], w1[:, :, F:]
        w1c = jnp.concatenate([w1c, b1[..., None]], axis=-1)                  # (L,4F,H+1)
        return [w1x[:, :2 * F].astype(mxu_dtype),   # value half  (x part)
                w1x[:, 2 * F:].astype(mxu_dtype),   # gate  half  (x part)
                w1c[:, :2 * F].astype(mxu_dtype),   # value half  (cond+bias)
                w1c[:, 2 * F:].astype(mxu_dtype),   # gate  half  (cond+bias)
                wd, bd,
                w3.astype(mxu_dtype), b3]

    branch_a = stack_branch("f1")
    branch_b = stack_branch("f2")
    const_w = [
        params["spec_proj_w"].astype(mxu_dtype),            # (NC, C_in)
        params["spec_proj_b"].reshape(NC, 1),                # f32
        params["out_proj_w"][:, :F].astype(mxu_dtype),       # (C_in, F)
        params["out_proj_w"][:, F:].astype(mxu_dtype),       # (C_in, F)
        params["out_proj_b"].reshape(C_in, 1),               # f32
    ]
    weights = const_w + branch_a + branch_b

    def lane_spec(rows):
        return pl.BlockSpec((rows, Wg), lambda g, l: (0, g))

    def const_spec(arr):
        # constant block index for every grid step -> resident in VMEM
        # TODO(synk): verify in the Mosaic dump that these are single-buffered.
        return pl.BlockSpec(arr.shape, lambda g, l, _nd=arr.ndim: (0,) * _nd)

    def layer_spec(arr):
        return pl.BlockSpec((1,) + arr.shape[1:], lambda g, l: (l, 0, 0))

    kernel = functools.partial(_inspection_kernel, features=F, ksize=K, seg_len=T)

    # Rough advisory cost estimate for the XLA scheduler.
    mm_per_branch = 2 * Lpad * (2 * (2 * F) * F + 2 * (2 * F) * (H + 1) + F * F)
    dw_per_branch = Lpad * (2 * F) * (2 * K + 4)
    flops = int(2 * Lpad * NC * C_in + 2 * Lpad * C_in * NC
                + L * 2 * (mm_per_branch + dw_per_branch))
    transcendentals = int(L * 2 * 3 * F * Lpad)
    bytes_accessed = int(sum(int(w.size) * w.dtype.itemsize for w in weights) * G
                         + int(x_lane.size) * x_lane.dtype.itemsize
                         + int(cond_lane.size) * cond_lane.dtype.itemsize
                         + C_in * Lpad * 4)

    # Per-step VMEM footprint estimate (activations + double-buffered layer
    # weights), clamped between the scoped defaults and below v7x's 64 MiB.
    bmx = jnp.dtype(mxu_dtype).itemsize
    est_vmem = (2 * (C_in + H + 1) * Wg * bmx + 2 * C_in * Wg * 4
                + 2 * F * Wg * 4 + 8 * (2 * F) * Wg * 4
                + 4 * (2 * (2 * F) * F + 2 * (2 * F) * (H + 1) + F * F) * bmx
                + 4 * (2 * F + 2 * F + F) * 128 * 4
                + (NC * C_in + 2 * C_in * F) * bmx + (NC + C_in) * 128 * 4)
    vmem_limit = int(min(56 * 2 ** 20, max(32 * 2 ** 20, 2 * est_vmem)))

    out_lane = pl.pallas_call(
        kernel,
        out_shape=jax.ShapeDtypeStruct((C_in, Lpad), jnp.float32),
        grid_spec=pltpu.PrefetchScalarGridSpec(
            num_scalar_prefetch=0,
            grid=(G, L),
            in_specs=[lane_spec(C_in), lane_spec(H + 1)]
                     + [const_spec(w) for w in const_w]
                     + [layer_spec(w) for w in branch_a + branch_b],
            out_specs=lane_spec(C_in),
            scratch_shapes=[pltpu.VMEM((F, Wg), jnp.float32),
                            pltpu.VMEM((F, Wg), jnp.float32)]),
        compiler_params=pltpu.CompilerParams(
            dimension_semantics=("parallel", "arbitrary"),
            vmem_limit_bytes=vmem_limit),
        cost_estimate=pl.CostEstimate(flops=flops,
                                      transcendentals=transcendentals,
                                      bytes_accessed=bytes_accessed),
    )(x_lane, cond_lane, *weights)

    out = out_lane[:, :total].reshape(C_in, B, T).transpose(1, 0, 2)  # (B, C_in, T)
    if n_feats == 1:
        return out[:, None, :, :]
    return out.reshape(B, n_feats, in_dims, T)
# TODO(synk): the custom-autograd training path (GradOS_Metaclass / inverse /
# gradient) is a backward-pass construct with no forward-pass Pallas
# equivalent; eval path only.


# ----------------------------------------------------------------------------
# Pure-JAX reference (mirrors the kernel's bf16-MXU / f32-accumulate policy)
# ----------------------------------------------------------------------------
def _ref_f(xcat, w1, b1, wd, bd, w3, b3, F, K, mxu_dtype):
    T = xcat.shape[-1]
    h = jnp.einsum("oi,bit->bot", w1.astype(mxu_dtype), xcat.astype(mxu_dtype),
                   preferred_element_type=jnp.float32) + b1[None, :, None]
    h = h[:, :2 * F] * jax.nn.sigmoid(h[:, 2 * F:])
    pad = (K - 1) // 2
    hp = jnp.pad(h, ((0, 0), (0, 0), (pad, pad)))
    acc = jnp.zeros_like(h)
    for k in range(K):
        acc = acc + hp[:, :, k:k + T] * wd[None, :, k:k + 1]
    h = acc + bd[None, :, None]
    h = h[:, :F] * jax.nn.sigmoid(h[:, F:])
    return jnp.einsum("oi,bit->bot", w3.astype(mxu_dtype), h.astype(mxu_dtype),
                      preferred_element_type=jnp.float32) + b3[None, :, None]


def inspection_reference(params, spec, step, cond, *, n_feats, in_dims, ksize,
                         mxu_dtype=jnp.bfloat16):
    B, _, _, T = spec.shape
    x = spec[:, 0] if n_feats == 1 else spec.reshape(B, n_feats * in_dims, T)
    x = (jnp.einsum("oi,bit->bot", params["spec_proj_w"].astype(mxu_dtype),
                    x.astype(mxu_dtype), preferred_element_type=jnp.float32)
         + params["spec_proj_b"][None, :, None])
    cond = cond + diffusion_projection(step, params)[:, :, None]
    F = x.shape[1] // 2
    for lp in params["layers"]:
        x1, x2 = x[:, :F], x[:, F:]
        x2 = x2 + _ref_f(jnp.concatenate([x1, cond], axis=1), *lp["f1"],
                         F, ksize, mxu_dtype)
        x1 = x1 + _ref_f(jnp.concatenate([x2, cond], axis=1), *lp["f2"],
                         F, ksize, mxu_dtype)
        x = jnp.concatenate([x1, x2], axis=1)
    x = (jnp.einsum("oi,bit->bot", params["out_proj_w"].astype(mxu_dtype),
                    x.astype(mxu_dtype), preferred_element_type=jnp.float32)
         + params["out_proj_b"][None, :, None])
    if n_feats == 1:
        return x[:, None]
    return x.reshape(B, n_feats, in_dims, T)


# ----------------------------------------------------------------------------
# Deterministic parameter init (shapes follow the module's __init__)
# ----------------------------------------------------------------------------
def init_params(key, *, in_dims, n_feats, num_channels, hidden, num_layers, ksize):
    C_in = in_dims * n_feats
    F = num_channels // 2
    keys = jax.random.split(key, 6 + num_layers)

    def w(k, shape, fan_in):
        return jax.random.normal(k, shape, jnp.float32) / math.sqrt(fan_in)

    params = {
        "hidden": hidden,
        "spec_proj_w": w(keys[0], (num_channels, C_in), C_in),
        "spec_proj_b": 0.01 * jax.random.normal(keys[1], (num_channels,), jnp.float32),
        "out_proj_w": w(keys[2], (C_in, num_channels), num_channels),
        "out_proj_b": 0.01 * jax.random.normal(keys[3], (C_in,), jnp.float32),
        "diff_w1": w(keys[4], (4 * hidden, hidden), hidden),
        "diff_b1": jnp.zeros((4 * hidden,), jnp.float32),
        "diff_w2": w(keys[5], (2 * hidden, 2 * hidden), 2 * hidden),
        "diff_b2": jnp.zeros((2 * hidden,), jnp.float32),
    }

    layers = []
    for i in range(num_layers):
        lk = jax.random.split(keys[6 + i], 12)

        def f_params(ks):
            return (
                w(ks[0], (4 * F, F + hidden), F + hidden),
                0.01 * jax.random.normal(ks[1], (4 * F,), jnp.float32),
                w(ks[2], (2 * F, ksize), ksize),          # depthwise [2F,1,K] -> [2F,K]
                0.01 * jax.random.normal(ks[3], (2 * F,), jnp.float32),
                w(ks[4], (F, F), F),
                0.01 * jax.random.normal(ks[5], (F,), jnp.float32),
            )

        layers.append({"f1": f_params(lk[:6]), "f2": f_params(lk[6:])})
    params["layers"] = layers
    return params


if __name__ == "__main__":
    B, n_feats, in_dims, T = 2, 1, 8, 16
    num_channels, hidden, num_layers, ksize = 32, 16, 2, 7

    key = jax.random.PRNGKey(0)
    k_spec, k_step, k_cond, k_params = jax.random.split(key, 4)
    spec = jax.random.normal(k_spec, (B, n_feats, in_dims, T), jnp.float32)
    step = jax.random.randint(k_step, (B,), 0, 1000).astype(jnp.float32)
    cond = jax.random.normal(k_cond, (B, hidden, T), jnp.float32)

    params = init_params(k_params, in_dims=in_dims, n_feats=n_feats,
                         num_channels=num_channels, hidden=hidden,
                         num_layers=num_layers, ksize=ksize)

    out = inspection_forward(params, spec, step, cond,
                             n_feats=n_feats, in_dims=in_dims, ksize=ksize)
    out = jax.block_until_ready(out)
    assert out.shape == (B, n_feats, in_dims, T)

    ref = inspection_reference(params, spec, step, cond,
                               n_feats=n_feats, in_dims=in_dims, ksize=ksize)
    np.testing.assert_allclose(np.asarray(out), np.asarray(ref),
                               rtol=2e-2, atol=2e-2)
    print("KERNEL_OK")
</pallas_src>

<mosaic_0001>
module attributes {stable_mosaic.version = 11 : i64} {
  func.func @_inspection_kernel(%arg0: i32, %arg1: i32, %arg2: memref<8x128xbf16, #tpu.memory_space<vmem>>, %arg3: memref<17x128xbf16, #tpu.memory_space<vmem>>, %arg4: memref<32x8xbf16, #tpu.memory_space<vmem>>, %arg5: memref<32x1xf32, #tpu.memory_space<vmem>>, %arg6: memref<8x16xbf16, #tpu.memory_space<vmem>>, %arg7: memref<8x16xbf16, #tpu.memory_space<vmem>>, %arg8: memref<8x1xf32, #tpu.memory_space<vmem>>, %arg9: memref<1x32x16xbf16, #tpu.memory_space<vmem>>, %arg10: memref<1x32x16xbf16, #tpu.memory_space<vmem>>, %arg11: memref<1x32x17xbf16, #tpu.memory_space<vmem>>, %arg12: memref<1x32x17xbf16, #tpu.memory_space<vmem>>, %arg13: memref<1x32x7xf32, #tpu.memory_space<vmem>>, %arg14: memref<1x32x1xf32, #tpu.memory_space<vmem>>, %arg15: memref<1x16x16xbf16, #tpu.memory_space<vmem>>, %arg16: memref<1x16x1xf32, #tpu.memory_space<vmem>>, %arg17: memref<1x32x16xbf16, #tpu.memory_space<vmem>>, %arg18: memref<1x32x16xbf16, #tpu.memory_space<vmem>>, %arg19: memref<1x32x17xbf16, #tpu.memory_space<vmem>>, %arg20: memref<1x32x17xbf16, #tpu.memory_space<vmem>>, %arg21: memref<1x32x7xf32, #tpu.memory_space<vmem>>, %arg22: memref<1x32x1xf32, #tpu.memory_space<vmem>>, %arg23: memref<1x16x16xbf16, #tpu.memory_space<vmem>>, %arg24: memref<1x16x1xf32, #tpu.memory_space<vmem>>, %arg25: memref<8x128xf32, #tpu.memory_space<vmem>>, %arg26: memref<16x128xf32, #tpu.memory_space<vmem>>, %arg27: memref<16x128xf32, #tpu.memory_space<vmem>>) attributes {dimension_semantics = [#tpu.dimension_semantics<parallel>, #tpu.dimension_semantics<arbitrary>], iteration_bounds = array<i64: 1, 2>, scalar_prefetch = 0 : i64, scratch_operands = 2 : i64, tpu.core_type = #tpu.core_type<tc>, window_params = [{transform_indices = @transform_0, window_bounds = array<i64: 8, 128>}, {transform_indices = @transform_1, window_bounds = array<i64: 17, 128>}, {pipeline_mode = #tpu.pipeline_mode<synchronous>, transform_indices = @transform_2, window_bounds = array<i64: 32, 8>}, {pipeline_mode = #tpu.pipeline_mode<synchronous>, transform_indices = @transform_3, window_bounds = array<i64: 32, 1>}, {pipeline_mode = #tpu.pipeline_mode<synchronous>, transform_indices = @transform_4, window_bounds = array<i64: 8, 16>}, {pipeline_mode = #tpu.pipeline_mode<synchronous>, transform_indices = @transform_5, window_bounds = array<i64: 8, 16>}, {pipeline_mode = #tpu.pipeline_mode<synchronous>, transform_indices = @transform_6, window_bounds = array<i64: 8, 1>}, {transform_indices = @transform_7, window_bounds = array<i64: 1, 32, 16>}, {transform_indices = @transform_8, window_bounds = array<i64: 1, 32, 16>}, {transform_indices = @transform_9, window_bounds = array<i64: 1, 32, 17>}, {transform_indices = @transform_10, window_bounds = array<i64: 1, 32, 17>}, {transform_indices = @transform_11, window_bounds = array<i64: 1, 32, 7>}, {transform_indices = @transform_12, window_bounds = array<i64: 1, 32, 1>}, {transform_indices = @transform_13, window_bounds = array<i64: 1, 16, 16>}, {transform_indices = @transform_14, window_bounds = array<i64: 1, 16, 1>}, {transform_indices = @transform_15, window_bounds = array<i64: 1, 32, 16>}, {transform_indices = @transform_16, window_bounds = array<i64: 1, 32, 16>}, {transform_indices = @transform_17, window_bounds = array<i64: 1, 32, 17>}, {transform_indices = @transform_18, window_bounds = array<i64: 1, 32, 17>}, {transform_indices = @transform_19, window_bounds = array<i64: 1, 32, 7>}, {transform_indices = @transform_20, window_bounds = array<i64: 1, 32, 1>}, {transform_indices = @transform_21, window_bounds = array<i64: 1, 16, 16>}, {transform_indices = @transform_22, window_bounds = array<i64: 1, 16, 1>}, {transform_indices = @transform_23, window_bounds = array<i64: 8, 128>}]} {
    %c0_i32 = arith.constant 0 : i32
    %0 = arith.cmpi eq, %arg1, %c0_i32 : i32
    %1 = arith.extui %0 : i1 to i32
    %c0_i32_0 = arith.constant 0 : i32
    %2 = arith.cmpi ne, %1, %c0_i32_0 : i32
    scf.if %2 {
      %c0_117 = arith.constant 0 : index
      %c0_118 = arith.constant 0 : index
      %284 = vector.load %arg4[%c0_117, %c0_118] : memref<32x8xbf16, #tpu.memory_space<vmem>>, vector<32x8xbf16>
      %c0_119 = arith.constant 0 : index
      %c0_120 = arith.constant 0 : index
      %285 = vector.load %arg2[%c0_119, %c0_120] : memref<8x128xbf16, #tpu.memory_space<vmem>>, vector<8x128xbf16>
      %cst_121 = arith.constant dense<0.000000e+00> : vector<32x128xf32>
      %286 = tpu.matmul %284, %285, %cst_121 {dimension_numbers = #tpu.dot_dimension_numbers<[1], [0], [0], [1], [0, 0, 1, 1], [], []>} : vector<32x8xbf16>, vector<8x128xbf16>, vector<32x128xf32> -> vector<32x128xf32>
      %c0_122 = arith.constant 0 : index
      %c0_123 = arith.constant 0 : index
      %287 = vector.load %arg5[%c0_122, %c0_123] : memref<32x1xf32, #tpu.memory_space<vmem>>, vector<32x1xf32>
      %288 = vector.broadcast %287 : vector<32x1xf32> to vector<32x128xf32>
      %289 = arith.addf %286, %288 : vector<32x128xf32>
      %290 = vector.extract_strided_slice %289 {offsets = [0, 0], sizes = [16, 128], strides = [1, 1]} : vector<32x128xf32> to vector<16x128xf32>
      %c0_124 = arith.constant 0 : index
      %c0_125 = arith.constant 0 : index
      %291 = vector.load %arg26[%c0_124, %c0_125] : memref<16x128xf32, #tpu.memory_space<vmem>>, vector<16x128xf32>
      tpu.vector_store %arg26[%c0_124, %c0_125], %290 {strides = array<i32>} : memref<16x128xf32, #tpu.memory_space<vmem>>, vector<16x128xf32>,
      %292 = vector.extract_strided_slice %289 {offsets = [16, 0], sizes = [16, 128], strides = [1, 1]} : vector<32x128xf32> to vector<16x128xf32>
      %c0_126 = arith.constant 0 : index
      %c0_127 = arith.constant 0 : index
      %293 = vector.load %arg27[%c0_126, %c0_127] : memref<16x128xf32, #tpu.memory_space<vmem>>, vector<16x128xf32>
      tpu.vector_store %arg27[%c0_126, %c0_127], %292 {strides = array<i32>} : memref<16x128xf32, #tpu.memory_space<vmem>>, vector<16x128xf32>,
    } else {
    }
    %c0 = arith.constant 0 : index
    %c0_1 = arith.constant 0 : index
    %3 = vector.load %arg3[%c0, %c0_1] : memref<17x128xbf16, #tpu.memory_space<vmem>>, vector<17x128xbf16>
    %4 = tpu.iota {dimensions = array<i32: 1>} : vector<1x128xi32>
    %c16_i32 = arith.constant 16 : i32
    %c0_i32_2 = arith.constant 0 : i32
    %5 = arith.cmpi eq, %c16_i32, %c0_i32_2 : i32
    %c1_i32 = arith.constant 1 : i32
    %6 = arith.select %5, %c1_i32, %c16_i32 : i32
    %7 = vector.broadcast %6 : i32 to vector<1x128xi32>
    %8 = arith.remsi %4, %7 : vector<1x128xi32>
    %c0_i32_3 = arith.constant 0 : i32
    %9 = vector.broadcast %c0_i32_3 : i32 to vector<1x128xi32>
    %10 = arith.cmpi ne, %8, %9 : vector<1x128xi32>
    %c0_i32_4 = arith.constant 0 : i32
    %11 = vector.broadcast %c0_i32_4 : i32 to vector<1x128xi32>
    %12 = arith.cmpi slt, %8, %11 : vector<1x128xi32>
    %c0_i32_5 = arith.constant 0 : i32
    %13 = arith.cmpi slt, %6, %c0_i32_5 : i32
    %14 = vector.broadcast %13 : i1 to vector<1x128xi1>
    %15 = vector.broadcast %14 : vector<1x128xi1> to vector<1x128xi1>
    %16 = arith.xori %12, %15 : vector<1x128xi1>
    %17 = arith.andi %16, %10 : vector<1x128xi1>
    %18 = vector.broadcast %6 : i32 to vector<1x128xi32>
    %19 = arith.addi %8, %18 : vector<1x128xi32>
    %20 = arith.select %17, %19, %8 : vector<1x128xi1>, vector<1x128xi32>
    %c-3_i32 = arith.constant -3 : i32
    %21 = vector.broadcast %c-3_i32 : i32 to vector<1x128xi32>
    %22 = arith.addi %20, %21 : vector<1x128xi32>
    %c0_i32_6 = arith.constant 0 : i32
    %23 = vector.broadcast %c0_i32_6 : i32 to vector<1x128xi32>
    %24 = arith.cmpi sge, %22, %23 : vector<1x128xi32>
    %c-3_i32_7 = arith.constant -3 : i32
    %25 = vector.broadcast %c-3_i32_7 : i32 to vector<1x128xi32>
    %26 = arith.addi %20, %25 : vector<1x128xi32>
    %c16_i32_8 = arith.constant 16 : i32
    %27 = vector.broadcast %c16_i32_8 : i32 to vector<1x128xi32>
    %28 = arith.cmpi slt, %26, %27 : vector<1x128xi32>
    %29 = arith.andi %24, %28 : vector<1x128xi1>
    %c-2_i32 = arith.constant -2 : i32
    %30 = vector.broadcast %c-2_i32 : i32 to vector<1x128xi32>
    %31 = arith.addi %20, %30 : vector<1x128xi32>
    %c0_i32_9 = arith.constant 0 : i32
    %32 = vector.broadcast %c0_i32_9 : i32 to vector<1x128xi32>
    %33 = arith.cmpi sge, %31, %32 : vector<1x128xi32>
    %c-2_i32_10 = arith.constant -2 : i32
    %34 = vector.broadcast %c-2_i32_10 : i32 to vector<1x128xi32>
    %35 = arith.addi %20, %34 : vector<1x128xi32>
    %c16_i32_11 = arith.constant 16 : i32
    %36 = vector.broadcast %c16_i32_11 : i32 to vector<1x128xi32>
    %37 = arith.cmpi slt, %35, %36 : vector<1x128xi32>
    %38 = arith.andi %33, %37 : vector<1x128xi1>
    %c-1_i32 = arith.constant -1 : i32
    %39 = vector.broadcast %c-1_i32 : i32 to vector<1x128xi32>
    %40 = arith.addi %20, %39 : vector<1x128xi32>
    %c0_i32_12 = arith.constant 0 : i32
    %41 = vector.broadcast %c0_i32_12 : i32 to vector<1x128xi32>
    %42 = arith.cmpi sge, %40, %41 : vector<1x128xi32>
    %c-1_i32_13 = arith.constant -1 : i32
    %43 = vector.broadcast %c-1_i32_13 : i32 to vector<1x128xi32>
    %44 = arith.addi %20, %43 : vector<1x128xi32>
    %c16_i32_14 = arith.constant 16 : i32
    %45 = vector.broadcast %c16_i32_14 : i32 to vector<1x128xi32>
    %46 = arith.cmpi slt, %44, %45 : vector<1x128xi32>
    %47 = arith.andi %42, %46 : vector<1x128xi1>
    %c1_i32_15 = arith.constant 1 : i32
    %48 = vector.broadcast %c1_i32_15 : i32 to vector<1x128xi32>
    %49 = arith.addi %20, %48 : vector<1x128xi32>
    %c0_i32_16 = arith.constant 0 : i32
    %50 = vector.broadcast %c0_i32_16 : i32 to vector<1x128xi32>
    %51 = arith.cmpi sge, %49, %50 : vector<1x128xi32>
    %c1_i32_17 = arith.constant 1 : i32
    %52 = vector.broadcast %c1_i32_17 : i32 to vector<1x128xi32>
    %53 = arith.addi %20, %52 : vector<1x128xi32>
    %c16_i32_18 = arith.constant 16 : i32
    %54 = vector.broadcast %c16_i32_18 : i32 to vector<1x128xi32>
    %55 = arith.cmpi slt, %53, %54 : vector<1x128xi32>
    %56 = arith.andi %51, %55 : vector<1x128xi1>
    %c2_i32 = arith.constant 2 : i32
    %57 = vector.broadcast %c2_i32 : i32 to vector<1x128xi32>
    %58 = arith.addi %20, %57 : vector<1x128xi32>
    %c0_i32_19 = arith.constant 0 : i32
    %59 = vector.broadcast %c0_i32_19 : i32 to vector<1x128xi32>
    %60 = arith.cmpi sge, %58, %59 : vector<1x128xi32>
    %c2_i32_20 = arith.constant 2 : i32
    %61 = vector.broadcast %c2_i32_20 : i32 to vector<1x128xi32>
    %62 = arith.addi %20, %61 : vector<1x128xi32>
    %c16_i32_21 = arith.constant 16 : i32
    %63 = vector.broadcast %c16_i32_21 : i32 to vector<1x128xi32>
    %64 = arith.cmpi slt, %62, %63 : vector<1x128xi32>
    %65 = arith.andi %60, %64 : vector<1x128xi1>
    %c3_i32 = arith.constant 3 : i32
    %66 = vector.broadcast %c3_i32 : i32 to vector<1x128xi32>
    %67 = arith.addi %20, %66 : vector<1x128xi32>
    %c0_i32_22 = arith.constant 0 : i32
    %68 = vector.broadcast %c0_i32_22 : i32 to vector<1x128xi32>
    %69 = arith.cmpi sge, %67, %68 : vector<1x128xi32>
    %c3_i32_23 = arith.constant 3 : i32
    %70 = vector.broadcast %c3_i32_23 : i32 to vector<1x128xi32>
    %71 = arith.addi %20, %70 : vector<1x128xi32>
    %c16_i32_24 = arith.constant 16 : i32
    %72 = vector.broadcast %c16_i32_24 : i32 to vector<1x128xi32>
    %73 = arith.cmpi slt, %71, %72 : vector<1x128xi32>
    %74 = arith.andi %69, %73 : vector<1x128xi1>
    %c0_25 = arith.constant 0 : index
    %c0_26 = arith.constant 0 : index
    %75 = vector.load %arg26[%c0_25, %c0_26] : memref<16x128xf32, #tpu.memory_space<vmem>>, vector<16x128xf32>
    %c0_27 = arith.constant 0 : index
    %c0_28 = arith.constant 0 : index
    %76 = vector.load %arg27[%c0_27, %c0_28] : memref<16x128xf32, #tpu.memory_space<vmem>>, vector<16x128xf32>
    %77 = arith.truncf %75 : vector<16x128xf32> to vector<16x128xbf16>
    %c0_29 = arith.constant 0 : index
    %c0_30 = arith.constant 0 : index
    %c0_31 = arith.constant 0 : index
    %78 = vector.load %arg9[%c0_29, %c0_30, %c0_31] : memref<1x32x16xbf16, #tpu.memory_space<vmem>>, vector<1x32x16xbf16>
    %79 = vector.shape_cast %78 : vector<1x32x16xbf16> to vector<32x16xbf16>
    %cst = arith.constant dense<0.000000e+00> : vector<32x128xf32>
    %80 = tpu.matmul %79, %77, %cst {dimension_numbers = #tpu.dot_dimension_numbers<[1], [0], [0], [1], [0, 0, 1, 1], [], []>} : vector<32x16xbf16>, vector<16x128xbf16>, vector<32x128xf32> -> vector<32x128xf32>
    %c0_32 = arith.constant 0 : index
    %c0_33 = arith.constant 0 : index
    %c0_34 = arith.constant 0 : index
    %81 = vector.load %arg11[%c0_32, %c0_33, %c0_34] : memref<1x32x17xbf16, #tpu.memory_space<vmem>>, vector<1x32x17xbf16>
    %82 = vector.shape_cast %81 : vector<1x32x17xbf16> to vector<32x17xbf16>
    %cst_35 = arith.constant dense<0.000000e+00> : vector<32x128xf32>
    %83 = tpu.matmul %82, %3, %cst_35 {dimension_numbers = #tpu.dot_dimension_numbers<[1], [0], [0], [1], [0, 0, 1, 1], [], []>} : vector<32x17xbf16>, vector<17x128xbf16>, vector<32x128xf32> -> vector<32x128xf32>
    %84 = arith.addf %80, %83 : vector<32x128xf32>
    %c0_36 = arith.constant 0 : index
    %c0_37 = arith.constant 0 : index
    %c0_38 = arith.constant 0 : index
    %85 = vector.load %arg10[%c0_36, %c0_37, %c0_38] : memref<1x32x16xbf16, #tpu.memory_space<vmem>>, vector<1x32x16xbf16>
    %86 = vector.shape_cast %85 : vector<1x32x16xbf16> to vector<32x16xbf16>
    %cst_39 = arith.constant dense<0.000000e+00> : vector<32x128xf32>
    %87 = tpu.matmul %86, %77, %cst_39 {dimension_numbers = #tpu.dot_dimension_numbers<[1], [0], [0], [1], [0, 0, 1, 1], [], []>} : vector<32x16xbf16>, vector<16x128xbf16>, vector<32x128xf32> -> vector<32x128xf32>
    %c0_40 = arith.constant 0 : index
    %c0_41 = arith.constant 0 : index
    %c0_42 = arith.constant 0 : index
    %88 = vector.load %arg12[%c0_40, %c0_41, %c0_42] : memref<1x32x17xbf16, #tpu.memory_space<vmem>>, vector<1x32x17xbf16>
    %89 = vector.shape_cast %88 : vector<1x32x17xbf16> to vector<32x17xbf16>
    %cst_43 = arith.constant dense<0.000000e+00> : vector<32x128xf32>
    %90 = tpu.matmul %89, %3, %cst_43 {dimension_numbers = #tpu.dot_dimension_numbers<[1], [0], [0], [1], [0, 0, 1, 1], [], []>} : vector<32x17xbf16>, vector<17x128xbf16>, vector<32x128xf32> -> vector<32x128xf32>
    %91 = arith.addf %87, %90 : vector<32x128xf32>
    %92 = arith.negf %91 : vector<32x128xf32>
    %93 = math.exp %92 : vector<32x128xf32>
    %cst_44 = arith.constant 1.000000e+00 : f32
    %94 = vector.broadcast %cst_44 : f32 to vector<32x128xf32>
    %95 = arith.addf %94, %93 : vector<32x128xf32>
    %96 = arith.divf %94, %95 : vector<32x128xf32>
    %97 = arith.mulf %84, %96 : vector<32x128xf32>
    %c0_45 = arith.constant 0 : index
    %c0_46 = arith.constant 0 : index
    %c0_47 = arith.constant 0 : index
    %98 = vector.load %arg13[%c0_45, %c0_46, %c0_47] : memref<1x32x7xf32, #tpu.memory_space<vmem>>, vector<1x32x7xf32>
    %99 = vector.shape_cast %98 : vector<1x32x7xf32> to vector<32x7xf32>
    %100 = vector.extract_strided_slice %99 {offsets = [0, 3], sizes = [32, 1], strides = [1, 1]} : vector<32x7xf32> to vector<32x1xf32>
    %101 = vector.broadcast %100 : vector<32x1xf32> to vector<32x128xf32>
    %102 = arith.mulf %97, %101 : vector<32x128xf32>
    %c3_i32_48 = arith.constant 3 : i32
    %103 = tpu.dynamic_rotate %97 by %c3_i32_48 dim 1 : vector<32x128xf32>, i32 -> vector<32x128xf32>
    %cst_49 = arith.constant 0.000000e+00 : f32
    %104 = vector.shape_cast %29 : vector<1x128xi1> to vector<1x128xi1>
    %105 = vector.broadcast %104 : vector<1x128xi1> to vector<32x128xi1>
    %106 = vector.broadcast %cst_49 : f32 to vector<32x128xf32>
    %107 = arith.select %105, %103, %106 : vector<32x128xi1>, vector<32x128xf32>
    %108 = vector.extract_strided_slice %99 {offsets = [0, 0], sizes = [32, 1], strides = [1, 1]} : vector<32x7xf32> to vector<32x1xf32>
    %109 = vector.broadcast %108 : vector<32x1xf32> to vector<32x128xf32>
    %110 = arith.mulf %107, %109 : vector<32x128xf32>
    %111 = arith.addf %102, %110 : vector<32x128xf32>
    %c2_i32_50 = arith.constant 2 : i32
    %112 = tpu.dynamic_rotate %97 by %c2_i32_50 dim 1 : vector<32x128xf32>, i32 -> vector<32x128xf32>
    %cst_51 = arith.constant 0.000000e+00 : f32
    %113 = vector.shape_cast %38 : vector<1x128xi1> to vector<1x128xi1>
    %114 = vector.broadcast %113 : vector<1x128xi1> to vector<32x128xi1>
    %115 = vector.broadcast %cst_51 : f32 to vector<32x128xf32>
    %116 = arith.select %114, %112, %115 : vector<32x128xi1>, vector<32x128xf32>
    %117 = vector.extract_strided_slice %99 {offsets = [0, 1], sizes = [32, 1], strides = [1, 1]} : vector<32x7xf32> to vector<32x1xf32>
    %118 = vector.broadcast %117 : vector<32x1xf32> to vector<32x128xf32>
    %119 = arith.mulf %116, %118 : vector<32x128xf32>
    %120 = arith.addf %111, %119 : vector<32x128xf32>
    %c1_i32_52 = arith.constant 1 : i32
    %121 = tpu.dynamic_rotate %97 by %c1_i32_52 dim 1 : vector<32x128xf32>, i32 -> vector<32x128xf32>
    %cst_53 = arith.constant 0.000000e+00 : f32
    %122 = vector.shape_cast %47 : vector<1x128xi1> to vector<1x128xi1>
    %123 = vector.broadcast %122 : vector<1x128xi1> to vector<32x128xi1>
    %124 = vector.broadcast %cst_53 : f32 to vector<32x128xf32>
    %125 = arith.select %123, %121, %124 : vector<32x128xi1>, vector<32x128xf32>
    %126 = vector.extract_strided_slice %99 {offsets = [0, 2], sizes = [32, 1], strides = [1, 1]} : vector<32x7xf32> to vector<32x1xf32>
    %127 = vector.broadcast %126 : vector<32x1xf32> to vector<32x128xf32>
    %128 = arith.mulf %125, %127 : vector<32x128xf32>
    %129 = arith.addf %120, %128 : vector<32x128xf32>
    %c127_i32 = arith.constant 127 : i32
    %130 = tpu.dynamic_rotate %97 by %c127_i32 dim 1 : vector<32x128xf32>, i32 -> vector<32x128xf32>
    %cst_54 = arith.constant 0.000000e+00 : f32
    %131 = vector.shape_cast %56 : vector<1x128xi1> to vector<1x128xi1>
    %132 = vector.broadcast %131 : vector<1x128xi1> to vector<32x128xi1>
    %133 = vector.broadcast %cst_54 : f32 to vector<32x128xf32>
    %134 = arith.select %132, %130, %133 : vector<32x128xi1>, vector<32x128xf32>
    %135 = vector.extract_strided_slice %99 {offsets = [0, 4], sizes = [32, 1], strides = [1, 1]} : vector<32x7xf32> to vector<32x1xf32>
    %136 = vector.broadcast %135 : vector<32x1xf32> to vector<32x128xf32>
    %137 = arith.mulf %134, %136 : vector<32x128xf32>
    %138 = arith.addf %129, %137 : vector<32x128xf32>
    %c126_i32 = arith.constant 126 : i32
    %139 = tpu.dynamic_rotate %97 by %c126_i32 dim 1 : vector<32x128xf32>, i32 -> vector<32x128xf32>
    %cst_55 = arith.constant 0.000000e+00 : f32
    %140 = vector.shape_cast %65 : vector<1x128xi1> to vector<1x128xi1>
    %141 = vector.broadcast %140 : vector<1x128xi1> to vector<32x128xi1>
    %142 = vector.broadcast %cst_55 : f32 to vector<32x128xf32>
    %143 = arith.select %141, %139, %142 : vector<32x128xi1>, vector<32x128xf32>
    %144 = vector.extract_strided_slice %99 {offsets = [0, 5], sizes = [32, 1], strides = [1, 1]} : vector<32x7xf32> to vector<32x1xf32>
    %145 = vector.broadcast %144 : vector<32x1xf32> to vector<32x128xf32>
    %146 = arith.mulf %143, %145 : vector<32x128xf32>
    %147 = arith.addf %138, %146 : vector<32x128xf32>
    %c125_i32 = arith.constant 125 : i32
    %148 = tpu.dynamic_rotate %97 by %c125_i32 dim 1 : vector<32x128xf32>, i32 -> vector<32x128xf32>
    %cst_56 = arith.constant 0.000000e+00 : f32
    %149 = vector.shape_cast %74 : vector<1x128xi1> to vector<1x128xi1>
    %150 = vector.broadcast %149 : vector<1x128xi1> to vector<32x128xi1>
    %151 = vector.broadcast %cst_56 : f32 to vector<32x128xf32>
    %152 = arith.select %150, %148, %151 : vector<32x128xi1>, vector<32x128xf32>
    %153 = vector.extract_strided_slice %99 {offsets = [0, 6], sizes = [32, 1], strides = [1, 1]} : vector<32x7xf32> to vector<32x1xf32>
    %154 = vector.broadcast %153 : vector<32x1xf32> to vector<32x128xf32>
    %155 = arith.mulf %152, %154 : vector<32x128xf32>
    %156 = arith.addf %147, %155 : vector<32x128xf32>
    %c0_57 = arith.constant 0 : index
    %c0_58 = arith.constant 0 : index
    %c0_59 = arith.constant 0 : index
    %157 = vector.load %arg14[%c0_57, %c0_58, %c0_59] : memref<1x32x1xf32, #tpu.memory_space<vmem>>, vector<1x32x1xf32>
    %158 = vector.shape_cast %157 : vector<1x32x1xf32> to vector<32x1xf32>
    %159 = vector.broadcast %158 : vector<32x1xf32> to vector<32x128xf32>
    %160 = arith.addf %156, %159 : vector<32x128xf32>
    %161 = vector.extract_strided_slice %160 {offsets = [0, 0], sizes = [16, 128], strides = [1, 1]} : vector<32x128xf32> to vector<16x128xf32>
    %162 = vector.extract_strided_slice %160 {offsets = [16, 0], sizes = [16, 128], strides = [1, 1]} : vector<32x128xf32> to vector<16x128xf32>
    %163 = arith.negf %162 : vector<16x128xf32>
    %164 = math.exp %163 : vector<16x128xf32>
    %cst_60 = arith.constant 1.000000e+00 : f32
    %165 = vector.broadcast %cst_60 : f32 to vector<16x128xf32>
    %166 = arith.addf %165, %164 : vector<16x128xf32>
    %167 = arith.divf %165, %166 : vector<16x128xf32>
    %168 = arith.mulf %161, %167 : vector<16x128xf32>
    %c0_61 = arith.constant 0 : index
    %c0_62 = arith.constant 0 : index
    %c0_63 = arith.constant 0 : index
    %169 = vector.load %arg15[%c0_61, %c0_62, %c0_63] : memref<1x16x16xbf16, #tpu.memory_space<vmem>>, vector<1x16x16xbf16>
    %170 = vector.shape_cast %169 : vector<1x16x16xbf16> to vector<16x16xbf16>
    %171 = arith.truncf %168 : vector<16x128xf32> to vector<16x128xbf16>
    %cst_64 = arith.constant dense<0.000000e+00> : vector<16x128xf32>
    %172 = tpu.matmul %170, %171, %cst_64 {dimension_numbers = #tpu.dot_dimension_numbers<[1], [0], [0], [1], [0, 0, 1, 1], [], []>} : vector<16x16xbf16>, vector<16x128xbf16>, vector<16x128xf32> -> vector<16x128xf32>
    %c0_65 = arith.constant 0 : index
    %c0_66 = arith.constant 0 : index
    %c0_67 = arith.constant 0 : index
    %173 = vector.load %arg16[%c0_65, %c0_66, %c0_67] : memref<1x16x1xf32, #tpu.memory_space<vmem>>, vector<1x16x1xf32>
    %174 = vector.shape_cast %173 : vector<1x16x1xf32> to vector<16x1xf32>
    %175 = vector.broadcast %174 : vector<16x1xf32> to vector<16x128xf32>
    %176 = arith.addf %172, %175 : vector<16x128xf32>
    %177 = arith.addf %76, %176 : vector<16x128xf32>
    %178 = arith.truncf %177 : vector<16x128xf32> to vector<16x128xbf16>
    %c0_68 = arith.constant 0 : index
    %c0_69 = arith.constant 0 : index
    %c0_70 = arith.constant 0 : index
    %179 = vector.load %arg17[%c0_68, %c0_69, %c0_70] : memref<1x32x16xbf16, #tpu.memory_space<vmem>>, vector<1x32x16xbf16>
    %180 = vector.shape_cast %179 : vector<1x32x16xbf16> to vector<32x16xbf16>
    %cst_71 = arith.constant dense<0.000000e+00> : vector<32x128xf32>
    %181 = tpu.matmul %180, %178, %cst_71 {dimension_numbers = #tpu.dot_dimension_numbers<[1], [0], [0], [1], [0, 0, 1, 1], [], []>} : vector<32x16xbf16>, vector<16x128xbf16>, vector<32x128xf32> -> vector<32x128xf32>
    %c0_72 = arith.constant 0 : index
    %c0_73 = arith.constant 0 : index
    %c0_74 = arith.constant 0 : index
    %182 = vector.load %arg19[%c0_72, %c0_73, %c0_74] : memref<1x32x17xbf16, #tpu.memory_space<vmem>>, vector<1x32x17xbf16>
    %183 = vector.shape_cast %182 : vector<1x32x17xbf16> to vector<32x17xbf16>
    %cst_75 = arith.constant dense<0.000000e+00> : vector<32x128xf32>
    %184 = tpu.matmul %183, %3, %cst_75 {dimension_numbers = #tpu.dot_dimension_numbers<[1], [0], [0], [1], [0, 0, 1, 1], [], []>} : vector<32x17xbf16>, vector<17x128xbf16>, vector<32x128xf32> -> vector<32x128xf32>
    %185 = arith.addf %181, %184 : vector<32x128xf32>
    %c0_76 = arith.constant 0 : index
    %c0_77 = arith.constant 0 : index
    %c0_78 = arith.constant 0 : index
    %186 = vector.load %arg18[%c0_76, %c0_77, %c0_78] : memref<1x32x16xbf16, #tpu.memory_space<vmem>>, vector<1x32x16xbf16>
    %187 = vector.shape_cast %186 : vector<1x32x16xbf16> to vector<32x16xbf16>
    %cst_79 = arith.constant dense<0.000000e+00> : vector<32x128xf32>
    %188 = tpu.matmul %187, %178, %cst_79 {dimension_numbers = #tpu.dot_dimension_numbers<[1], [0], [0], [1], [0, 0, 1, 1], [], []>} : vector<32x16xbf16>, vector<16x128xbf16>, vector<32x128xf32> -> vector<32x128xf32>
    %c0_80 = arith.constant 0 : index
    %c0_81 = arith.constant 0 : index
    %c0_82 = arith.constant 0 : index
    %189 = vector.load %arg20[%c0_80, %c0_81, %c0_82] : memref<1x32x17xbf16, #tpu.memory_space<vmem>>, vector<1x32x17xbf16>
    %190 = vector.shape_cast %189 : vector<1x32x17xbf16> to vector<32x17xbf16>
    %cst_83 = arith.constant dense<0.000000e+00> : vector<32x128xf32>
    %191 = tpu.matmul %190, %3, %cst_83 {dimension_numbers = #tpu.dot_dimension_numbers<[1], [0], [0], [1], [0, 0, 1, 1], [], []>} : vector<32x17xbf16>, vector<17x128xbf16>, vector<32x128xf32> -> vector<32x128xf32>
    %192 = arith.addf %188, %191 : vector<32x128xf32>
    %193 = arith.negf %192 : vector<32x128xf32>
    %194 = math.exp %193 : vector<32x128xf32>
    %cst_84 = arith.constant 1.000000e+00 : f32
    %195 = vector.broadcast %cst_84 : f32 to vector<32x128xf32>
    %196 = arith.addf %195, %194 : vector<32x128xf32>
    %197 = arith.divf %195, %196 : vector<32x128xf32>
    %198 = arith.mulf %185, %197 : vector<32x128xf32>
    %c0_85 = arith.constant 0 : index
    %c0_86 = arith.constant 0 : index
    %c0_87 = arith.constant 0 : index
    %199 = vector.load %arg21[%c0_85, %c0_86, %c0_87] : memref<1x32x7xf32, #tpu.memory_space<vmem>>, vector<1x32x7xf32>
    %200 = vector.shape_cast %199 : vector<1x32x7xf32> to vector<32x7xf32>
    %201 = vector.extract_strided_slice %200 {offsets = [0, 3], sizes = [32, 1], strides = [1, 1]} : vector<32x7xf32> to vector<32x1xf32>
    %202 = vector.broadcast %201 : vector<32x1xf32> to vector<32x128xf32>
    %203 = arith.mulf %198, %202 : vector<32x128xf32>
    %c3_i32_88 = arith.constant 3 : i32
    %204 = tpu.dynamic_rotate %198 by %c3_i32_88 dim 1 : vector<32x128xf32>, i32 -> vector<32x128xf32>
    %cst_89 = arith.constant 0.000000e+00 : f32
    %205 = vector.shape_cast %29 : vector<1x128xi1> to vector<1x128xi1>
    %206 = vector.broadcast %205 : vector<1x128xi1> to vector<32x128xi1>
    %207 = vector.broadcast %cst_89 : f32 to vector<32x128xf32>
    %208 = arith.select %206, %204, %207 : vector<32x128xi1>, vector<32x128xf32>
    %209 = vector.extract_strided_slice %200 {offsets = [0, 0], sizes = [32, 1], strides = [1, 1]} : vector<32x7xf32> to vector<32x1xf32>
    %210 = vector.broadcast %209 : vector<32x1xf32> to vector<32x128xf32>
    %211 = arith.mulf %208, %210 : vector<32x128xf32>
    %212 = arith.addf %203, %211 : vector<32x128xf32>
    %c2_i32_90 = arith.constant 2 : i32
    %213 = tpu.dynamic_rotate %198 by %c2_i32_90 dim 1 : vector<32x128xf32>, i32 -> vector<32x128xf32>
    %cst_91 = arith.constant 0.000000e+00 : f32
    %214 = vector.shape_cast %38 : vector<1x128xi1> to vector<1x128xi1>
    %215 = vector.broadcast %214 : vector<1x128xi1> to vector<32x128xi1>
    %216 = vector.broadcast %cst_91 : f32 to vector<32x128xf32>
    %217 = arith.select %215, %213, %216 : vector<32x128xi1>, vector<32x128xf32>
    %218 = vector.extract_strided_slice %200 {offsets = [0, 1], sizes = [32, 1], strides = [1, 1]} : vector<32x7xf32> to vector<32x1xf32>
    %219 = vector.broadcast %218 : vector<32x1xf32> to vector<32x128xf32>
    %220 = arith.mulf %217, %219 : vector<32x128xf32>
    %221 = arith.addf %212, %220 : vector<32x128xf32>
    %c1_i32_92 = arith.constant 1 : i32
    %222 = tpu.dynamic_rotate %198 by %c1_i32_92 dim 1 : vector<32x128xf32>, i32 -> vector<32x128xf32>
    %cst_93 = arith.constant 0.000000e+00 : f32
    %223 = vector.shape_cast %47 : vector<1x128xi1> to vector<1x128xi1>
    %224 = vector.broadcast %223 : vector<1x128xi1> to vector<32x128xi1>
    %225 = vector.broadcast %cst_93 : f32 to vector<32x128xf32>
    %226 = arith.select %224, %222, %225 : vector<32x128xi1>, vector<32x128xf32>
    %227 = vector.extract_strided_slice %200 {offsets = [0, 2], sizes = [32, 1], strides = [1, 1]} : vector<32x7xf32> to vector<32x1xf32>
    %228 = vector.broadcast %227 : vector<32x1xf32> to vector<32x128xf32>
    %229 = arith.mulf %226, %228 : vector<32x128xf32>
    %230 = arith.addf %221, %229 : vector<32x128xf32>
    %c127_i32_94 = arith.constant 127 : i32
    %231 = tpu.dynamic_rotate %198 by %c127_i32_94 dim 1 : vector<32x128xf32>, i32 -> vector<32x128xf32>
    %cst_95 = arith.constant 0.000000e+00 : f32
    %232 = vector.shape_cast %56 : vector<1x128xi1> to vector<1x128xi1>
    %233 = vector.broadcast %232 : vector<1x128xi1> to vector<32x128xi1>
    %234 = vector.broadcast %cst_95 : f32 to vector<32x128xf32>
    %235 = arith.select %233, %231, %234 : vector<32x128xi1>, vector<32x128xf32>
    %236 = vector.extract_strided_slice %200 {offsets = [0, 4], sizes = [32, 1], strides = [1, 1]} : vector<32x7xf32> to vector<32x1xf32>
    %237 = vector.broadcast %236 : vector<32x1xf32> to vector<32x128xf32>
    %238 = arith.mulf %235, %237 : vector<32x128xf32>
    %239 = arith.addf %230, %238 : vector<32x128xf32>
    %c126_i32_96 = arith.constant 126 : i32
    %240 = tpu.dynamic_rotate %198 by %c126_i32_96 dim 1 : vector<32x128xf32>, i32 -> vector<32x128xf32>
    %cst_97 = arith.constant 0.000000e+00 : f32
    %241 = vector.shape_cast %65 : vector<1x128xi1> to vector<1x128xi1>
    %242 = vector.broadcast %241 : vector<1x128xi1> to vector<32x128xi1>
    %243 = vector.broadcast %cst_97 : f32 to vector<32x128xf32>
    %244 = arith.select %242, %240, %243 : vector<32x128xi1>, vector<32x128xf32>
    %245 = vector.extract_strided_slice %200 {offsets = [0, 5], sizes = [32, 1], strides = [1, 1]} : vector<32x7xf32> to vector<32x1xf32>
    %246 = vector.broadcast %245 : vector<32x1xf32> to vector<32x128xf32>
    %247 = arith.mulf %244, %246 : vector<32x128xf32>
    %248 = arith.addf %239, %247 : vector<32x128xf32>
    %c125_i32_98 = arith.constant 125 : i32
    %249 = tpu.dynamic_rotate %198 by %c125_i32_98 dim 1 : vector<32x128xf32>, i32 -> vector<32x128xf32>
    %cst_99 = arith.constant 0.000000e+00 : f32
    %250 = vector.shape_cast %74 : vector<1x128xi1> to vector<1x128xi1>
    %251 = vector.broadcast %250 : vector<1x128xi1> to vector<32x128xi1>
    %252 = vector.broadcast %cst_99 : f32 to vector<32x128xf32>
    %253 = arith.select %251, %249, %252 : vector<32x128xi1>, vector<32x128xf32>
    %254 = vector.extract_strided_slice %200 {offsets = [0, 6], sizes = [32, 1], strides = [1, 1]} : vector<32x7xf32> to vector<32x1xf32>
    %255 = vector.broadcast %254 : vector<32x1xf32> to vector<32x128xf32>
    %256 = arith.mulf %253, %255 : vector<32x128xf32>
    %257 = arith.addf %248, %256 : vector<32x128xf32>
    %c0_100 = arith.constant 0 : index
    %c0_101 = arith.constant 0 : index
    %c0_102 = arith.constant 0 : index
    %258 = vector.load %arg22[%c0_100, %c0_101, %c0_102] : memref<1x32x1xf32, #tpu.memory_space<vmem>>, vector<1x32x1xf32>
    %259 = vector.shape_cast %258 : vector<1x32x1xf32> to vector<32x1xf32>
    %260 = vector.broadcast %259 : vector<32x1xf32> to vector<32x128xf32>
    %261 = arith.addf %257, %260 : vector<32x128xf32>
    %262 = vector.extract_strided_slice %261 {offsets = [0, 0], sizes = [16, 128], strides = [1, 1]} : vector<32x128xf32> to vector<16x128xf32>
    %263 = vector.extract_strided_slice %261 {offsets = [16, 0], sizes = [16, 128], strides = [1, 1]} : vector<32x128xf32> to vector<16x128xf32>
    %264 = arith.negf %263 : vector<16x128xf32>
    %265 = math.exp %264 : vector<16x128xf32>
    %cst_103 = arith.constant 1.000000e+00 : f32
    %266 = vector.broadcast %cst_103 : f32 to vector<16x128xf32>
    %267 = arith.addf %266, %265 : vector<16x128xf32>
    %268 = arith.divf %266, %267 : vector<16x128xf32>
    %269 = arith.mulf %262, %268 : vector<16x128xf32>
    %c0_104 = arith.constant 0 : index
    %c0_105 = arith.constant 0 : index
    %c0_106 = arith.constant 0 : index
    %270 = vector.load %arg23[%c0_104, %c0_105, %c0_106] : memref<1x16x16xbf16, #tpu.memory_space<vmem>>, vector<1x16x16xbf16>
    %271 = vector.shape_cast %270 : vector<1x16x16xbf16> to vector<16x16xbf16>
    %272 = arith.truncf %269 : vector<16x128xf32> to vector<16x128xbf16>
    %cst_107 = arith.constant dense<0.000000e+00> : vector<16x128xf32>
    %273 = tpu.matmul %271, %272, %cst_107 {dimension_numbers = #tpu.dot_dimension_numbers<[1], [0], [0], [1], [0, 0, 1, 1], [], []>} : vector<16x16xbf16>, vector<16x128xbf16>, vector<16x128xf32> -> vector<16x128xf32>
    %c0_108 = arith.constant 0 : index
    %c0_109 = arith.constant 0 : index
    %c0_110 = arith.constant 0 : index
    %274 = vector.load %arg24[%c0_108, %c0_109, %c0_110] : memref<1x16x1xf32, #tpu.memory_space<vmem>>, vector<1x16x1xf32>
    %275 = vector.shape_cast %274 : vector<1x16x1xf32> to vector<16x1xf32>
    %276 = vector.broadcast %275 : vector<16x1xf32> to vector<16x128xf32>
    %277 = arith.addf %273, %276 : vector<16x128xf32>
    %278 = arith.addf %75, %277 : vector<16x128xf32>
    %c0_111 = arith.constant 0 : index
    %c0_112 = arith.constant 0 : index
    %279 = vector.load %arg26[%c0_111, %c0_112] : memref<16x128xf32, #tpu.memory_space<vmem>>, vector<16x128xf32>
    tpu.vector_store %arg26[%c0_111, %c0_112], %278 {strides = array<i32>} : memref<16x128xf32, #tpu.memory_space<vmem>>, vector<16x128xf32>,
    %c0_113 = arith.constant 0 : index
    %c0_114 = arith.constant 0 : index
    %280 = vector.load %arg27[%c0_113, %c0_114] : memref<16x128xf32, #tpu.memory_space<vmem>>, vector<16x128xf32>
    tpu.vector_store %arg27[%c0_113, %c0_114], %177 {strides = array<i32>} : memref<16x128xf32, #tpu.memory_space<vmem>>, vector<16x128xf32>,
    %c1_i32_115 = arith.constant 1 : i32
    %281 = arith.cmpi eq, %arg1, %c1_i32_115 : i32
    %282 = arith.extui %281 : i1 to i32
    %c0_i32_116 = arith.constant 0 : i32
    %283 = arith.cmpi ne, %282, %c0_i32_116 : i32
    scf.if %283 {
      %c0_117 = arith.constant 0 : index
      %c0_118 = arith.constant 0 : index
      %284 = vector.load %arg6[%c0_117, %c0_118] : memref<8x16xbf16, #tpu.memory_space<vmem>>, vector<8x16xbf16>
      %285 = arith.truncf %278 : vector<16x128xf32> to vector<16x128xbf16>
      %cst_119 = arith.constant dense<0.000000e+00> : vector<8x128xf32>
      %286 = tpu.matmul %284, %285, %cst_119 {dimension_numbers = #tpu.dot_dimension_numbers<[1], [0], [0], [1], [0, 0, 1, 1], [], []>} : vector<8x16xbf16>, vector<16x128xbf16>, vector<8x128xf32> -> vector<8x128xf32>
      %c0_120 = arith.constant 0 : index
      %c0_121 = arith.constant 0 : index
      %287 = vector.load %arg7[%c0_120, %c0_121] : memref<8x16xbf16, #tpu.memory_space<vmem>>, vector<8x16xbf16>
      %288 = arith.truncf %177 : vector<16x128xf32> to vector<16x128xbf16>
      %cst_122 = arith.constant dense<0.000000e+00> : vector<8x128xf32>
      %289 = tpu.matmul %287, %288, %cst_122 {dimension_numbers = #tpu.dot_dimension_numbers<[1], [0], [0], [1], [0, 0, 1, 1], [], []>} : vector<8x16xbf16>, vector<16x128xbf16>, vector<8x128xf32> -> vector<8x128xf32>
      %290 = arith.addf %286, %289 : vector<8x128xf32>
      %c0_123 = arith.constant 0 : index
      %c0_124 = arith.constant 0 : index
      %291 = vector.load %arg8[%c0_123, %c0_124] : memref<8x1xf32, #tpu.memory_space<vmem>>, vector<8x1xf32>
      %292 = vector.broadcast %291 : vector<8x1xf32> to vector<8x128xf32>
      %293 = arith.addf %290, %292 : vector<8x128xf32>
      %c0_125 = arith.constant 0 : index
      %c0_126 = arith.constant 0 : index
      %294 = vector.load %arg25[%c0_125, %c0_126] : memref<8x128xf32, #tpu.memory_space<vmem>>, vector<8x128xf32>
      tpu.vector_store %arg25[%c0_125, %c0_126], %293 {strides = array<i32>} : memref<8x128xf32, #tpu.memory_space<vmem>>, vector<8x128xf32>,
    } else {
    }
    return
  }
  func.func @transform_0(%arg0: i32, %arg1: i32) -> (i32, i32) {
    %c0_i32 = arith.constant 0 : i32
    %c0_i32_0 = arith.constant 0 : i32
    return %c0_i32, %arg0 : i32, i32
  }
  func.func @transform_1(%arg0: i32, %arg1: i32) -> (i32, i32) {
    %c0_i32 = arith.constant 0 : i32
    %c0_i32_0 = arith.constant 0 : i32
    return %c0_i32, %arg0 : i32, i32
  }
  func.func @transform_2(%arg0: i32, %arg1: i32) -> (i32, i32) {
    %c0_i32 = arith.constant 0 : i32
    %c0_i32_0 = arith.constant 0 : i32
    %c0_i32_1 = arith.constant 0 : i32
    return %c0_i32, %c0_i32_0 : i32, i32
  }
  func.func @transform_3(%arg0: i32, %arg1: i32) -> (i32, i32) {
    %c0_i32 = arith.constant 0 : i32
    %c0_i32_0 = arith.constant 0 : i32
    %c0_i32_1 = arith.constant 0 : i32
    return %c0_i32, %c0_i32_0 : i32, i32
  }
  func.func @transform_4(%arg0: i32, %arg1: i32) -> (i32, i32) {
    %c0_i32 = arith.constant 0 : i32
    %c0_i32_0 = arith.constant 0 : i32
    %c0_i32_1 = arith.constant 0 : i32
    return %c0_i32, %c0_i32_0 : i32, i32
  }
  func.func @transform_5(%arg0: i32, %arg1: i32) -> (i32, i32) {
    %c0_i32 = arith.constant 0 : i32
    %c0_i32_0 = arith.constant 0 : i32
    %c0_i32_1 = arith.constant 0 : i32
    return %c0_i32, %c0_i32_0 : i32, i32
  }
  func.func @transform_6(%arg0: i32, %arg1: i32) -> (i32, i32) {
    %c0_i32 = arith.constant 0 : i32
    %c0_i32_0 = arith.constant 0 : i32
    %c0_i32_1 = arith.constant 0 : i32
    return %c0_i32, %c0_i32_0 : i32, i32
  }
  func.func @transform_7(%arg0: i32, %arg1: i32) -> (i32, i32, i32) {
    %c0_i32 = arith.constant 0 : i32
    %c0_i32_0 = arith.constant 0 : i32
    %c0_i32_1 = arith.constant 0 : i32
    return %arg1, %c0_i32, %c0_i32_0 : i32, i32, i32
  }
  func.func @transform_8(%arg0: i32, %arg1: i32) -> (i32, i32, i32) {
    %c0_i32 = arith.constant 0 : i32
    %c0_i32_0 = arith.constant 0 : i32
    %c0_i32_1 = arith.constant 0 : i32
    return %arg1, %c0_i32, %c0_i32_0 : i32, i32, i32
  }
  func.func @transform_9(%arg0: i32, %arg1: i32) -> (i32, i32, i32) {
    %c0_i32 = arith.constant 0 : i32
    %c0_i32_0 = arith.constant 0 : i32
    %c0_i32_1 = arith.constant 0 : i32
    return %arg1, %c0_i32, %c0_i32_0 : i32, i32, i32
  }
  func.func @transform_10(%arg0: i32, %arg1: i32) -> (i32, i32, i32) {
    %c0_i32 = arith.constant 0 : i32
    %c0_i32_0 = arith.constant 0 : i32
    %c0_i32_1 = arith.constant 0 : i32
    return %arg1, %c0_i32, %c0_i32_0 : i32, i32, i32
  }
  func.func @transform_11(%arg0: i32, %arg1: i32) -> (i32, i32, i32) {
    %c0_i32 = arith.constant 0 : i32
    %c0_i32_0 = arith.constant 0 : i32
    %c0_i32_1 = arith.constant 0 : i32
    return %arg1, %c0_i32, %c0_i32_0 : i32, i32, i32
  }
  func.func @transform_12(%arg0: i32, %arg1: i32) -> (i32, i32, i32) {
    %c0_i32 = arith.constant 0 : i32
    %c0_i32_0 = arith.constant 0 : i32
    %c0_i32_1 = arith.constant 0 : i32
    return %arg1, %c0_i32, %c0_i32_0 : i32, i32, i32
  }
  func.func @transform_13(%arg0: i32, %arg1: i32) -> (i32, i32, i32) {
    %c0_i32 = arith.constant 0 : i32
    %c0_i32_0 = arith.constant 0 : i32
    %c0_i32_1 = arith.constant 0 : i32
    return %arg1, %c0_i32, %c0_i32_0 : i32, i32, i32
  }
  func.func @transform_14(%arg0: i32, %arg1: i32) -> (i32, i32, i32) {
    %c0_i32 = arith.constant 0 : i32
    %c0_i32_0 = arith.constant 0 : i32
    %c0_i32_1 = arith.constant 0 : i32
    return %arg1, %c0_i32, %c0_i32_0 : i32, i32, i32
  }
  func.func @transform_15(%arg0: i32, %arg1: i32) -> (i32, i32, i32) {
    %c0_i32 = arith.constant 0 : i32
    %c0_i32_0 = arith.constant 0 : i32
    %c0_i32_1 = arith.constant 0 : i32
    return %arg1, %c0_i32, %c0_i32_0 : i32, i32, i32
  }
  func.func @transform_16(%arg0: i32, %arg1: i32) -> (i32, i32, i32) {
    %c0_i32 = arith.constant 0 : i32
    %c0_i32_0 = arith.constant 0 : i32
    %c0_i32_1 = arith.constant 0 : i32
    return %arg1, %c0_i32, %c0_i32_0 : i32, i32, i32
  }
  func.func @transform_17(%arg0: i32, %arg1: i32) -> (i32, i32, i32) {
    %c0_i32 = arith.constant 0 : i32
    %c0_i32_0 = arith.constant 0 : i32
    %c0_i32_1 = arith.constant 0 : i32
    return %arg1, %c0_i32, %c0_i32_0 : i32, i32, i32
  }
  func.func @transform_18(%arg0: i32, %arg1: i32) -> (i32, i32, i32) {
    %c0_i32 = arith.constant 0 : i32
    %c0_i32_0 = arith.constant 0 : i32
    %c0_i32_1 = arith.constant 0 : i32
    return %arg1, %c0_i32, %c0_i32_0 : i32, i32, i32
  }
  func.func @transform_19(%arg0: i32, %arg1: i32) -> (i32, i32, i32) {
    %c0_i32 = arith.constant 0 : i32
    %c0_i32_0 = arith.constant 0 : i32
    %c0_i32_1 = arith.constant 0 : i32
    return %arg1, %c0_i32, %c0_i32_0 : i32, i32, i32
  }
  func.func @transform_20(%arg0: i32, %arg1: i32) -> (i32, i32, i32) {
    %c0_i32 = arith.constant 0 : i32
    %c0_i32_0 = arith.constant 0 : i32
    %c0_i32_1 = arith.constant 0 : i32
    return %arg1, %c0_i32, %c0_i32_0 : i32, i32, i32
  }
  func.func @transform_21(%arg0: i32, %arg1: i32) -> (i32, i32, i32) {
    %c0_i32 = arith.constant 0 : i32
    %c0_i32_0 = arith.constant 0 : i32
    %c0_i32_1 = arith.constant 0 : i32
    return %arg1, %c0_i32, %c0_i32_0 : i32, i32, i32
  }
  func.func @transform_22(%arg0: i32, %arg1: i32) -> (i32, i32, i32) {
    %c0_i32 = arith.constant 0 : i32
    %c0_i32_0 = arith.constant 0 : i32
    %c0_i32_1 = arith.constant 0 : i32
    return %arg1, %c0_i32, %c0_i32_0 : i32, i32, i32
  }
  func.func @transform_23(%arg0: i32, %arg1: i32) -> (i32, i32) {
    %c0_i32 = arith.constant 0 : i32
    %c0_i32_0 = arith.constant 0 : i32
    return %c0_i32, %arg0 : i32, i32
  }
}

</mosaic_0001>

<llo_original>
// kernel: tpu_custom_call.1
$region0: #{tpu_custom_call.1}
  #allocation0 [shape = 'u32[]', space=smem, size = 0x4, offset = 0x4, fixed_abs, tag = 'smem constant byte address 0x4 - core index']
  #allocation1 [shape = 'u32[144,128]{1,0:T(1,128)}', space=vmem, size = 0x12000, scoped, tag = 'internal scratch']
  #allocation2 [shape = 'f32[16,128]{1,0:T(8,128)}', space=vmem, size = 0x2000, scoped, tag = 'scratch operand']
  #allocation3 [shape = 'f32[16,128]{1,0:T(8,128)}', space=vmem, size = 0x2000, scoped, tag = 'scratch operand']
  %s0 = inlined_call_operand.vmem [shape: bf16[8,128], index: 0, kind: input, shape index: {}]
  %s1 = inlined_call_operand.vmem [shape: bf16[17,128], index: 1, kind: input, shape index: {}]
  %s2 = inlined_call_operand.vmem [shape: bf16[32,8], index: 2, kind: input, shape index: {}]
  %s3 = inlined_call_operand.vmem [shape: f32[32,1], index: 3, kind: input, shape index: {}]
  %s4 = inlined_call_operand.vmem [shape: bf16[8,16], index: 4, kind: input, shape index: {}]
  %s5 = inlined_call_operand.vmem [shape: bf16[8,16], index: 5, kind: input, shape index: {}]
  %s6 = inlined_call_operand.vmem [shape: f32[8,1], index: 6, kind: input, shape index: {}]
  %s7 = inlined_call_operand.vmem [shape: bf16[2,32,16], index: 7, kind: input, shape index: {}]
  %s8 = inlined_call_operand.vmem [shape: bf16[2,32,16], index: 8, kind: input, shape index: {}]
  %s9 = inlined_call_operand.vmem [shape: bf16[2,32,17], index: 9, kind: input, shape index: {}]
  %s10 = inlined_call_operand.vmem [shape: bf16[2,32,17], index: 10, kind: input, shape index: {}]
  %s11 = inlined_call_operand.vmem [shape: f32[2,32,7], index: 11, kind: input, shape index: {}]
  %s12 = inlined_call_operand.vmem [shape: f32[2,32,1], index: 12, kind: input, shape index: {}]
  %s13 = inlined_call_operand.vmem [shape: bf16[2,16,16], index: 13, kind: input, shape index: {}]
  %s14 = inlined_call_operand.vmem [shape: f32[2,16,1], index: 14, kind: input, shape index: {}]
  %s15 = inlined_call_operand.vmem [shape: bf16[2,32,16], index: 15, kind: input, shape index: {}]
  %s16 = inlined_call_operand.vmem [shape: bf16[2,32,16], index: 16, kind: input, shape index: {}]
  %s17 = inlined_call_operand.vmem [shape: bf16[2,32,17], index: 17, kind: input, shape index: {}]
  %s18 = inlined_call_operand.vmem [shape: bf16[2,32,17], index: 18, kind: input, shape index: {}]
  %s19 = inlined_call_operand.vmem [shape: f32[2,32,7], index: 19, kind: input, shape index: {}]
  %s20 = inlined_call_operand.vmem [shape: f32[2,32,1], index: 20, kind: input, shape index: {}]
  %s21 = inlined_call_operand.vmem [shape: bf16[2,16,16], index: 21, kind: input, shape index: {}]
  %s22 = inlined_call_operand.vmem [shape: f32[2,16,1], index: 22, kind: input, shape index: {}]
  %s23 = inlined_call_operand.hbm [shape: f32[8,128], index: 23, kind: output, shape index: {}]
  %s24 = sld [smem:[#allocation0]]
  $region133: #{tpu_custom_call.1} parent=0
    _
  %s26 = ssub.s32 1, %s24
  %s27 = scalar_select 0, %s26, %s24
  $region1: #{tpu_custom_call.1} parent=0
    #allocation4 [shape = 'u8[4096]{0}', space=vmem, size = 0x1000, scoped, tag = 'output window, operand 0, single buffered']
    #allocation5 [shape = 's32[2]{0}', space=sflag, size = 0x8, scoped, tag = 'scoped memory for tpu_custom_call.1']
    %28 = vsyncpa [#allocation5], 0
    loop: start=0, step=1, limit=4
    $region2: #{tpu_custom_call.1} parent=1 // loop_pre_header
      _
    $region3: #{tpu_custom_call.1} parent=1 // loop_header
      %s30 = sphi 0, %s34
      %p31 = scmp.ge.s32.totalorder %s30, 4
      %s37 = sphi 0, %s49
      %s38 = sphi 0, %s45
      %s39 = sphi 0, %s37
      %s40 = sphi 0, %s38
      %s41 = sphi 0, %s39
      %s42 = sphi 0, %s40
      %s52 = sphi 0, %s54
      %s55 = sphi 0, %s52
      %s56 = sphi 0, %s55
      %s72 = sphi 0, %s56
      %s78 = sphi 0, %s80
      %s81 = sphi 0, %s78
      %s82 = sphi 0, %s81
      %s98 = sphi 0, %s82
      %s102 = sphi 0, %s102
      %s104 = sphi 0, %s102
      %s105 = sphi 0, %s104
      %s119 = sphi 0, %s105
      %s123 = sphi 0, %s123
      %s125 = sphi 0, %s123
      %s126 = sphi 0, %s125
      %s140 = sphi 0, %s126
      %s144 = sphi 0, %s144
      %s146 = sphi 0, %s144
      %s147 = sphi 0, %s146
      %s161 = sphi 0, %s147
      %s165 = sphi 0, %s165
      %s167 = sphi 0, %s165
      %s168 = sphi 0, %s167
      %s182 = sphi 0, %s168
      %s186 = sphi 0, %s186
      %s188 = sphi 0, %s186
      %s189 = sphi 0, %s188
      %s203 = sphi 0, %s189
      %s209 = sphi 0, %s211
      %s212 = sphi 0, %s209
      %s213 = sphi 0, %s212
      %s229 = sphi 0, %s213
      %s235 = sphi 0, %s237
      %s238 = sphi 0, %s235
      %s239 = sphi 0, %s238
      %s255 = sphi 0, %s239
      %s261 = sphi 0, %s263
      %s264 = sphi 0, %s261
      %s265 = sphi 0, %s264
      %s281 = sphi 0, %s265
      %s287 = sphi 0, %s289
      %s290 = sphi 0, %s287
      %s291 = sphi 0, %s290
      %s307 = sphi 0, %s291
      %s313 = sphi 0, %s315
      %s316 = sphi 0, %s313
      %s317 = sphi 0, %s316
      %s333 = sphi 0, %s317
      %s339 = sphi 0, %s341
      %s342 = sphi 0, %s339
      %s343 = sphi 0, %s342
      %s359 = sphi 0, %s343
      %s365 = sphi 0, %s367
      %s368 = sphi 0, %s365
      %s369 = sphi 0, %s368
      %s385 = sphi 0, %s369
      %s391 = sphi 0, %s393
      %s394 = sphi 0, %s391
      %s395 = sphi 0, %s394
      %s411 = sphi 0, %s395
      %s417 = sphi 0, %s419
      %s420 = sphi 0, %s417
      %s421 = sphi 0, %s420
      %s437 = sphi 0, %s421
      %s443 = sphi 0, %s445
      %s446 = sphi 0, %s443
      %s447 = sphi 0, %s446
      %s463 = sphi 0, %s447
      %s469 = sphi 0, %s471
      %s472 = sphi 0, %s469
      %s473 = sphi 0, %s472
      %s489 = sphi 0, %s473
      %s495 = sphi 0, %s497
      %s498 = sphi 0, %s495
      %s499 = sphi 0, %s498
      %s515 = sphi 0, %s499
      %s521 = sphi 0, %s523
      %s524 = sphi 0, %s521
      %s525 = sphi 0, %s524
      %s541 = sphi 0, %s525
      %s547 = sphi 0, %s549
      %s550 = sphi 0, %s547
      %s551 = sphi 0, %s550
      %s567 = sphi 0, %s551
      %s573 = sphi 0, %s575
      %s576 = sphi 0, %s573
      %s577 = sphi 0, %s576
      %s593 = sphi 0, %s577
      %s599 = sphi 0, %s601
      %s602 = sphi 0, %s599
      %s603 = sphi 0, %s602
      %s619 = sphi 0, %s603
      %s625 = sphi 0, %s627
      %s628 = sphi 0, %s625
      %s629 = sphi 0, %s628
      %s645 = sphi 0, %s629
    $region4: #{tpu_custom_call.1} parent=1 // loop_header_branch
      %33 = sbr.rel (%p31) target = $region8
    $region5: #{tpu_custom_call.1} parent=1 // loop_body
      %s35 = ssub.s32 %s30, 1
      %s36 = ssub.s32 %s30, 2
      %s43 = sadd.s32 1, %s38
      %p44 = scmp.ge.s32.totalorder %s43, 2
      %s45 = scalar_select %p44, 0, %s43
      %s46 = sadd.s32 1, %s37
      %s47 = scalar_select %p44, %s46, %s37
      %p48 = scmp.ge.s32.totalorder %s47, 1
      %s49 = scalar_select %p48, 0, %s47
      %s50 = ssub.s32 %s37, %s49
      %p51 = scmp.eq.s32.totalorder %s50, 0
      %s53 = sadd.s32 %s52, 1
      %s54 = scalar_select %p51, %s52, %s53
      %p57 = pneg %p51
      %p58 = scmp.eq.s32.totalorder %s30, 1
      %p59 = por %p57, %p58
      %p60 = scmp.ne.s32.totalorder %s52, %s55
      %p61 = scmp.eq.s32.totalorder %s30, 0
      %p62 = por %p60, %p61
      %p63 = scmp.ne.s32.totalorder %s52, %s55
      %p64 = scmp.eq.s32.totalorder %s35, 1
      %p65 = por %p63, %p64
      %p66 = scmp.ne.s32.totalorder %s55, %s56
      %p67 = scmp.eq.s32.totalorder %s35, 0
      %p68 = por %p66, %p67
      %p69 = scmp.ne.s32.totalorder %s55, %s56
      %p70 = scmp.eq.s32.totalorder %s36, 1
      %p71 = por %p69, %p70
      %p73 = scmp.ne.s32.totalorder %s56, %s72
      %p74 = scmp.eq.s32.totalorder %s36, 0
      %p75 = por %p73, %p74
      %s76 = ssub.s32 %s37, %s49
      %p77 = scmp.eq.s32.totalorder %s76, 0
      %s79 = sadd.s32 %s78, 1
      %s80 = scalar_select %p77, %s78, %s79
      %p83 = pneg %p77
      %p84 = scmp.eq.s32.totalorder %s30, 1
      %p85 = por %p83, %p84
      %p86 = scmp.ne.s32.totalorder %s78, %s81
      %p87 = scmp.eq.s32.totalorder %s30, 0
      %p88 = por %p86, %p87
      %p89 = scmp.ne.s32.totalorder %s78, %s81
      %p90 = scmp.eq.s32.totalorder %s35, 1
      %p91 = por %p89, %p90
      %p92 = scmp.ne.s32.totalorder %s81, %s82
      %p93 = scmp.eq.s32.totalorder %s35, 0
      %p94 = por %p92, %p93
      %p95 = scmp.ne.s32.totalorder %s81, %s82
      %p96 = scmp.eq.s32.totalorder %s36, 1
      %p97 = por %p95, %p96
      %p99 = scmp.ne.s32.totalorder %s82, %s98
      %p100 = scmp.eq.s32.totalorder %s36, 0
      %p101 = por %p99, %p100
      %s103 = sadd.s32 %s102, 1
      %p106 = scmp.eq.s32.totalorder %s30, 1
      %p107 = scmp.ne.s32.totalorder %s102, %s104
      %p108 = scmp.eq.s32.totalorder %s30, 0
      %p109 = por %p107, %p108
      %p110 = scmp.ne.s32.totalorder %s102, %s104
      %p111 = scmp.eq.s32.totalorder %s35, 1
      %p112 = por %p110, %p111
      %p113 = scmp.ne.s32.totalorder %s104, %s105
      %p114 = scmp.eq.s32.totalorder %s35, 0
      %p115 = por %p113, %p114
      %p116 = scmp.ne.s32.totalorder %s104, %s105
      %p117 = scmp.eq.s32.totalorder %s36, 1
      %p118 = por %p116, %p117
      %p120 = scmp.ne.s32.totalorder %s105, %s119
      %p121 = scmp.eq.s32.totalorder %s36, 0
      %p122 = por %p120, %p121
      %s124 = sadd.s32 %s123, 1
      %p127 = scmp.eq.s32.totalorder %s30, 1
      %p128 = scmp.ne.s32.totalorder %s123, %s125
      %p129 = scmp.eq.s32.totalorder %s30, 0
      %p130 = por %p128, %p129
      %p131 = scmp.ne.s32.totalorder %s123, %s125
      %p132 = scmp.eq.s32.totalorder %s35, 1
      %p133 = por %p131, %p132
      %p134 = scmp.ne.s32.totalorder %s125, %s126
      %p135 = scmp.eq.s32.totalorder %s35, 0
      %p136 = por %p134, %p135
      %p137 = scmp.ne.s32.totalorder %s125, %s126
      %p138 = scmp.eq.s32.totalorder %s36, 1
      %p139 = por %p137, %p138
      %p141 = scmp.ne.s32.totalorder %s126, %s140
      %p142 = scmp.eq.s32.totalorder %s36, 0
      %p143 = por %p141, %p142
      %s145 = sadd.s32 %s144, 1
      %p148 = scmp.eq.s32.totalorder %s30, 1
      %p149 = scmp.ne.s32.totalorder %s144, %s146
      %p150 = scmp.eq.s32.totalorder %s30, 0
      %p151 = por %p149, %p150
      %p152 = scmp.ne.s32.totalorder %s144, %s146
      %p153 = scmp.eq.s32.totalorder %s35, 1
      %p154 = por %p152, %p153
      %p155 = scmp.ne.s32.totalorder %s146, %s147
      %p156 = scmp.eq.s32.totalorder %s35, 0
      %p157 = por %p155, %p156
      %p158 = scmp.ne.s32.totalorder %s146, %s147
      %p159 = scmp.eq.s32.totalorder %s36, 1
      %p160 = por %p158, %p159
      %p162 = scmp.ne.s32.totalorder %s147, %s161
      %p163 = scmp.eq.s32.totalorder %s36, 0
      %p164 = por %p162, %p163
      %s166 = sadd.s32 %s165, 1
      %p169 = scmp.eq.s32.totalorder %s30, 1
      %p170 = scmp.ne.s32.totalorder %s165, %s167
      %p171 = scmp.eq.s32.totalorder %s30, 0
      %p172 = por %p170, %p171
      %p173 = scmp.ne.s32.totalorder %s165, %s167
      %p174 = scmp.eq.s32.totalorder %s35, 1
      %p175 = por %p173, %p174
      %p176 = scmp.ne.s32.totalorder %s167, %s168
      %p177 = scmp.eq.s32.totalorder %s35, 0
      %p178 = por %p176, %p177
      %p179 = scmp.ne.s32.totalorder %s167, %s168
      %p180 = scmp.eq.s32.totalorder %s36, 1
      %p181 = por %p179, %p180
      %p183 = scmp.ne.s32.totalorder %s168, %s182
      %p184 = scmp.eq.s32.totalorder %s36, 0
      %p185 = por %p183, %p184
      %s187 = sadd.s32 %s186, 1
      %p190 = scmp.eq.s32.totalorder %s30, 1
      %p191 = scmp.ne.s32.totalorder %s186, %s188
      %p192 = scmp.eq.s32.totalorder %s30, 0
      %p193 = por %p191, %p192
      %p194 = scmp.ne.s32.totalorder %s186, %s188
      %p195 = scmp.eq.s32.totalorder %s35, 1
      %p196 = por %p194, %p195
      %p197 = scmp.ne.s32.totalorder %s188, %s189
      %p198 = scmp.eq.s32.totalorder %s35, 0
      %p199 = por %p197, %p198
      %p200 = scmp.ne.s32.totalorder %s188, %s189
      %p201 = scmp.eq.s32.totalorder %s36, 1
      %p202 = por %p200, %p201
      %p204 = scmp.ne.s32.totalorder %s189, %s203
      %p205 = scmp.eq.s32.totalorder %s36, 0
      %p206 = por %p204, %p205
      %s207 = ssub.s32 %s38, %s45
      %p208 = scmp.eq.s32.totalorder %s207, 0
      %s210 = sadd.s32 %s209, 1
      %s211 = scalar_select %p208, %s209, %s210
      %p214 = pneg %p208
      %p215 = scmp.eq.s32.totalorder %s30, 1
      %p216 = por %p214, %p215
      %p217 = scmp.ne.s32.totalorder %s209, %s212
      %p218 = scmp.eq.s32.totalorder %s30, 0
      %p219 = por %p217, %p218
      %p220 = scmp.ne.s32.totalorder %s209, %s212
      %p221 = scmp.eq.s32.totalorder %s35, 1
      %p222 = por %p220, %p221
      %p223 = scmp.ne.s32.totalorder %s212, %s213
      %p224 = scmp.eq.s32.totalorder %s35, 0
      %p225 = por %p223, %p224
      %p226 = scmp.ne.s32.totalorder %s212, %s213
      %p227 = scmp.eq.s32.totalorder %s36, 1
      %p228 = por %p226, %p227
      %p230 = scmp.ne.s32.totalorder %s213, %s229
      %p231 = scmp.eq.s32.totalorder %s36, 0
      %p232 = por %p230, %p231
      %s233 = ssub.s32 %s38, %s45
      %p234 = scmp.eq.s32.totalorder %s233, 0
      %s236 = sadd.s32 %s235, 1
      %s237 = scalar_select %p234, %s235, %s236
      %p240 = pneg %p234
      %p241 = scmp.eq.s32.totalorder %s30, 1
      %p242 = por %p240, %p241
      %p243 = scmp.ne.s32.totalorder %s235, %s238
      %p244 = scmp.eq.s32.totalorder %s30, 0
      %p245 = por %p243, %p244
      %p246 = scmp.ne.s32.totalorder %s235, %s238
      %p247 = scmp.eq.s32.totalorder %s35, 1
      %p248 = por %p246, %p247
      %p249 = scmp.ne.s32.totalorder %s238, %s239
      %p250 = scmp.eq.s32.totalorder %s35, 0
      %p251 = por %p249, %p250
      %p252 = scmp.ne.s32.totalorder %s238, %s239
      %p253 = scmp.eq.s32.totalorder %s36, 1
      %p254 = por %p252, %p253
      %p256 = scmp.ne.s32.totalorder %s239, %s255
      %p257 = scmp.eq.s32.totalorder %s36, 0
      %p258 = por %p256, %p257
      %s259 = ssub.s32 %s38, %s45
      %p260 = scmp.eq.s32.totalorder %s259, 0
      %s262 = sadd.s32 %s261, 1
      %s263 = scalar_select %p260, %s261, %s262
      %p266 = pneg %p260
      %p267 = scmp.eq.s32.totalorder %s30, 1
      %p268 = por %p266, %p267
      %p269 = scmp.ne.s32.totalorder %s261, %s264
      %p270 = scmp.eq.s32.totalorder %s30, 0
      %p271 = por %p269, %p270
      %p272 = scmp.ne.s32.totalorder %s261, %s264
      %p273 = scmp.eq.s32.totalorder %s35, 1
      %p274 = por %p272, %p273
      %p275 = scmp.ne.s32.totalorder %s264, %s265
      %p276 = scmp.eq.s32.totalorder %s35, 0
      %p277 = por %p275, %p276
      %p278 = scmp.ne.s32.totalorder %s264, %s265
      %p279 = scmp.eq.s32.totalorder %s36, 1
      %p280 = por %p278, %p279
      %p282 = scmp.ne.s32.totalorder %s265, %s281
      %p283 = scmp.eq.s32.totalorder %s36, 0
      %p284 = por %p282, %p283
      %s285 = ssub.s32 %s38, %s45
      %p286 = scmp.eq.s32.totalorder %s285, 0
      %s288 = sadd.s32 %s287, 1
      %s289 = scalar_select %p286, %s287, %s288
      %p292 = pneg %p286
      %p293 = scmp.eq.s32.totalorder %s30, 1
      %p294 = por %p292, %p293
      %p295 = scmp.ne.s32.totalorder %s287, %s290
      %p296 = scmp.eq.s32.totalorder %s30, 0
      %p297 = por %p295, %p296
      %p298 = scmp.ne.s32.totalorder %s287, %s290
      %p299 = scmp.eq.s32.totalorder %s35, 1
      %p300 = por %p298, %p299
      %p301 = scmp.ne.s32.totalorder %s290, %s291
      %p302 = scmp.eq.s32.totalorder %s35, 0
      %p303 = por %p301, %p302
      %p304 = scmp.ne.s32.totalorder %s290, %s291
      %p305 = scmp.eq.s32.totalorder %s36, 1
      %p306 = por %p304, %p305
      %p308 = scmp.ne.s32.totalorder %s291, %s307
      %p309 = scmp.eq.s32.totalorder %s36, 0
      %p310 = por %p308, %p309
      %s311 = ssub.s32 %s38, %s45
      %p312 = scmp.eq.s32.totalorder %s311, 0
      %s314 = sadd.s32 %s313, 1
      %s315 = scalar_select %p312, %s313, %s314
      %p318 = pneg %p312
      %p319 = scmp.eq.s32.totalorder %s30, 1
      %p320 = por %p318, %p319
      %p321 = scmp.ne.s32.totalorder %s313, %s316
      %p322 = scmp.eq.s32.totalorder %s30, 0
      %p323 = por %p321, %p322
      %p324 = scmp.ne.s32.totalorder %s313, %s316
      %p325 = scmp.eq.s32.totalorder %s35, 1
      %p326 = por %p324, %p325
      %p327 = scmp.ne.s32.totalorder %s316, %s317
      %p328 = scmp.eq.s32.totalorder %s35, 0
      %p329 = por %p327, %p328
      %p330 = scmp.ne.s32.totalorder %s316, %s317
      %p331 = scmp.eq.s32.totalorder %s36, 1
      %p332 = por %p330, %p331
      %p334 = scmp.ne.s32.totalorder %s317, %s333
      %p335 = scmp.eq.s32.totalorder %s36, 0
      %p336 = por %p334, %p335
      %s337 = ssub.s32 %s38, %s45
      %p338 = scmp.eq.s32.totalorder %s337, 0
      %s340 = sadd.s32 %s339, 1
      %s341 = scalar_select %p338, %s339, %s340
      %p344 = pneg %p338
      %p345 = scmp.eq.s32.totalorder %s30, 1
      %p346 = por %p344, %p345
      %p347 = scmp.ne.s32.totalorder %s339, %s342
      %p348 = scmp.eq.s32.totalorder %s30, 0
      %p349 = por %p347, %p348
      %p350 = scmp.ne.s32.totalorder %s339, %s342
      %p351 = scmp.eq.s32.totalorder %s35, 1
      %p352 = por %p350, %p351
      %p353 = scmp.ne.s32.totalorder %s342, %s343
      %p354 = scmp.eq.s32.totalorder %s35, 0
      %p355 = por %p353, %p354
      %p356 = scmp.ne.s32.totalorder %s342, %s343
      %p357 = scmp.eq.s32.totalorder %s36, 1
      %p358 = por %p356, %p357
      %p360 = scmp.ne.s32.totalorder %s343, %s359
      %p361 = scmp.eq.s32.totalorder %s36, 0
      %p362 = por %p360, %p361
      %s363 = ssub.s32 %s38, %s45
      %p364 = scmp.eq.s32.totalorder %s363, 0
      %s366 = sadd.s32 %s365, 1
      %s367 = scalar_select %p364, %s365, %s366
      %p370 = pneg %p364
      %p371 = scmp.eq.s32.totalorder %s30, 1
      %p372 = por %p370, %p371
      %p373 = scmp.ne.s32.totalorder %s365, %s368
      %p374 = scmp.eq.s32.totalorder %s30, 0
      %p375 = por %p373, %p374
      %p376 = scmp.ne.s32.totalorder %s365, %s368
      %p377 = scmp.eq.s32.totalorder %s35, 1
      %p378 = por %p376, %p377
      %p379 = scmp.ne.s32.totalorder %s368, %s369
      %p380 = scmp.eq.s32.totalorder %s35, 0
      %p381 = por %p379, %p380
      %p382 = scmp.ne.s32.totalorder %s368, %s369
      %p383 = scmp.eq.s32.totalorder %s36, 1
      %p384 = por %p382, %p383
      %p386 = scmp.ne.s32.totalorder %s369, %s385
      %p387 = scmp.eq.s32.totalorder %s36, 0
      %p388 = por %p386, %p387
      %s389 = ssub.s32 %s38, %s45
      %p390 = scmp.eq.s32.totalorder %s389, 0
      %s392 = sadd.s32 %s391, 1
      %s393 = scalar_select %p390, %s391, %s392
      %p396 = pneg %p390
      %p397 = scmp.eq.s32.totalorder %s30, 1
      %p398 = por %p396, %p397
      %p399 = scmp.ne.s32.totalorder %s391, %s394
      %p400 = scmp.eq.s32.totalorder %s30, 0
      %p401 = por %p399, %p400
      %p402 = scmp.ne.s32.totalorder %s391, %s394
      %p403 = scmp.eq.s32.totalorder %s35, 1
      %p404 = por %p402, %p403
      %p405 = scmp.ne.s32.totalorder %s394, %s395
      %p406 = scmp.eq.s32.totalorder %s35, 0
      %p407 = por %p405, %p406
      %p408 = scmp.ne.s32.totalorder %s394, %s395
      %p409 = scmp.eq.s32.totalorder %s36, 1
      %p410 = por %p408, %p409
      %p412 = scmp.ne.s32.totalorder %s395, %s411
      %p413 = scmp.eq.s32.totalorder %s36, 0
      %p414 = por %p412, %p413
      %s415 = ssub.s32 %s38, %s45
      %p416 = scmp.eq.s32.totalorder %s415, 0
      %s418 = sadd.s32 %s417, 1
      %s419 = scalar_select %p416, %s417, %s418
      %p422 = pneg %p416
      %p423 = scmp.eq.s32.totalorder %s30, 1
      %p424 = por %p422, %p423
      %p425 = scmp.ne.s32.totalorder %s417, %s420
      %p426 = scmp.eq.s32.totalorder %s30, 0
      %p427 = por %p425, %p426
      %p428 = scmp.ne.s32.totalorder %s417, %s420
      %p429 = scmp.eq.s32.totalorder %s35, 1
      %p430 = por %p428, %p429
      %p431 = scmp.ne.s32.totalorder %s420, %s421
      %p432 = scmp.eq.s32.totalorder %s35, 0
      %p433 = por %p431, %p432
      %p434 = scmp.ne.s32.totalorder %s420, %s421
      %p435 = scmp.eq.s32.totalorder %s36, 1
      %p436 = por %p434, %p435
      %p438 = scmp.ne.s32.totalorder %s421, %s437
      %p439 = scmp.eq.s32.totalorder %s36, 0
      %p440 = por %p438, %p439
      %s441 = ssub.s32 %s38, %s45
      %p442 = scmp.eq.s32.totalorder %s441, 0
      %s444 = sadd.s32 %s443, 1
      %s445 = scalar_select %p442, %s443, %s444
      %p448 = pneg %p442
      %p449 = scmp.eq.s32.totalorder %s30, 1
      %p450 = por %p448, %p449
      %p451 = scmp.ne.s32.totalorder %s443, %s446
      %p452 = scmp.eq.s32.totalorder %s30, 0
      %p453 = por %p451, %p452
      %p454 = scmp.ne.s32.totalorder %s443, %s446
      %p455 = scmp.eq.s32.totalorder %s35, 1
      %p456 = por %p454, %p455
      %p457 = scmp.ne.s32.totalorder %s446, %s447
      %p458 = scmp.eq.s32.totalorder %s35, 0
      %p459 = por %p457, %p458
      %p460 = scmp.ne.s32.totalorder %s446, %s447
      %p461 = scmp.eq.s32.totalorder %s36, 1
      %p462 = por %p460, %p461
      %p464 = scmp.ne.s32.totalorder %s447, %s463
      %p465 = scmp.eq.s32.totalorder %s36, 0
      %p466 = por %p464, %p465
      %s467 = ssub.s32 %s38, %s45
      %p468 = scmp.eq.s32.totalorder %s467, 0
      %s470 = sadd.s32 %s469, 1
      %s471 = scalar_select %p468, %s469, %s470
      %p474 = pneg %p468
      %p475 = scmp.eq.s32.totalorder %s30, 1
      %p476 = por %p474, %p475
      %p477 = scmp.ne.s32.totalorder %s469, %s472
      %p478 = scmp.eq.s32.totalorder %s30, 0
      %p479 = por %p477, %p478
      %p480 = scmp.ne.s32.totalorder %s469, %s472
      %p481 = scmp.eq.s32.totalorder %s35, 1
      %p482 = por %p480, %p481
      %p483 = scmp.ne.s32.totalorder %s472, %s473
      %p484 = scmp.eq.s32.totalorder %s35, 0
      %p485 = por %p483, %p484
      %p486 = scmp.ne.s32.totalorder %s472, %s473
      %p487 = scmp.eq.s32.totalorder %s36, 1
      %p488 = por %p486, %p487
      %p490 = scmp.ne.s32.totalorder %s473, %s489
      %p491 = scmp.eq.s32.totalorder %s36, 0
      %p492 = por %p490, %p491
      %s493 = ssub.s32 %s38, %s45
      %p494 = scmp.eq.s32.totalorder %s493, 0
      %s496 = sadd.s32 %s495, 1
      %s497 = scalar_select %p494, %s495, %s496
      %p500 = pneg %p494
      %p501 = scmp.eq.s32.totalorder %s30, 1
      %p502 = por %p500, %p501
      %p503 = scmp.ne.s32.totalorder %s495, %s498
      %p504 = scmp.eq.s32.totalorder %s30, 0
      %p505 = por %p503, %p504
      %p506 = scmp.ne.s32.totalorder %s495, %s498
      %p507 = scmp.eq.s32.totalorder %s35, 1
      %p508 = por %p506, %p507
      %p509 = scmp.ne.s32.totalorder %s498, %s499
      %p510 = scmp.eq.s32.totalorder %s35, 0
      %p511 = por %p509, %p510
      %p512 = scmp.ne.s32.totalorder %s498, %s499
      %p513 = scmp.eq.s32.totalorder %s36, 1
      %p514 = por %p512, %p513
      %p516 = scmp.ne.s32.totalorder %s499, %s515
      %p517 = scmp.eq.s32.totalorder %s36, 0
      %p518 = por %p516, %p517
      %s519 = ssub.s32 %s38, %s45
      %p520 = scmp.eq.s32.totalorder %s519, 0
      %s522 = sadd.s32 %s521, 1
      %s523 = scalar_select %p520, %s521, %s522
      %p526 = pneg %p520
      %p527 = scmp.eq.s32.totalorder %s30, 1
      %p528 = por %p526, %p527
      %p529 = scmp.ne.s32.totalorder %s521, %s524
      %p530 = scmp.eq.s32.totalorder %s30, 0
      %p531 = por %p529, %p530
      %p532 = scmp.ne.s32.totalorder %s521, %s524
      %p533 = scmp.eq.s32.totalorder %s35, 1
      %p534 = por %p532, %p533
      %p535 = scmp.ne.s32.totalorder %s524, %s525
      %p536 = scmp.eq.s32.totalorder %s35, 0
      %p537 = por %p535, %p536
      %p538 = scmp.ne.s32.totalorder %s524, %s525
      %p539 = scmp.eq.s32.totalorder %s36, 1
      %p540 = por %p538, %p539
      %p542 = scmp.ne.s32.totalorder %s525, %s541
      %p543 = scmp.eq.s32.totalorder %s36, 0
      %p544 = por %p542, %p543
      %s545 = ssub.s32 %s38, %s45
      %p546 = scmp.eq.s32.totalorder %s545, 0
      %s548 = sadd.s32 %s547, 1
      %s549 = scalar_select %p546, %s547, %s548
      %p552 = pneg %p546
      %p553 = scmp.eq.s32.totalorder %s30, 1
      %p554 = por %p552, %p553
      %p555 = scmp.ne.s32.totalorder %s547, %s550
      %p556 = scmp.eq.s32.totalorder %s30, 0
      %p557 = por %p555, %p556
      %p558 = scmp.ne.s32.totalorder %s547, %s550
      %p559 = scmp.eq.s32.totalorder %s35, 1
      %p560 = por %p558, %p559
      %p561 = scmp.ne.s32.totalorder %s550, %s551
      %p562 = scmp.eq.s32.totalorder %s35, 0
      %p563 = por %p561, %p562
      %p564 = scmp.ne.s32.totalorder %s550, %s551
      %p565 = scmp.eq.s32.totalorder %s36, 1
      %p566 = por %p564, %p565
      %p568 = scmp.ne.s32.totalorder %s551, %s567
      %p569 = scmp.eq.s32.totalorder %s36, 0
      %p570 = por %p568, %p569
      %s571 = ssub.s32 %s38, %s45
      %p572 = scmp.eq.s32.totalorder %s571, 0
      %s574 = sadd.s32 %s573, 1
      %s575 = scalar_select %p572, %s573, %s574
      %p578 = pneg %p572
      %p579 = scmp.eq.s32.totalorder %s30, 1
      %p580 = por %p578, %p579
      %p581 = scmp.ne.s32.totalorder %s573, %s576
      %p582 = scmp.eq.s32.totalorder %s30, 0
      %p583 = por %p581, %p582
      %p584 = scmp.ne.s32.totalorder %s573, %s576
      %p585 = scmp.eq.s32.totalorder %s35, 1
      %p586 = por %p584, %p585
      %p587 = scmp.ne.s32.totalorder %s576, %s577
      %p588 = scmp.eq.s32.totalorder %s35, 0
      %p589 = por %p587, %p588
      %p590 = scmp.ne.s32.totalorder %s576, %s577
      %p591 = scmp.eq.s32.totalorder %s36, 1
      %p592 = por %p590, %p591
      %p594 = scmp.ne.s32.totalorder %s577, %s593
      %p595 = scmp.eq.s32.totalorder %s36, 0
      %p596 = por %p594, %p595
      %s597 = ssub.s32 %s38, %s45
      %p598 = scmp.eq.s32.totalorder %s597, 0
      %s600 = sadd.s32 %s599, 1
      %s601 = scalar_select %p598, %s599, %s600
      %p604 = pneg %p598
      %p605 = scmp.eq.s32.totalorder %s30, 1
      %p606 = por %p604, %p605
      %p607 = scmp.ne.s32.totalorder %s599, %s602
      %p608 = scmp.eq.s32.totalorder %s30, 0
      %p609 = por %p607, %p608
      %p610 = scmp.ne.s32.totalorder %s599, %s602
      %p611 = scmp.eq.s32.totalorder %s35, 1
      %p612 = por %p610, %p611
      %p613 = scmp.ne.s32.totalorder %s602, %s603
      %p614 = scmp.eq.s32.totalorder %s35, 0
      %p615 = por %p613, %p614
      %p616 = scmp.ne.s32.totalorder %s602, %s603
      %p617 = scmp.eq.s32.totalorder %s36, 1
      %p618 = por %p616, %p617
      %p620 = scmp.ne.s32.totalorder %s603, %s619
      %p621 = scmp.eq.s32.totalorder %s36, 0
      %p622 = por %p620, %p621
      %s623 = ssub.s32 %s37, %s49
      %p624 = scmp.eq.s32.totalorder %s623, 0
      %s626 = sadd.s32 %s625, 1
      %s627 = scalar_select %p624, %s625, %s626
      %p630 = pneg %p624
      %p631 = scmp.eq.s32.totalorder %s30, 1
      %p632 = por %p630, %p631
      %p633 = scmp.ne.s32.totalorder %s625, %s628
      %p634 = scmp.eq.s32.totalorder %s30, 0
      %p635 = por %p633, %p634
      %p636 = scmp.ne.s32.totalorder %s625, %s628
      %p637 = scmp.eq.s32.totalorder %s35, 1
      %p638 = por %p636, %p637
      %p639 = scmp.ne.s32.totalorder %s628, %s629
      %p640 = scmp.eq.s32.totalorder %s35, 0
      %p641 = por %p639, %p640
      %p642 = scmp.ne.s32.totalorder %s628, %s629
      %p643 = scmp.eq.s32.totalorder %s36, 1
      %p644 = por %p642, %p643
      %p646 = scmp.ne.s32.totalorder %s629, %s645
      %p647 = scmp.eq.s32.totalorder %s36, 0
      %p648 = por %p646, %p647
      %p649 = scmp.le.s32.totalorder 1, %s30
      %p650 = scmp.lt.s32.totalorder %s30, 3
      %p651 = pnand %p649, %p650
      %p652 = pneg %p651
      // Predicated region
      $region9: #{tpu_custom_call.1} parent=5 // pred_check
        _
      $region10: #{tpu_custom_call.1} parent=5 // pred_check_branch
        %654 = sbr.rel (%p651) target = $region12
      $region11: #{tpu_custom_call.1} parent=5 // pred_region
        %s655 = ssub.s32 %s30, 1
        // Predicated region
        $region13: #{tpu_custom_call.1} parent=11 // pred_check
          %p656 = pneg %p68
        $region14: #{tpu_custom_call.1} parent=11 // pred_check_branch
          %658 = sbr.rel (%p656) target = $region16
        $region15: #{tpu_custom_call.1} parent=11 // pred_region
          %p659 = scmp.lt.s32.totalorder %s39, 0
          %s660 = scalar_select %p659, %s39, 0
          %s661 = smul.addr %s660, 4
          %s662 = scalar_lea.vmem %s0, %s661
        $region16: #{tpu_custom_call.1} parent=11 // pred_fallthru
          _
        // Predicated region
        $region17: #{tpu_custom_call.1} parent=11 // pred_check
          %p663 = pneg %p94
        $region18: #{tpu_custom_call.1} parent=11 // pred_check_branch
          %665 = sbr.rel (%p663) target = $region20
        $region19: #{tpu_custom_call.1} parent=11 // pred_region
          %p666 = scmp.lt.s32.totalorder %s39, 0
          %s667 = scalar_select %p666, %s39, 0
          %s668 = smul.addr %s667, 4
          %s669 = scalar_lea.vmem %s1, %s668
        $region20: #{tpu_custom_call.1} parent=11 // pred_fallthru
          _
        // Predicated region
        $region21: #{tpu_custom_call.1} parent=11 // pred_check
          %p670 = pneg %p115
        $region22: #{tpu_custom_call.1} parent=11 // pred_check_branch
          %672 = sbr.rel (%p670) target = $region24
        $region23: #{tpu_custom_call.1} parent=11 // pred_region
          _
        $region24: #{tpu_custom_call.1} parent=11 // pred_fallthru
          _
        // Predicated region
        $region25: #{tpu_custom_call.1} parent=11 // pred_check
          %p673 = pneg %p136
        $region26: #{tpu_custom_call.1} parent=11 // pred_check_branch
          %675 = sbr.rel (%p673) target = $region28
        $region27: #{tpu_custom_call.1} parent=11 // pred_region
          _
        $region28: #{tpu_custom_call.1} parent=11 // pred_fallthru
          _
        // Predicated region
        $region29: #{tpu_custom_call.1} parent=11 // pred_check
          %p676 = pneg %p157
        $region30: #{tpu_custom_call.1} parent=11 // pred_check_branch
          %678 = sbr.rel (%p676) target = $region32
        $region31: #{tpu_custom_call.1} parent=11 // pred_region
          _
        $region32: #{tpu_custom_call.1} parent=11 // pred_fallthru
          _
        // Predicated region
        $region33: #{tpu_custom_call.1} parent=11 // pred_check
          %p679 = pneg %p178
        $region34: #{tpu_custom_call.1} parent=11 // pred_check_branch
          %681 = sbr.rel (%p679) target = $region36
        $region35: #{tpu_custom_call.1} parent=11 // pred_region
          _
        $region36: #{tpu_custom_call.1} parent=11 // pred_fallthru
          _
        // Predicated region
        $region37: #{tpu_custom_call.1} parent=11 // pred_check
          %p682 = pneg %p199
        $region38: #{tpu_custom_call.1} parent=11 // pred_check_branch
          %684 = sbr.rel (%p682) target = $region40
        $region39: #{tpu_custom_call.1} parent=11 // pred_region
          _
        $region40: #{tpu_custom_call.1} parent=11 // pred_fallthru
          _
      $region12: #{tpu_custom_call.1} parent=5 // pred_fallthru
        _
      %p685 = scmp.lt.s32.totalorder %s30, 2
      // Predicated region
      $region41: #{tpu_custom_call.1} parent=5 // pred_check
        %p686 = pneg %p685
      $region42: #{tpu_custom_call.1} parent=5 // pred_check_branch
        %688 = sbr.rel (%p686) target = $region44
      $region43: #{tpu_custom_call.1} parent=5 // pred_region
        // Predicated region
        $region45: #{tpu_custom_call.1} parent=43 // pred_check
          %p689 = pneg %p219
        $region46: #{tpu_custom_call.1} parent=43 // pred_check_branch
          %691 = sbr.rel (%p689) target = $region48
        $region47: #{tpu_custom_call.1} parent=43 // pred_region
          %p692 = scmp.lt.s32.totalorder %s38, 1
          %s693 = scalar_select %p692, %s38, 1
          %s694 = smul.addr %s693, 4
          %s695 = smul.addr %s694, 4
          %s696 = scalar_lea.vmem %s7, %s695
        $region48: #{tpu_custom_call.1} parent=43 // pred_fallthru
          _
        // Predicated region
        $region49: #{tpu_custom_call.1} parent=43 // pred_check
          %p697 = pneg %p245
        $region50: #{tpu_custom_call.1} parent=43 // pred_check_branch
          %699 = sbr.rel (%p697) target = $region52
        $region51: #{tpu_custom_call.1} parent=43 // pred_region
          %p700 = scmp.lt.s32.totalorder %s38, 1
          %s701 = scalar_select %p700, %s38, 1
          %s702 = smul.addr %s701, 4
          %s703 = smul.addr %s702, 4
          %s704 = scalar_lea.vmem %s8, %s703
        $region52: #{tpu_custom_call.1} parent=43 // pred_fallthru
          _
        // Predicated region
        $region53: #{tpu_custom_call.1} parent=43 // pred_check
          %p705 = pneg %p271
        $region54: #{tpu_custom_call.1} parent=43 // pred_check_branch
          %707 = sbr.rel (%p705) target = $region56
        $region55: #{tpu_custom_call.1} parent=43 // pred_region
          %p708 = scmp.lt.s32.totalorder %s38, 1
          %s709 = scalar_select %p708, %s38, 1
          %s710 = smul.addr %s709, 4
          %s711 = smul.addr %s710, 4
          %s712 = scalar_lea.vmem %s9, %s711
        $region56: #{tpu_custom_call.1} parent=43 // pred_fallthru
          _
        // Predicated region
        $region57: #{tpu_custom_call.1} parent=43 // pred_check
          %p713 = pneg %p297
        $region58: #{tpu_custom_call.1} parent=43 // pred_check_branch
          %715 = sbr.rel (%p713) target = $region60
        $region59: #{tpu_custom_call.1} parent=43 // pred_region
          %p716 = scmp.lt.s32.totalorder %s38, 1
          %s717 = scalar_select %p716, %s38, 1
          %s718 = smul.addr %s717, 4
          %s719 = smul.addr %s718, 4
          %s720 = scalar_lea.vmem %s10, %s719
        $region60: #{tpu_custom_call.1} parent=43 // pred_fallthru
          _
        // Predicated region
        $region61: #{tpu_custom_call.1} parent=43 // pred_check
          %p721 = pneg %p323
        $region62: #{tpu_custom_call.1} parent=43 // pred_check_branch
          %723 = sbr.rel (%p721) target = $region64
        $region63: #{tpu_custom_call.1} parent=43 // pred_region
          %p724 = scmp.lt.s32.totalorder %s38, 1
          %s725 = scalar_select %p724, %s38, 1
          %s726 = smul.addr %s725, 4
          %s727 = smul.addr %s726, 8
          %s728 = scalar_lea.vmem %s11, %s727
        $region64: #{tpu_custom_call.1} parent=43 // pred_fallthru
          _
        // Predicated region
        $region65: #{tpu_custom_call.1} parent=43 // pred_check
          %p729 = pneg %p349
        $region66: #{tpu_custom_call.1} parent=43 // pred_check_branch
          %731 = sbr.rel (%p729) target = $region68
        $region67: #{tpu_custom_call.1} parent=43 // pred_region
          %p732 = scmp.lt.s32.totalorder %s38, 1
          %s733 = scalar_select %p732, %s38, 1
          %s734 = smul.addr %s733, 4
          %s735 = smul.addr %s734, 8
          %s736 = scalar_lea.vmem %s12, %s735
        $region68: #{tpu_custom_call.1} parent=43 // pred_fallthru
          _
        // Predicated region
        $region69: #{tpu_custom_call.1} parent=43 // pred_check
          %p737 = pneg %p375
        $region70: #{tpu_custom_call.1} parent=43 // pred_check_branch
          %739 = sbr.rel (%p737) target = $region72
        $region71: #{tpu_custom_call.1} parent=43 // pred_region
          %p740 = scmp.lt.s32.totalorder %s38, 1
          %s741 = scalar_select %p740, %s38, 1
          %s742 = smul.addr %s741, 2
          %s743 = smul.addr %s742, 4
          %s744 = scalar_lea.vmem %s13, %s743
        $region72: #{tpu_custom_call.1} parent=43 // pred_fallthru
          _
        // Predicated region
        $region73: #{tpu_custom_call.1} parent=43 // pred_check
          %p745 = pneg %p401
        $region74: #{tpu_custom_call.1} parent=43 // pred_check_branch
          %747 = sbr.rel (%p745) target = $region76
        $region75: #{tpu_custom_call.1} parent=43 // pred_region
          %p748 = scmp.lt.s32.totalorder %s38, 1
          %s749 = scalar_select %p748, %s38, 1
          %s750 = smul.addr %s749, 2
          %s751 = smul.addr %s750, 8
          %s752 = scalar_lea.vmem %s14, %s751
        $region76: #{tpu_custom_call.1} parent=43 // pred_fallthru
          _
        // Predicated region
        $region77: #{tpu_custom_call.1} parent=43 // pred_check
          %p753 = pneg %p427
        $region78: #{tpu_custom_call.1} parent=43 // pred_check_branch
          %755 = sbr.rel (%p753) target = $region80
        $region79: #{tpu_custom_call.1} parent=43 // pred_region
          %p756 = scmp.lt.s32.totalorder %s38, 1
          %s757 = scalar_select %p756, %s38, 1
          %s758 = smul.addr %s757, 4
          %s759 = smul.addr %s758, 4
          %s760 = scalar_lea.vmem %s15, %s759
        $region80: #{tpu_custom_call.1} parent=43 // pred_fallthru
          _
        // Predicated region
        $region81: #{tpu_custom_call.1} parent=43 // pred_check
          %p761 = pneg %p453
        $region82: #{tpu_custom_call.1} parent=43 // pred_check_branch
          %763 = sbr.rel (%p761) target = $region84
        $region83: #{tpu_custom_call.1} parent=43 // pred_region
          %p764 = scmp.lt.s32.totalorder %s38, 1
          %s765 = scalar_select %p764, %s38, 1
          %s766 = smul.addr %s765, 4
          %s767 = smul.addr %s766, 4
          %s768 = scalar_lea.vmem %s16, %s767
        $region84: #{tpu_custom_call.1} parent=43 // pred_fallthru
          _
        // Predicated region
        $region85: #{tpu_custom_call.1} parent=43 // pred_check
          %p769 = pneg %p479
        $region86: #{tpu_custom_call.1} parent=43 // pred_check_branch
          %771 = sbr.rel (%p769) target = $region88
        $region87: #{tpu_custom_call.1} parent=43 // pred_region
          %p772 = scmp.lt.s32.totalorder %s38, 1
          %s773 = scalar_select %p772, %s38, 1
          %s774 = smul.addr %s773, 4
          %s775 = smul.addr %s774, 4
          %s776 = scalar_lea.vmem %s17, %s775
        $region88: #{tpu_custom_call.1} parent=43 // pred_fallthru
          _
        // Predicated region
        $region89: #{tpu_custom_call.1} parent=43 // pred_check
          %p777 = pneg %p505
        $region90: #{tpu_custom_call.1} parent=43 // pred_check_branch
          %779 = sbr.rel (%p777) target = $region92
        $region91: #{tpu_custom_call.1} parent=43 // pred_region
          %p780 = scmp.lt.s32.totalorder %s38, 1
          %s781 = scalar_select %p780, %s38, 1
          %s782 = smul.addr %s781, 4
          %s783 = smul.addr %s782, 4
          %s784 = scalar_lea.vmem %s18, %s783
        $region92: #{tpu_custom_call.1} parent=43 // pred_fallthru
          _
        // Predicated region
        $region93: #{tpu_custom_call.1} parent=43 // pred_check
          %p785 = pneg %p531
        $region94: #{tpu_custom_call.1} parent=43 // pred_check_branch
          %787 = sbr.rel (%p785) target = $region96
        $region95: #{tpu_custom_call.1} parent=43 // pred_region
          %p788 = scmp.lt.s32.totalorder %s38, 1
          %s789 = scalar_select %p788, %s38, 1
          %s790 = smul.addr %s789, 4
          %s791 = smul.addr %s790, 8
          %s792 = scalar_lea.vmem %s19, %s791
        $region96: #{tpu_custom_call.1} parent=43 // pred_fallthru
          _
        // Predicated region
        $region97: #{tpu_custom_call.1} parent=43 // pred_check
          %p793 = pneg %p557
        $region98: #{tpu_custom_call.1} parent=43 // pred_check_branch
          %795 = sbr.rel (%p793) target = $region100
        $region99: #{tpu_custom_call.1} parent=43 // pred_region
          %p796 = scmp.lt.s32.totalorder %s38, 1
          %s797 = scalar_select %p796, %s38, 1
          %s798 = smul.addr %s797, 4
          %s799 = smul.addr %s798, 8
          %s800 = scalar_lea.vmem %s20, %s799
        $region100: #{tpu_custom_call.1} parent=43 // pred_fallthru
          _
        // Predicated region
        $region101: #{tpu_custom_call.1} parent=43 // pred_check
          %p801 = pneg %p583
        $region102: #{tpu_custom_call.1} parent=43 // pred_check_branch
          %803 = sbr.rel (%p801) target = $region104
        $region103: #{tpu_custom_call.1} parent=43 // pred_region
          %p804 = scmp.lt.s32.totalorder %s38, 1
          %s805 = scalar_select %p804, %s38, 1
          %s806 = smul.addr %s805, 2
          %s807 = smul.addr %s806, 4
          %s808 = scalar_lea.vmem %s21, %s807
        $region104: #{tpu_custom_call.1} parent=43 // pred_fallthru
          _
        // Predicated region
        $region105: #{tpu_custom_call.1} parent=43 // pred_check
          %p809 = pneg %p609
        $region106: #{tpu_custom_call.1} parent=43 // pred_check_branch
          %811 = sbr.rel (%p809) target = $region108
        $region107: #{tpu_custom_call.1} parent=43 // pred_region
          %p812 = scmp.lt.s32.totalorder %s38, 1
          %s813 = scalar_select %p812, %s38, 1
          %s814 = smul.addr %s813, 2
          %s815 = smul.addr %s814, 8
          %s816 = scalar_lea.vmem %s22, %s815
        $region108: #{tpu_custom_call.1} parent=43 // pred_fallthru
          _
      $region44: #{tpu_custom_call.1} parent=5 // pred_fallthru
        _
      %p817 = scmp.le.s32.totalorder 1, %s30
      %p818 = scmp.lt.s32.totalorder %s30, 3
      %p819 = pnand %p817, %p818
      %p820 = pneg %p819
      // Predicated region
      $region109: #{tpu_custom_call.1} parent=5 // pred_check
        _
      $region110: #{tpu_custom_call.1} parent=5 // pred_check_branch
        %822 = sbr.rel (%p819) target = $region112
      $region111: #{tpu_custom_call.1} parent=5 // pred_region
        %s823 = ssub.s32 %s30, 1
        %p824 = scmp.lt.s32.totalorder %s39, 0
        %s825 = scalar_select %p824, %s39, 0
        %s826 = smul.addr %s825, 4
        %s827 = scalar_lea.vmem %s0, %s826
        %p828 = pneg %p68
        %p829 = pneg %p65
        %p830 = scmp.lt.s32.totalorder %s39, 0
        %s831 = scalar_select %p830, %s39, 0
        %s832 = smul.addr %s831, 4
        %s833 = scalar_lea.vmem %s1, %s832
        %p834 = pneg %p94
        %p835 = pneg %p91
        %p836 = pneg %p115
        %p837 = pneg %p112
        %p838 = pneg %p136
        %p839 = pneg %p133
        %p840 = pneg %p157
        %p841 = pneg %p154
        %p842 = pneg %p178
        %p843 = pneg %p175
        %p844 = pneg %p199
        %p845 = pneg %p196
        %p846 = scmp.lt.s32.totalorder %s40, 1
        %s847 = scalar_select %p846, %s40, 1
        %s848 = smul.addr %s847, 4
        %s849 = smul.addr %s848, 4
        %s850 = scalar_lea.vmem %s7, %s849
        %p851 = pneg %p225
        %p852 = pneg %p222
        %p853 = scmp.lt.s32.totalorder %s40, 1
        %s854 = scalar_select %p853, %s40, 1
        %s855 = smul.addr %s854, 4
        %s856 = smul.addr %s855, 4
        %s857 = scalar_lea.vmem %s8, %s856
        %p858 = pneg %p251
        %p859 = pneg %p248
        %p860 = scmp.lt.s32.totalorder %s40, 1
        %s861 = scalar_select %p860, %s40, 1
        %s862 = smul.addr %s861, 4
        %s863 = smul.addr %s862, 4
        %s864 = scalar_lea.vmem %s9, %s863
        %p865 = pneg %p277
        %p866 = pneg %p274
        %p867 = scmp.lt.s32.totalorder %s40, 1
        %s868 = scalar_select %p867, %s40, 1
        %s869 = smul.addr %s868, 4
        %s870 = smul.addr %s869, 4
        %s871 = scalar_lea.vmem %s10, %s870
        %p872 = pneg %p303
        %p873 = pneg %p300
        %p874 = scmp.lt.s32.totalorder %s40, 1
        %s875 = scalar_select %p874, %s40, 1
        %s876 = smul.addr %s875, 4
        %s877 = smul.addr %s876, 8
        %s878 = scalar_lea.vmem %s11, %s877
        %p879 = pneg %p329
        %p880 = pneg %p326
        %p881 = scmp.lt.s32.totalorder %s40, 1
        %s882 = scalar_select %p881, %s40, 1
        %s883 = smul.addr %s882, 4
        %s884 = smul.addr %s883, 8
        %s885 = scalar_lea.vmem %s12, %s884
        %p886 = pneg %p355
        %p887 = pneg %p352
        %p888 = scmp.lt.s32.totalorder %s40, 1
        %s889 = scalar_select %p888, %s40, 1
        %s890 = smul.addr %s889, 2
        %s891 = smul.addr %s890, 4
        %s892 = scalar_lea.vmem %s13, %s891
        %p893 = pneg %p381
        %p894 = pneg %p378
        %p895 = scmp.lt.s32.totalorder %s40, 1
        %s896 = scalar_select %p895, %s40, 1
        %s897 = smul.addr %s896, 2
        %s898 = smul.addr %s897, 8
        %s899 = scalar_lea.vmem %s14, %s898
        %p900 = pneg %p407
        %p901 = pneg %p404
        %p902 = scmp.lt.s32.totalorder %s40, 1
        %s903 = scalar_select %p902, %s40, 1
        %s904 = smul.addr %s903, 4
        %s905 = smul.addr %s904, 4
        %s906 = scalar_lea.vmem %s15, %s905
        %p907 = pneg %p433
        %p908 = pneg %p430
        %p909 = scmp.lt.s32.totalorder %s40, 1
        %s910 = scalar_select %p909, %s40, 1
        %s911 = smul.addr %s910, 4
        %s912 = smul.addr %s911, 4
        %s913 = scalar_lea.vmem %s16, %s912
        %p914 = pneg %p459
        %p915 = pneg %p456
        %p916 = scmp.lt.s32.totalorder %s40, 1
        %s917 = scalar_select %p916, %s40, 1
        %s918 = smul.addr %s917, 4
        %s919 = smul.addr %s918, 4
        %s920 = scalar_lea.vmem %s17, %s919
        %p921 = pneg %p485
        %p922 = pneg %p482
        %p923 = scmp.lt.s32.totalorder %s40, 1
        %s924 = scalar_select %p923, %s40, 1
        %s925 = smul.addr %s924, 4
        %s926 = smul.addr %s925, 4
        %s927 = scalar_lea.vmem %s18, %s926
        %p928 = pneg %p511
        %p929 = pneg %p508
        %p930 = scmp.lt.s32.totalorder %s40, 1
        %s931 = scalar_select %p930, %s40, 1
        %s932 = smul.addr %s931, 4
        %s933 = smul.addr %s932, 8
        %s934 = scalar_lea.vmem %s19, %s933
        %p935 = pneg %p537
        %p936 = pneg %p534
        %p937 = scmp.lt.s32.totalorder %s40, 1
        %s938 = scalar_select %p937, %s40, 1
        %s939 = smul.addr %s938, 4
        %s940 = smul.addr %s939, 8
        %s941 = scalar_lea.vmem %s20, %s940
        %p942 = pneg %p563
        %p943 = pneg %p560
        %p944 = scmp.lt.s32.totalorder %s40, 1
        %s945 = scalar_select %p944, %s40, 1
        %s946 = smul.addr %s945, 2
        %s947 = smul.addr %s946, 4
        %s948 = scalar_lea.vmem %s21, %s947
        %p949 = pneg %p589
        %p950 = pneg %p586
        %p951 = scmp.lt.s32.totalorder %s40, 1
        %s952 = scalar_select %p951, %s40, 1
        %s953 = smul.addr %s952, 2
        %s954 = smul.addr %s953, 8
        %s955 = scalar_lea.vmem %s22, %s954
        %p956 = pneg %p615
        %p957 = pneg %p612
        %p958 = pneg %p641
        %p959 = pneg %p638
        %p960 = scmp.lt.s32.totalorder %s39, 0
        %s961 = scalar_select %p960, %s39, 0
        %s962 = smul.addr %s961, 4
        %s963 = scalar_lea.vmem %s0, %s962
        %p964 = scmp.lt.s32.totalorder %s39, 0
        %s965 = scalar_select %p964, %s39, 0
        %s966 = smul.addr %s965, 4
        %s967 = scalar_lea.vmem %s1, %s966
        %p968 = scmp.lt.s32.totalorder %s40, 1
        %s969 = scalar_select %p968, %s40, 1
        %s970 = smul.addr %s969, 4
        %s971 = smul.addr %s970, 4
        %s972 = scalar_lea.vmem %s7, %s971
        %p973 = scmp.lt.s32.totalorder %s40, 1
        %s974 = scalar_select %p973, %s40, 1
        %s975 = smul.addr %s974, 4
        %s976 = smul.addr %s975, 4
        %s977 = scalar_lea.vmem %s8, %s976
        %p978 = scmp.lt.s32.totalorder %s40, 1
        %s979 = scalar_select %p978, %s40, 1
        %s980 = smul.addr %s979, 4
        %s981 = smul.addr %s980, 4
        %s982 = scalar_lea.vmem %s9, %s981
        %p983 = scmp.lt.s32.totalorder %s40, 1
        %s984 = scalar_select %p983, %s40, 1
        %s985 = smul.addr %s984, 4
        %s986 = smul.addr %s985, 4
        %s987 = scalar_lea.vmem %s10, %s986
        %p988 = scmp.lt.s32.totalorder %s40, 1
        %s989 = scalar_select %p988, %s40, 1
        %s990 = smul.addr %s989, 4
        %s991 = smul.addr %s990, 8
        %s992 = scalar_lea.vmem %s11, %s991
        %p993 = scmp.lt.s32.totalorder %s40, 1
        %s994 = scalar_select %p993, %s40, 1
        %s995 = smul.addr %s994, 4
        %s996 = smul.addr %s995, 8
        %s997 = scalar_lea.vmem %s12, %s996
        %p998 = scmp.lt.s32.totalorder %s40, 1
        %s999 = scalar_select %p998, %s40, 1
        %s1000 = smul.addr %s999, 2
        %s1001 = smul.addr %s1000, 4
        %s1002 = scalar_lea.vmem %s13, %s1001
        %p1003 = scmp.lt.s32.totalorder %s40, 1
        %s1004 = scalar_select %p1003, %s40, 1
        %s1005 = smul.addr %s1004, 2
        %s1006 = smul.addr %s1005, 8
        %s1007 = scalar_lea.vmem %s14, %s1006
        %p1008 = scmp.lt.s32.totalorder %s40, 1
        %s1009 = scalar_select %p1008, %s40, 1
        %s1010 = smul.addr %s1009, 4
        %s1011 = smul.addr %s1010, 4
        %s1012 = scalar_lea.vmem %s15, %s1011
        %p1013 = scmp.lt.s32.totalorder %s40, 1
        %s1014 = scalar_select %p1013, %s40, 1
        %s1015 = smul.addr %s1014, 4
        %s1016 = smul.addr %s1015, 4
        %s1017 = scalar_lea.vmem %s16, %s1016
        %p1018 = scmp.lt.s32.totalorder %s40, 1
        %s1019 = scalar_select %p1018, %s40, 1
        %s1020 = smul.addr %s1019, 4
        %s1021 = smul.addr %s1020, 4
        %s1022 = scalar_lea.vmem %s17, %s1021
        %p1023 = scmp.lt.s32.totalorder %s40, 1
        %s1024 = scalar_select %p1023, %s40, 1
        %s1025 = smul.addr %s1024, 4
        %s1026 = smul.addr %s1025, 4
        %s1027 = scalar_lea.vmem %s18, %s1026
        %p1028 = scmp.lt.s32.totalorder %s40, 1
        %s1029 = scalar_select %p1028, %s40, 1
        %s1030 = smul.addr %s1029, 4
        %s1031 = smul.addr %s1030, 8
        %s1032 = scalar_lea.vmem %s19, %s1031
        %p1033 = scmp.lt.s32.totalorder %s40, 1
        %s1034 = scalar_select %p1033, %s40, 1
        %s1035 = smul.addr %s1034, 4
        %s1036 = smul.addr %s1035, 8
        %s1037 = scalar_lea.vmem %s20, %s1036
        %p1038 = scmp.lt.s32.totalorder %s40, 1
        %s1039 = scalar_select %p1038, %s40, 1
        %s1040 = smul.addr %s1039, 2
        %s1041 = smul.addr %s1040, 4
        %s1042 = scalar_lea.vmem %s21, %s1041
        %p1043 = scmp.lt.s32.totalorder %s40, 1
        %s1044 = scalar_select %p1043, %s40, 1
        %s1045 = smul.addr %s1044, 2
        %s1046 = smul.addr %s1045, 8
        %s1047 = scalar_lea.vmem %s22, %s1046
        %p1049 = scmp.eq.s32.totalorder %s40, 0
        // Predicated region
        $region113: #{tpu_custom_call.1} parent=111 // pred_check
          %p1050 = pneg %p1049
        $region114: #{tpu_custom_call.1} parent=111 // pred_check_branch
          %1052 = sbr.rel (%p1050) target = $region116
        $region115: #{tpu_custom_call.1} parent=111 // pred_region
          %v1053 = vld [vmem:[%s2] sm:$0xf]
          %v1054 = vld [vmem:[%s2 + $0x4] sm:$0xf]
          %v1055 = vld [vmem:[%s2 + $0x8] sm:$0xf]
          %v1056 = vld [vmem:[%s2 + $0xc] sm:$0xf]
          %v1057 = vld [vmem:[%s963] sm:$0xf]
          %v1058 = vld [vmem:[%s3] sm:$0xff]
          %v1059 = vld [vmem:[%s3 + $0x8] sm:$0xff]
          %v1060 = vld [vmem:[%s3 + $0x10] sm:$0xff]
          %v1061 = vld [vmem:[%s3 + $0x18] sm:$0xff]
          %1063 = vset.pattern.permute.xlu0 0
          %1064 = vperm.xlu0 %1063, %v1058
          %v1065 = vpop.permute.xlu0 %1064
          %1068 = vset.pattern.permute.xlu0 0
          %1069 = vperm.xlu0 %1068, %v1059
          %v1070 = vpop.permute.xlu0 %1069
          %1073 = vset.pattern.permute.xlu0 0
          %1074 = vperm.xlu0 %1073, %v1060
          %v1075 = vpop.permute.xlu0 %1074
          %1078 = vset.pattern.permute.xlu0 0
          %1079 = vperm.xlu0 %1078, %v1061
          %v1080 = vpop.permute.xlu0 %1079
          %v1086 = vunpack.c.l.b16 %v1053
          %v1087 = vunpack.c.l.b16 %v1054
          %v1088 = vunpack.c.l.b16 %v1055
          %v1089 = vunpack.c.l.b16 %v1056
          %v1090 = vpack.c.b16 %v1087, %v1086
          %v1091 = vpack.c.b16 %v1089, %v1088
          %vm1092 = vcmask 64512
          %v1094 = vsel %vm1092, %v1090, 0
          %v1097 = vsel %vm1092, %v1091, 0
          %vm1099 = vcmask 1043456
          %v1101 = vsel %vm1099, %v1057, 0
          %1103 = vmatprep.subr.bf16.mxu0 0
          %1104 = vmatpush1.bf16.msra.mxu0 0
          %1105 = vmatprep.subr.bf16.mxu0 0
          %1106 = vmatpush1.bf16.msra.mxu0 0
          %1107 = vmatprep.subr.bf16.mxu0 0
          %1108 = vmatpush1.bf16.msra.mxu0 0
          %1109 = vmatprep.subr.bf16.mxu0 0
          %1110 = vmatpush1.bf16.msra.mxu0 0
          %1111 = vmatprep.subr.bf16.mxu0 0
          %1112 = vmatpush1.bf16.msra.mxu0 0
          %1113 = vmatprep.subr.bf16.mxu0 0
          %1114 = vmatpush1.bf16.msra.mxu0 0
          %1115 = vmatprep.subr.bf16.mxu0 0
          %1116 = vmatpush1.bf16.msra.mxu0 0
          %1117 = vmatprep.subr.bf16.mxu0 0
          %1118 = vmatpush1.bf16.msra.mxu0 %v1101
          %1119 = vmatprep.subr.bf16.mxu0 0
          %1120 = vmatpush2.bf16.msra.mxu0 0
          %1121 = vmatprep.subr.bf16.mxu0 0
          %1122 = vmatpush2.bf16.msra.mxu0 0
          %1123 = vmatprep.subr.bf16.mxu0 0
          %1124 = vmatpush2.bf16.msra.mxu0 0
          %1125 = vmatprep.subr.bf16.mxu0 0
          %1126 = vmatpush2.bf16.msra.mxu0 0
          %1127 = vmatprep.subr.bf16.mxu0 0
          %1128 = vmatpush2.bf16.msra.mxu0 0
          %1129 = vmatprep.subr.bf16.mxu0 0
          %1130 = vmatpush2.bf16.msra.mxu0 0
          %1131 = vmatprep.subr.bf16.mxu0 0
          %1132 = vmatpush2.bf16.msra.mxu0 0
          %1133 = vmatprep.subr.bf16.mxu0 0
          %1134 = vmatpush2.bf16.msra.mxu0 0
          %1135 = vmatprep.mubr.bf16.mxu0 0
          %1136 = vmatmul.mubr.bf16.gmra.mxu0 %v1094
          %v1137 = vpop.f32.mrf.mxu0
          %v1138 = vadd.f32 %v1065, %v1137
          %v1139 = vpop.f32.mrf.mxu0
          %v1140 = vpop.f32.mrf.mxu0
          %v1141 = vadd.f32 %v1070, %v1140
          %v1142 = vpop.f32.mrf.mxu0
          %1143 = vmatprep.mubr.bf16.mxu0 0
          %1144 = vmatmul.mubr.bf16.gmra.mxu0 %v1097
          %v1145 = vpop.f32.mrf.mxu0
          %v1146 = vadd.f32 %v1075, %v1145
          %v1147 = vpop.f32.mrf.mxu0
          %v1148 = vpop.f32.mrf.mxu0
          %v1149 = vadd.f32 %v1080, %v1148
          %v1150 = vpop.f32.mrf.mxu0
          %1151 = vdwg.mxu0
          %1152 = vst [vmem:[#allocation2] sm:$0xff] %v1138
          %1153 = vst [vmem:[#allocation2 + $0x8] sm:$0xff] %v1141
          %1154 = vst [vmem:[#allocation3] sm:$0xff] %v1146
          %1155 = vst [vmem:[#allocation3 + $0x8] sm:$0xff] %v1149
        $region116: #{tpu_custom_call.1} parent=111 // pred_fallthru
          _
        %v1156 = vld [vmem:[%s967] sm:$0xf]
        %v1157 = vld [vmem:[%s967 + $0x4] sm:$0xf]
        %v1158 = vld [vmem:[%s967 + $0x8] sm:$0x1]
        %v1159 = vlaneseq
        %v1160 = vand.u32 %v1159, 127
        %vm1161 = vcmp.lt.s32.totalorder %v1160, 0
        %v1162 = vsub.s32 0, %v1160
        %v1163 = vsel %vm1161, %v1162, %v1160
        %v1164 = vshrl.u32 %v1163, 4
        %v1165 = vand.u32 %v1163, 15
        %v1166 = vsub.s32 0, %v1165
        %v1167 = vsel %vm1161, %v1166, %v1165
        %vm1168 = vcmp.ne.s32.totalorder %v1167, 0
        %vm1169 = vcmp.lt.s32.totalorder %v1167, 0
        %vm1170 = vmand %vm1169, %vm1168
        %v1171 = vadd.s32 %v1167, 16
        %v1172 = vsel %vm1170, %v1171, %v1167
        %v1173 = vadd.s32 %v1172, 4294967293
        %vm1174 = vcmp.ge.s32.totalorder %v1173, 0
        %vm1175 = vcmp.lt.s32.totalorder %v1173, 16
        %vm1176 = vmand %vm1174, %vm1175
        %v1177 = vadd.s32 %v1172, 4294967294
        %vm1178 = vcmp.ge.s32.totalorder %v1177, 0
        %vm1179 = vcmp.lt.s32.totalorder %v1177, 16
        %vm1180 = vmand %vm1178, %vm1179
        %v1181 = vadd.s32 %v1172, 4294967295
        %vm1182 = vcmp.ge.s32.totalorder %v1181, 0
        %vm1183 = vcmp.lt.s32.totalorder %v1181, 16
        %vm1184 = vmand %vm1182, %vm1183
        %v1185 = vadd.s32 %v1172, 1
        %vm1186 = vcmp.ge.s32.totalorder %v1185, 0
        %vm1187 = vcmp.lt.s32.totalorder %v1185, 16
        %vm1188 = vmand %vm1186, %vm1187
        %v1189 = vadd.s32 %v1172, 2
        %vm1190 = vcmp.ge.s32.totalorder %v1189, 0
        %vm1191 = vcmp.lt.s32.totalorder %v1189, 16
        %vm1192 = vmand %vm1190, %vm1191
        %v1193 = vadd.s32 %v1172, 3
        %vm1194 = vcmp.ge.s32.totalorder %v1193, 0
        %vm1195 = vcmp.lt.s32.totalorder %v1193, 16
        %vm1196 = vmand %vm1194, %vm1195
        %v1197 = vld [vmem:[#allocation2] sm:$0xff]
        %v1198 = vld [vmem:[#allocation2 + $0x8] sm:$0xff]
        %v1199 = vld [vmem:[#allocation3] sm:$0xff]
        %v1200 = vld [vmem:[#allocation3 + $0x8] sm:$0xff]
        %v1201 = vpack.c.bf16 %v1198, %v1197
        %v1202 = vld [vmem:[%s972] sm:$0xf]
        %v1203 = vld [vmem:[%s972 + $0x4] sm:$0xf]
        %v1204 = vld [vmem:[%s972 + $0x8] sm:$0xf]
        %v1205 = vld [vmem:[%s972 + $0xc] sm:$0xf]
        %v1206 = vld [vmem:[%s982] sm:$0xf]
        %v1207 = vld [vmem:[%s982 + $0x4] sm:$0xf]
        %v1208 = vld [vmem:[%s982 + $0x8] sm:$0xf]
        %v1209 = vld [vmem:[%s982 + $0xc] sm:$0xf]
        %v1214 = vunpack.c.l.b16 %v1206
        %v1215 = vunpack.c.l.b16 %v1207
        %v1216 = vunpack.c.l.b16 %v1208
        %v1217 = vunpack.c.l.b16 %v1209
        %v1218 = vpack.c.b16 %v1215, %v1214
        %v1219 = vpack.c.b16 %v1217, %v1216
        %v1223 = vunpack.c.l.b16 %v1156
        %v1224 = vunpack.c.l.b16 %v1157
        %v1225 = vunpack.c.l.b16 %v1158
        %v1226 = vpack.c.b16 %v1224, %v1223
        %v1227 = vpack.c.b16 %v1225, %v1225
        %vm1229 = vcmask 138240
        %v1231 = vsel %vm1229, %v1218, 0
        %v1234 = vsel %vm1229, %v1219, 0
        %vm1236 = vcmask 1040384
        %v1237 = vsel 0, 4294967295, 65535
        %v1238 = vsel %vm1236, %v1237, 0
        %v1240 = vand.u32 %v1227, %v1238
        %1242 = vmatprep.subr.bf16.mxu0 0
        %1243 = vmatpush1.bf16.msra.mxu0 0
        %1244 = vmatprep.subr.bf16.mxu0 0
        %1245 = vmatpush1.bf16.msra.mxu0 0
        %1246 = vmatprep.subr.bf16.mxu0 0
        %1247 = vmatpush1.bf16.msra.mxu0 0
        %1248 = vmatprep.subr.bf16.mxu0 0
        %1249 = vmatpush1.bf16.msra.mxu0 0
        %1250 = vmatprep.subr.bf16.mxu0 0
        %1251 = vmatpush1.bf16.msra.mxu0 0
        %1252 = vmatprep.subr.bf16.mxu0 0
        %1253 = vmatpush1.bf16.msra.mxu0 0
        %1254 = vmatprep.subr.bf16.mxu0 0
        %1255 = vmatpush1.bf16.msra.mxu0 %v1240
        %1256 = vmatprep.subr.bf16.mxu0 0
        %1257 = vmatpush1.bf16.msra.mxu0 %v1226
        %1258 = vmatprep.subr.bf16.mxu0 0
        %1259 = vmatpush2.bf16.msra.mxu0 0
        %1260 = vmatprep.subr.bf16.mxu0 0
        %1261 = vmatpush2.bf16.msra.mxu0 0
        %1262 = vmatprep.subr.bf16.mxu0 0
        %1263 = vmatpush2.bf16.msra.mxu0 0
        %1264 = vmatprep.subr.bf16.mxu0 0
        %1265 = vmatpush2.bf16.msra.mxu0 0
        %1266 = vmatprep.subr.bf16.mxu0 0
        %1267 = vmatpush2.bf16.msra.mxu0 0
        %1268 = vmatprep.subr.bf16.mxu0 0
        %1269 = vmatpush2.bf16.msra.mxu0 0
        %1270 = vmatprep.subr.bf16.mxu0 0
        %1271 = vmatpush2.bf16.msra.mxu0 0
        %1272 = vmatprep.subr.bf16.mxu0 0
        %1273 = vmatpush2.bf16.msra.mxu0 0
        %1274 = vmatprep.mubr.bf16.mxu0 0
        %1275 = vmatmul.mubr.bf16.gmra.mxu0 %v1231
        %v1276 = vpop.f32.mrf.mxu0
        %v1277 = vadd.f32 0.0, %v1276
        %v1278 = vpop.f32.mrf.mxu0
        %v1279 = vpop.f32.mrf.mxu0
        %v1280 = vadd.f32 0.0, %v1279
        %v1281 = vpop.f32.mrf.mxu0
        %1282 = vmatprep.mubr.bf16.mxu0 0
        %1283 = vmatmul.mubr.bf16.gmra.mxu0 %v1234
        %v1284 = vpop.f32.mrf.mxu0
        %v1285 = vadd.f32 0.0, %v1284
        %v1286 = vpop.f32.mrf.mxu0
        %v1287 = vpop.f32.mrf.mxu0
        %v1288 = vadd.f32 0.0, %v1287
        %v1289 = vpop.f32.mrf.mxu0
        %1290 = vdwg.mxu0
        %v1295 = vunpack.c.l.b16 %v1202
        %v1296 = vunpack.c.l.b16 %v1203
        %v1297 = vunpack.c.l.b16 %v1204
        %v1298 = vunpack.c.l.b16 %v1205
        %v1299 = vpack.c.b16 %v1296, %v1295
        %v1300 = vpack.c.b16 %v1298, %v1297
        %vm1301 = vcmask 130048
        %v1303 = vsel %vm1301, %v1299, 0
        %v1306 = vsel %vm1301, %v1300, 0
        %1308 = vmatprep.subr.bf16.mxu0 0
        %1309 = vmatpush1.bf16.msra.mxu0 0
        %1310 = vmatprep.subr.bf16.mxu0 0
        %1311 = vmatpush1.bf16.msra.mxu0 0
        %1312 = vmatprep.subr.bf16.mxu0 0
        %1313 = vmatpush1.bf16.msra.mxu0 0
        %1314 = vmatprep.subr.bf16.mxu0 0
        %1315 = vmatpush1.bf16.msra.mxu0 0
        %1316 = vmatprep.subr.bf16.mxu0 0
        %1317 = vmatpush1.bf16.msra.mxu0 0
        %1318 = vmatprep.subr.bf16.mxu0 0
        %1319 = vmatpush1.bf16.msra.mxu0 0
        %1320 = vmatprep.subr.bf16.mxu0 0
        %1321 = vmatpush1.bf16.msra.mxu0 0
        %1322 = vmatprep.subr.bf16.mxu0 0
        %1323 = vmatpush1.bf16.msra.mxu0 %v1201
        %1324 = vmatprep.subr.bf16.mxu0 0
        %1325 = vmatpush2.bf16.msra.mxu0 0
        %1326 = vmatprep.subr.bf16.mxu0 0
        %1327 = vmatpush2.bf16.msra.mxu0 0
        %1328 = vmatprep.subr.bf16.mxu0 0
        %1329 = vmatpush2.bf16.msra.mxu0 0
        %1330 = vmatprep.subr.bf16.mxu0 0
        %1331 = vmatpush2.bf16.msra.mxu0 0
        %1332 = vmatprep.subr.bf16.mxu0 0
        %1333 = vmatpush2.bf16.msra.mxu0 0
        %1334 = vmatprep.subr.bf16.mxu0 0
        %1335 = vmatpush2.bf16.msra.mxu0 0
        %1336 = vmatprep.subr.bf16.mxu0 0
        %1337 = vmatpush2.bf16.msra.mxu0 0
        %1338 = vmatprep.subr.bf16.mxu0 0
        %1339 = vmatpush2.bf16.msra.mxu0 0
        %1340 = vmatprep.mubr.bf16.mxu0 0
        %1341 = vmatmul.mubr.bf16.gmra.mxu0 %v1303
        %v1342 = vpop.f32.mrf.mxu0
        %v1343 = vadd.f32 %v1277, %v1342
        %v1344 = vpop.f32.mrf.mxu0
        %v1345 = vpop.f32.mrf.mxu0
        %v1346 = vadd.f32 %v1280, %v1345
        %v1347 = vpop.f32.mrf.mxu0
        %1348 = vmatprep.mubr.bf16.mxu0 0
        %1349 = vmatmul.mubr.bf16.gmra.mxu0 %v1306
        %v1350 = vpop.f32.mrf.mxu0
        %v1351 = vadd.f32 %v1285, %v1350
        %v1352 = vpop.f32.mrf.mxu0
        %v1353 = vpop.f32.mrf.mxu0
        %v1354 = vadd.f32 %v1288, %v1353
        %v1355 = vpop.f32.mrf.mxu0
        %1356 = vdwg.mxu0
        %v1357 = vld [vmem:[%s977] sm:$0xf]
        %v1358 = vld [vmem:[%s977 + $0x4] sm:$0xf]
        %v1359 = vld [vmem:[%s977 + $0x8] sm:$0xf]
        %v1360 = vld [vmem:[%s977 + $0xc] sm:$0xf]
        %v1361 = vld [vmem:[%s987] sm:$0xf]
        %v1362 = vld [vmem:[%s987 + $0x4] sm:$0xf]
        %v1363 = vld [vmem:[%s987 + $0x8] sm:$0xf]
        %v1364 = vld [vmem:[%s987 + $0xc] sm:$0xf]
        %v1369 = vunpack.c.l.b16 %v1361
        %v1370 = vunpack.c.l.b16 %v1362
        %v1371 = vunpack.c.l.b16 %v1363
        %v1372 = vunpack.c.l.b16 %v1364
        %v1373 = vpack.c.b16 %v1370, %v1369
        %v1374 = vpack.c.b16 %v1372, %v1371
        %v1376 = vsel %vm1229, %v1373, 0
        %v1379 = vsel %vm1229, %v1374, 0
        %1381 = vmatprep.subr.bf16.mxu0 0
        %1382 = vmatpush1.bf16.msra.mxu0 0
        %1383 = vmatprep.subr.bf16.mxu0 0
        %1384 = vmatpush1.bf16.msra.mxu0 0
        %1385 = vmatprep.subr.bf16.mxu0 0
        %1386 = vmatpush1.bf16.msra.mxu0 0
        %1387 = vmatprep.subr.bf16.mxu0 0
        %1388 = vmatpush1.bf16.msra.mxu0 0
        %1389 = vmatprep.subr.bf16.mxu0 0
        %1390 = vmatpush1.bf16.msra.mxu0 0
        %1391 = vmatprep.subr.bf16.mxu0 0
        %1392 = vmatpush1.bf16.msra.mxu0 0
        %1393 = vmatprep.subr.bf16.mxu0 0
        %1394 = vmatpush1.bf16.msra.mxu0 %v1240
        %1395 = vmatprep.subr.bf16.mxu0 0
        %1396 = vmatpush1.bf16.msra.mxu0 %v1226
        %1397 = vmatprep.subr.bf16.mxu0 0
        %1398 = vmatpush2.bf16.msra.mxu0 0
        %1399 = vmatprep.subr.bf16.mxu0 0
        %1400 = vmatpush2.bf16.msra.mxu0 0
        %1401 = vmatprep.subr.bf16.mxu0 0
        %1402 = vmatpush2.bf16.msra.mxu0 0
        %1403 = vmatprep.subr.bf16.mxu0 0
        %1404 = vmatpush2.bf16.msra.mxu0 0
        %1405 = vmatprep.subr.bf16.mxu0 0
        %1406 = vmatpush2.bf16.msra.mxu0 0
        %1407 = vmatprep.subr.bf16.mxu0 0
        %1408 = vmatpush2.bf16.msra.mxu0 0
        %1409 = vmatprep.subr.bf16.mxu0 0
        %1410 = vmatpush2.bf16.msra.mxu0 0
        %1411 = vmatprep.subr.bf16.mxu0 0
        %1412 = vmatpush2.bf16.msra.mxu0 0
        %1413 = vmatprep.mubr.bf16.mxu0 0
        %1414 = vmatmul.mubr.bf16.gmra.mxu0 %v1376
        %v1415 = vpop.f32.mrf.mxu0
        %v1416 = vadd.f32 0.0, %v1415
        %v1417 = vpop.f32.mrf.mxu0
        %v1418 = vpop.f32.mrf.mxu0
        %v1419 = vadd.f32 0.0, %v1418
        %v1420 = vpop.f32.mrf.mxu0
        %1421 = vmatprep.mubr.bf16.mxu0 0
        %1422 = vmatmul.mubr.bf16.gmra.mxu0 %v1379
        %v1423 = vpop.f32.mrf.mxu0
        %v1424 = vadd.f32 0.0, %v1423
        %v1425 = vpop.f32.mrf.mxu0
        %v1426 = vpop.f32.mrf.mxu0
        %v1427 = vadd.f32 0.0, %v1426
        %v1428 = vpop.f32.mrf.mxu0
        %1429 = vdwg.mxu0
        %v1434 = vunpack.c.l.b16 %v1357
        %v1435 = vunpack.c.l.b16 %v1358
        %v1436 = vunpack.c.l.b16 %v1359
        %v1437 = vunpack.c.l.b16 %v1360
        %v1438 = vpack.c.b16 %v1435, %v1434
        %v1439 = vpack.c.b16 %v1437, %v1436
        %v1441 = vsel %vm1301, %v1438, 0
        %v1444 = vsel %vm1301, %v1439, 0
        %1446 = vmatprep.subr.bf16.mxu0 0
        %1447 = vmatpush1.bf16.msra.mxu0 0
        %1448 = vmatprep.subr.bf16.mxu0 0
        %1449 = vmatpush1.bf16.msra.mxu0 0
        %1450 = vmatprep.subr.bf16.mxu0 0
        %1451 = vmatpush1.bf16.msra.mxu0 0
        %1452 = vmatprep.subr.bf16.mxu0 0
        %1453 = vmatpush1.bf16.msra.mxu0 0
        %1454 = vmatprep.subr.bf16.mxu0 0
        %1455 = vmatpush1.bf16.msra.mxu0 0
        %1456 = vmatprep.subr.bf16.mxu0 0
        %1457 = vmatpush1.bf16.msra.mxu0 0
        %1458 = vmatprep.subr.bf16.mxu0 0
        %1459 = vmatpush1.bf16.msra.mxu0 0
        %1460 = vmatprep.subr.bf16.mxu0 0
        %1461 = vmatpush1.bf16.msra.mxu0 %v1201
        %1462 = vmatprep.subr.bf16.mxu0 0
        %1463 = vmatpush2.bf16.msra.mxu0 0
        %1464 = vmatprep.subr.bf16.mxu0 0
        %1465 = vmatpush2.bf16.msra.mxu0 0
        %1466 = vmatprep.subr.bf16.mxu0 0
        %1467 = vmatpush2.bf16.msra.mxu0 0
        %1468 = vmatprep.subr.bf16.mxu0 0
        %1469 = vmatpush2.bf16.msra.mxu0 0
        %1470 = vmatprep.subr.bf16.mxu0 0
        %1471 = vmatpush2.bf16.msra.mxu0 0
        %1472 = vmatprep.subr.bf16.mxu0 0
        %1473 = vmatpush2.bf16.msra.mxu0 0
        %1474 = vmatprep.subr.bf16.mxu0 0
        %1475 = vmatpush2.bf16.msra.mxu0 0
        %1476 = vmatprep.subr.bf16.mxu0 0
        %1477 = vmatpush2.bf16.msra.mxu0 0
        %1478 = vmatprep.mubr.bf16.mxu0 0
        %1479 = vmatmul.mubr.bf16.gmra.mxu0 %v1441
        %v1480 = vpop.f32.mrf.mxu0
        %v1481 = vadd.f32 %v1416, %v1480
        %v1482 = vpop.f32.mrf.mxu0
        %v1483 = vpop.f32.mrf.mxu0
        %v1484 = vadd.f32 %v1419, %v1483
        %v1485 = vpop.f32.mrf.mxu0
        %1486 = vmatprep.mubr.bf16.mxu0 0
        %1487 = vmatmul.mubr.bf16.gmra.mxu0 %v1444
        %v1488 = vpop.f32.mrf.mxu0
        %v1489 = vadd.f32 %v1424, %v1488
        %v1490 = vpop.f32.mrf.mxu0
        %v1491 = vpop.f32.mrf.mxu0
        %v1492 = vadd.f32 %v1427, %v1491
        %v1493 = vpop.f32.mrf.mxu0
        %1494 = vdwg.mxu0
        %v1495 = vxor.u32 %v1481, 2147483648
        %v1496 = vxor.u32 %v1484, 2147483648
        %v1497 = vxor.u32 %v1489, 2147483648
        %v1498 = vxor.u32 %v1492, 2147483648
        %v1499 = vmul.f32 %v1495, 1.442695
        %v1500 = vpow.pop %v1499
        %v1501 = vmul.f32 %v1496, 1.442695
        %v1502 = vpow.pop %v1501
        %v1503 = vmul.f32 %v1497, 1.442695
        %v1504 = vpow.pop %v1503
        %v1505 = vmul.f32 %v1498, 1.442695
        %v1506 = vpow.pop %v1505
        %v1507 = vadd.f32 %v1500, 1.0
        %v1508 = vadd.f32 %v1502, 1.0
        %v1509 = vadd.f32 %v1504, 1.0
        %v1510 = vadd.f32 %v1506, 1.0
        %v1511 = vrcp.pop %v1507
        %v1512 = vmul.f32 1.0, %v1511
        %v1513 = vrcp.pop %v1508
        %v1514 = vmul.f32 1.0, %v1513
        %v1515 = vrcp.pop %v1509
        %v1516 = vmul.f32 1.0, %v1515
        %v1517 = vrcp.pop %v1510
        %v1518 = vmul.f32 1.0, %v1517
        %v1519 = vmul.f32 %v1343, %v1512
        %v1520 = vmul.f32 %v1346, %v1514
        %v1521 = vmul.f32 %v1351, %v1516
        %v1522 = vmul.f32 %v1354, %v1518
        %v1523 = vld [vmem:[%s992] sm:$0xff]
        %v1524 = vld [vmem:[%s992 + $0x8] sm:$0xff]
        %v1525 = vld [vmem:[%s992 + $0x10] sm:$0xff]
        %v1526 = vld [vmem:[%s992 + $0x18] sm:$0xff]
        %1528 = vset.pattern.permute.xlu0 3
        %1529 = vperm.xlu0 %1528, %v1523
        %v1530 = vpop.permute.xlu0 %1529
        %1533 = vset.pattern.permute.xlu0 3
        %1534 = vperm.xlu0 %1533, %v1524
        %v1535 = vpop.permute.xlu0 %1534
        %1538 = vset.pattern.permute.xlu0 3
        %1539 = vperm.xlu0 %1538, %v1525
        %v1540 = vpop.permute.xlu0 %1539
        %1543 = vset.pattern.permute.xlu0 3
        %1544 = vperm.xlu0 %1543, %v1526
        %v1545 = vpop.permute.xlu0 %1544
        %v1547 = vmul.f32 %v1519, %v1530
        %v1548 = vmul.f32 %v1520, %v1535
        %v1549 = vmul.f32 %v1521, %v1540
        %v1550 = vmul.f32 %v1522, %v1545
        %1551 = vrot.lane.b32.xlu0 %v1519, 3
        %v1552 = vpop.permute.xlu0 %1551
        %1553 = vrot.lane.b32.xlu0 %v1520, 3
        %v1554 = vpop.permute.xlu0 %1553
        %1555 = vrot.lane.b32.xlu0 %v1521, 3
        %v1556 = vpop.permute.xlu0 %1555
        %1557 = vrot.lane.b32.xlu0 %v1522, 3
        %v1558 = vpop.permute.xlu0 %1557
        %v1559 = vsel %vm1176, 1, 0
        %vm1560 = vcmp.eq.s32.totalorder %v1559, 1
        %v1561 = vsel %vm1560, %v1552, 0.0
        %v1562 = vsel %vm1560, %v1554, 0.0
        %v1563 = vsel %vm1560, %v1556, 0.0
        %v1564 = vsel %vm1560, %v1558, 0.0
        %1565 = vset.pattern.permute.xlu0 0
        %1566 = vperm.xlu0 %1565, %v1523
        %v1567 = vpop.permute.xlu0 %1566
        %1569 = vset.pattern.permute.xlu0 0
        %1570 = vperm.xlu0 %1569, %v1524
        %v1571 = vpop.permute.xlu0 %1570
        %1573 = vset.pattern.permute.xlu0 0
        %1574 = vperm.xlu0 %1573, %v1525
        %v1575 = vpop.permute.xlu0 %1574
        %1577 = vset.pattern.permute.xlu0 0
        %1578 = vperm.xlu0 %1577, %v1526
        %v1579 = vpop.permute.xlu0 %1578
        %v1581 = vmul.f32 %v1561, %v1567
        %v1582 = vmul.f32 %v1562, %v1571
        %v1583 = vmul.f32 %v1563, %v1575
        %v1584 = vmul.f32 %v1564, %v1579
        %v1585 = vadd.f32 %v1547, %v1581
        %v1586 = vadd.f32 %v1548, %v1582
        %v1587 = vadd.f32 %v1549, %v1583
        %v1588 = vadd.f32 %v1550, %v1584
        %1589 = vrot.lane.b32.xlu0 %v1519, 2
        %v1590 = vpop.permute.xlu0 %1589
        %1591 = vrot.lane.b32.xlu0 %v1520, 2
        %v1592 = vpop.permute.xlu0 %1591
        %1593 = vrot.lane.b32.xlu0 %v1521, 2
        %v1594 = vpop.permute.xlu0 %1593
        %1595 = vrot.lane.b32.xlu0 %v1522, 2
        %v1596 = vpop.permute.xlu0 %1595
        %v1597 = vsel %vm1180, 1, 0
        %vm1598 = vcmp.eq.s32.totalorder %v1597, 1
        %v1599 = vsel %vm1598, %v1590, 0.0
        %v1600 = vsel %vm1598, %v1592, 0.0
        %v1601 = vsel %vm1598, %v1594, 0.0
        %v1602 = vsel %vm1598, %v1596, 0.0
        %1603 = vset.pattern.permute.xlu0 1
        %1604 = vperm.xlu0 %1603, %v1523
        %v1605 = vpop.permute.xlu0 %1604
        %1607 = vset.pattern.permute.xlu0 1
        %1608 = vperm.xlu0 %1607, %v1524
        %v1609 = vpop.permute.xlu0 %1608
        %1611 = vset.pattern.permute.xlu0 1
        %1612 = vperm.xlu0 %1611, %v1525
        %v1613 = vpop.permute.xlu0 %1612
        %1615 = vset.pattern.permute.xlu0 1
        %1616 = vperm.xlu0 %1615, %v1526
        %v1617 = vpop.permute.xlu0 %1616
        %v1619 = vmul.f32 %v1599, %v1605
        %v1620 = vmul.f32 %v1600, %v1609
        %v1621 = vmul.f32 %v1601, %v1613
        %v1622 = vmul.f32 %v1602, %v1617
        %v1623 = vadd.f32 %v1585, %v1619
        %v1624 = vadd.f32 %v1586, %v1620
        %v1625 = vadd.f32 %v1587, %v1621
        %v1626 = vadd.f32 %v1588, %v1622
        %1627 = vrot.lane.b32.xlu0 %v1519, 1
        %v1628 = vpop.permute.xlu0 %1627
        %1629 = vrot.lane.b32.xlu0 %v1520, 1
        %v1630 = vpop.permute.xlu0 %1629
        %1631 = vrot.lane.b32.xlu0 %v1521, 1
        %v1632 = vpop.permute.xlu0 %1631
        %1633 = vrot.lane.b32.xlu0 %v1522, 1
        %v1634 = vpop.permute.xlu0 %1633
        %v1635 = vsel %vm1184, 1, 0
        %vm1636 = vcmp.eq.s32.totalorder %v1635, 1
        %v1637 = vsel %vm1636, %v1628, 0.0
        %v1638 = vsel %vm1636, %v1630, 0.0
        %v1639 = vsel %vm1636, %v1632, 0.0
        %v1640 = vsel %vm1636, %v1634, 0.0
        %1641 = vset.pattern.permute.xlu0 2
        %1642 = vperm.xlu0 %1641, %v1523
        %v1643 = vpop.permute.xlu0 %1642
        %1645 = vset.pattern.permute.xlu0 2
        %1646 = vperm.xlu0 %1645, %v1524
        %v1647 = vpop.permute.xlu0 %1646
        %1649 = vset.pattern.permute.xlu0 2
        %1650 = vperm.xlu0 %1649, %v1525
        %v1651 = vpop.permute.xlu0 %1650
        %1653 = vset.pattern.permute.xlu0 2
        %1654 = vperm.xlu0 %1653, %v1526
        %v1655 = vpop.permute.xlu0 %1654
        %v1657 = vmul.f32 %v1637, %v1643
        %v1658 = vmul.f32 %v1638, %v1647
        %v1659 = vmul.f32 %v1639, %v1651
        %v1660 = vmul.f32 %v1640, %v1655
        %v1661 = vadd.f32 %v1623, %v1657
        %v1662 = vadd.f32 %v1624, %v1658
        %v1663 = vadd.f32 %v1625, %v1659
        %v1664 = vadd.f32 %v1626, %v1660
        %1665 = vrot.lane.b32.xlu0 %v1519, 127
        %v1666 = vpop.permute.xlu0 %1665
        %1667 = vrot.lane.b32.xlu0 %v1520, 127
        %v1668 = vpop.permute.xlu0 %1667
        %1669 = vrot.lane.b32.xlu0 %v1521, 127
        %v1670 = vpop.permute.xlu0 %1669
        %1671 = vrot.lane.b32.xlu0 %v1522, 127
        %v1672 = vpop.permute.xlu0 %1671
        %v1673 = vsel %vm1188, 1, 0
        %vm1674 = vcmp.eq.s32.totalorder %v1673, 1
        %v1675 = vsel %vm1674, %v1666, 0.0
        %v1676 = vsel %vm1674, %v1668, 0.0
        %v1677 = vsel %vm1674, %v1670, 0.0
        %v1678 = vsel %vm1674, %v1672, 0.0
        %1679 = vset.pattern.permute.xlu0 4
        %1680 = vperm.xlu0 %1679, %v1523
        %v1681 = vpop.permute.xlu0 %1680
        %1683 = vset.pattern.permute.xlu0 4
        %1684 = vperm.xlu0 %1683, %v1524
        %v1685 = vpop.permute.xlu0 %1684
        %1687 = vset.pattern.permute.xlu0 4
        %1688 = vperm.xlu0 %1687, %v1525
        %v1689 = vpop.permute.xlu0 %1688
        %1691 = vset.pattern.permute.xlu0 4
        %1692 = vperm.xlu0 %1691, %v1526
        %v1693 = vpop.permute.xlu0 %1692
        %v1695 = vmul.f32 %v1675, %v1681
        %v1696 = vmul.f32 %v1676, %v1685
        %v1697 = vmul.f32 %v1677, %v1689
        %v1698 = vmul.f32 %v1678, %v1693
        %v1699 = vadd.f32 %v1661, %v1695
        %v1700 = vadd.f32 %v1662, %v1696
        %v1701 = vadd.f32 %v1663, %v1697
        %v1702 = vadd.f32 %v1664, %v1698
        %1703 = vrot.lane.b32.xlu0 %v1519, 126
        %v1704 = vpop.permute.xlu0 %1703
        %1705 = vrot.lane.b32.xlu0 %v1520, 126
        %v1706 = vpop.permute.xlu0 %1705
        %1707 = vrot.lane.b32.xlu0 %v1521, 126
        %v1708 = vpop.permute.xlu0 %1707
        %1709 = vrot.lane.b32.xlu0 %v1522, 126
        %v1710 = vpop.permute.xlu0 %1709
        %v1711 = vsel %vm1192, 1, 0
        %vm1712 = vcmp.eq.s32.totalorder %v1711, 1
        %v1713 = vsel %vm1712, %v1704, 0.0
        %v1714 = vsel %vm1712, %v1706, 0.0
        %v1715 = vsel %vm1712, %v1708, 0.0
        %v1716 = vsel %vm1712, %v1710, 0.0
        %1717 = vset.pattern.permute.xlu0 5
        %1718 = vperm.xlu0 %1717, %v1523
        %v1719 = vpop.permute.xlu0 %1718
        %1721 = vset.pattern.permute.xlu0 5
        %1722 = vperm.xlu0 %1721, %v1524
        %v1723 = vpop.permute.xlu0 %1722
        %1725 = vset.pattern.permute.xlu0 5
        %1726 = vperm.xlu0 %1725, %v1525
        %v1727 = vpop.permute.xlu0 %1726
        %1729 = vset.pattern.permute.xlu0 5
        %1730 = vperm.xlu0 %1729, %v1526
        %v1731 = vpop.permute.xlu0 %1730
        %v1733 = vmul.f32 %v1713, %v1719
        %v1734 = vmul.f32 %v1714, %v1723
        %v1735 = vmul.f32 %v1715, %v1727
        %v1736 = vmul.f32 %v1716, %v1731
        %v1737 = vadd.f32 %v1699, %v1733
        %v1738 = vadd.f32 %v1700, %v1734
        %v1739 = vadd.f32 %v1701, %v1735
        %v1740 = vadd.f32 %v1702, %v1736
        %1741 = vrot.lane.b32.xlu0 %v1519, 125
        %v1742 = vpop.permute.xlu0 %1741
        %1743 = vrot.lane.b32.xlu0 %v1520, 125
        %v1744 = vpop.permute.xlu0 %1743
        %1745 = vrot.lane.b32.xlu0 %v1521, 125
        %v1746 = vpop.permute.xlu0 %1745
        %1747 = vrot.lane.b32.xlu0 %v1522, 125
        %v1748 = vpop.permute.xlu0 %1747
        %v1749 = vsel %vm1196, 1, 0
        %vm1750 = vcmp.eq.s32.totalorder %v1749, 1
        %v1751 = vsel %vm1750, %v1742, 0.0
        %v1752 = vsel %vm1750, %v1744, 0.0
        %v1753 = vsel %vm1750, %v1746, 0.0
        %v1754 = vsel %vm1750, %v1748, 0.0
        %1755 = vset.pattern.permute.xlu0 6
        %1756 = vperm.xlu0 %1755, %v1523
        %v1757 = vpop.permute.xlu0 %1756
        %1759 = vset.pattern.permute.xlu0 6
        %1760 = vperm.xlu0 %1759, %v1524
        %v1761 = vpop.permute.xlu0 %1760
        %1763 = vset.pattern.permute.xlu0 6
        %1764 = vperm.xlu0 %1763, %v1525
        %v1765 = vpop.permute.xlu0 %1764
        %1767 = vset.pattern.permute.xlu0 6
        %1768 = vperm.xlu0 %1767, %v1526
        %v1769 = vpop.permute.xlu0 %1768
        %v1771 = vmul.f32 %v1751, %v1757
        %v1772 = vmul.f32 %v1752, %v1761
        %v1773 = vmul.f32 %v1753, %v1765
        %v1774 = vmul.f32 %v1754, %v1769
        %v1775 = vadd.f32 %v1737, %v1771
        %v1776 = vadd.f32 %v1738, %v1772
        %v1777 = vadd.f32 %v1739, %v1773
        %v1778 = vadd.f32 %v1740, %v1774
        %v1779 = vld [vmem:[%s997] sm:$0xff]
        %v1780 = vld [vmem:[%s997 + $0x8] sm:$0xff]
        %v1781 = vld [vmem:[%s997 + $0x10] sm:$0xff]
        %v1782 = vld [vmem:[%s997 + $0x18] sm:$0xff]
        %1784 = vset.pattern.permute.xlu0 0
        %1785 = vperm.xlu0 %1784, %v1779
        %v1786 = vpop.permute.xlu0 %1785
        %1789 = vset.pattern.permute.xlu0 0
        %1790 = vperm.xlu0 %1789, %v1780
        %v1791 = vpop.permute.xlu0 %1790
        %1794 = vset.pattern.permute.xlu0 0
        %1795 = vperm.xlu0 %1794, %v1781
        %v1796 = vpop.permute.xlu0 %1795
        %1799 = vset.pattern.permute.xlu0 0
        %1800 = vperm.xlu0 %1799, %v1782
        %v1801 = vpop.permute.xlu0 %1800
        %v1803 = vadd.f32 %v1775, %v1786
        %v1804 = vadd.f32 %v1776, %v1791
        %v1805 = vadd.f32 %v1777, %v1796
        %v1806 = vadd.f32 %v1778, %v1801
        %v1807 = vxor.u32 %v1805, 2147483648
        %v1808 = vxor.u32 %v1806, 2147483648
        %v1809 = vmul.f32 %v1807, 1.442695
        %v1810 = vpow.pop %v1809
        %v1811 = vmul.f32 %v1808, 1.442695
        %v1812 = vpow.pop %v1811
        %v1813 = vadd.f32 %v1810, 1.0
        %v1814 = vadd.f32 %v1812, 1.0
        %v1815 = vrcp.pop %v1813
        %v1816 = vmul.f32 1.0, %v1815
        %v1817 = vrcp.pop %v1814
        %v1818 = vmul.f32 1.0, %v1817
        %v1819 = vmul.f32 %v1803, %v1816
        %v1820 = vmul.f32 %v1804, %v1818
        %v1821 = vld [vmem:[%s1002] sm:$0xf]
        %v1822 = vld [vmem:[%s1002 + $0x4] sm:$0xf]
        %v1823 = vpack.c.bf16 %v1820, %v1819
        %v1824 = vld [vmem:[%s1007] sm:$0xff]
        %v1825 = vld [vmem:[%s1007 + $0x8] sm:$0xff]
        %1827 = vset.pattern.permute.xlu0 0
        %1828 = vperm.xlu0 %1827, %v1824
        %v1829 = vpop.permute.xlu0 %1828
        %1832 = vset.pattern.permute.xlu0 0
        %1833 = vperm.xlu0 %1832, %v1825
        %v1834 = vpop.permute.xlu0 %1833
        %v1838 = vunpack.c.l.b16 %v1821
        %v1839 = vunpack.c.l.b16 %v1822
        %v1840 = vpack.c.b16 %v1839, %v1838
        %v1842 = vsel %vm1301, %v1840, 0
        %1844 = vmatprep.subr.bf16.mxu0 0
        %1845 = vmatpush1.bf16.msra.mxu0 0
        %1846 = vmatprep.subr.bf16.mxu0 0
        %1847 = vmatpush1.bf16.msra.mxu0 0
        %1848 = vmatprep.subr.bf16.mxu0 0
        %1849 = vmatpush1.bf16.msra.mxu0 0
        %1850 = vmatprep.subr.bf16.mxu0 0
        %1851 = vmatpush1.bf16.msra.mxu0 0
        %1852 = vmatprep.subr.bf16.mxu0 0
        %1853 = vmatpush1.bf16.msra.mxu0 0
        %1854 = vmatprep.subr.bf16.mxu0 0
        %1855 = vmatpush1.bf16.msra.mxu0 0
        %1856 = vmatprep.subr.bf16.mxu0 0
        %1857 = vmatpush1.bf16.msra.mxu0 0
        %1858 = vmatprep.subr.bf16.mxu0 0
        %1859 = vmatpush1.bf16.msra.mxu0 %v1823
        %1860 = vmatprep.subr.bf16.mxu0 0
        %1861 = vmatpush2.bf16.msra.mxu0 0
        %1862 = vmatprep.subr.bf16.mxu0 0
        %1863 = vmatpush2.bf16.msra.mxu0 0
        %1864 = vmatprep.subr.bf16.mxu0 0
        %1865 = vmatpush2.bf16.msra.mxu0 0
        %1866 = vmatprep.subr.bf16.mxu0 0
        %1867 = vmatpush2.bf16.msra.mxu0 0
        %1868 = vmatprep.subr.bf16.mxu0 0
        %1869 = vmatpush2.bf16.msra.mxu0 0
        %1870 = vmatprep.subr.bf16.mxu0 0
        %1871 = vmatpush2.bf16.msra.mxu0 0
        %1872 = vmatprep.subr.bf16.mxu0 0
        %1873 = vmatpush2.bf16.msra.mxu0 0
        %1874 = vmatprep.subr.bf16.mxu0 0
        %1875 = vmatpush2.bf16.msra.mxu0 0
        %1876 = vmatprep.mubr.bf16.mxu0 0
        %1877 = vmatmul.mubr.bf16.gmra.mxu0 %v1842
        %v1878 = vpop.f32.mrf.mxu0
        %v1879 = vadd.f32 %v1829, %v1878
        %v1880 = vpop.f32.mrf.mxu0
        %v1881 = vpop.f32.mrf.mxu0
        %v1882 = vadd.f32 %v1834, %v1881
        %v1883 = vpop.f32.mrf.mxu0
        %1884 = vdwg.mxu0
        %v1885 = vadd.f32 %v1199, %v1879
        %v1886 = vadd.f32 %v1200, %v1882
        %v1887 = vpack.c.bf16 %v1886, %v1885
        %v1888 = vld [vmem:[%s1012] sm:$0xf]
        %v1889 = vld [vmem:[%s1012 + $0x4] sm:$0xf]
        %v1890 = vld [vmem:[%s1012 + $0x8] sm:$0xf]
        %v1891 = vld [vmem:[%s1012 + $0xc] sm:$0xf]
        %v1892 = vld [vmem:[%s1022] sm:$0xf]
        %v1893 = vld [vmem:[%s1022 + $0x4] sm:$0xf]
        %v1894 = vld [vmem:[%s1022 + $0x8] sm:$0xf]
        %v1895 = vld [vmem:[%s1022 + $0xc] sm:$0xf]
        %v1900 = vunpack.c.l.b16 %v1892
        %v1901 = vunpack.c.l.b16 %v1893
        %v1902 = vunpack.c.l.b16 %v1894
        %v1903 = vunpack.c.l.b16 %v1895
        %v1904 = vpack.c.b16 %v1901, %v1900
        %v1905 = vpack.c.b16 %v1903, %v1902
        %v1907 = vsel %vm1229, %v1904, 0
        %v1910 = vsel %vm1229, %v1905, 0
        %1912 = vmatprep.subr.bf16.mxu0 0
        %1913 = vmatpush1.bf16.msra.mxu0 0
        %1914 = vmatprep.subr.bf16.mxu0 0
        %1915 = vmatpush1.bf16.msra.mxu0 0
        %1916 = vmatprep.subr.bf16.mxu0 0
        %1917 = vmatpush1.bf16.msra.mxu0 0
        %1918 = vmatprep.subr.bf16.mxu0 0
        %1919 = vmatpush1.bf16.msra.mxu0 0
        %1920 = vmatprep.subr.bf16.mxu0 0
        %1921 = vmatpush1.bf16.msra.mxu0 0
        %1922 = vmatprep.subr.bf16.mxu0 0
        %1923 = vmatpush1.bf16.msra.mxu0 0
        %1924 = vmatprep.subr.bf16.mxu0 0
        %1925 = vmatpush1.bf16.msra.mxu0 %v1240
        %1926 = vmatprep.subr.bf16.mxu0 0
        %1927 = vmatpush1.bf16.msra.mxu0 %v1226
        %1928 = vmatprep.subr.bf16.mxu0 0
        %1929 = vmatpush2.bf16.msra.mxu0 0
        %1930 = vmatprep.subr.bf16.mxu0 0
        %1931 = vmatpush2.bf16.msra.mxu0 0
        %1932 = vmatprep.subr.bf16.mxu0 0
        %1933 = vmatpush2.bf16.msra.mxu0 0
        %1934 = vmatprep.subr.bf16.mxu0 0
        %1935 = vmatpush2.bf16.msra.mxu0 0
        %1936 = vmatprep.subr.bf16.mxu0 0
        %1937 = vmatpush2.bf16.msra.mxu0 0
        %1938 = vmatprep.subr.bf16.mxu0 0
        %1939 = vmatpush2.bf16.msra.mxu0 0
        %1940 = vmatprep.subr.bf16.mxu0 0
        %1941 = vmatpush2.bf16.msra.mxu0 0
        %1942 = vmatprep.subr.bf16.mxu0 0
        %1943 = vmatpush2.bf16.msra.mxu0 0
        %1944 = vmatprep.mubr.bf16.mxu0 0
        %1945 = vmatmul.mubr.bf16.gmra.mxu0 %v1907
        %v1946 = vpop.f32.mrf.mxu0
        %v1947 = vadd.f32 0.0, %v1946
        %v1948 = vpop.f32.mrf.mxu0
        %v1949 = vpop.f32.mrf.mxu0
        %v1950 = vadd.f32 0.0, %v1949
        %v1951 = vpop.f32.mrf.mxu0
        %1952 = vmatprep.mubr.bf16.mxu0 0
        %1953 = vmatmul.mubr.bf16.gmra.mxu0 %v1910
        %v1954 = vpop.f32.mrf.mxu0
        %v1955 = vadd.f32 0.0, %v1954
        %v1956 = vpop.f32.mrf.mxu0
        %v1957 = vpop.f32.mrf.mxu0
        %v1958 = vadd.f32 0.0, %v1957
        %v1959 = vpop.f32.mrf.mxu0
        %1960 = vdwg.mxu0
        %v1965 = vunpack.c.l.b16 %v1888
        %v1966 = vunpack.c.l.b16 %v1889
        %v1967 = vunpack.c.l.b16 %v1890
        %v1968 = vunpack.c.l.b16 %v1891
        %v1969 = vpack.c.b16 %v1966, %v1965
        %v1970 = vpack.c.b16 %v1968, %v1967
        %v1972 = vsel %vm1301, %v1969, 0
        %v1975 = vsel %vm1301, %v1970, 0
        %1977 = vmatprep.subr.bf16.mxu0 0
        %1978 = vmatpush1.bf16.msra.mxu0 0
        %1979 = vmatprep.subr.bf16.mxu0 0
        %1980 = vmatpush1.bf16.msra.mxu0 0
        %1981 = vmatprep.subr.bf16.mxu0 0
        %1982 = vmatpush1.bf16.msra.mxu0 0
        %1983 = vmatprep.subr.bf16.mxu0 0
        %1984 = vmatpush1.bf16.msra.mxu0 0
        %1985 = vmatprep.subr.bf16.mxu0 0
        %1986 = vmatpush1.bf16.msra.mxu0 0
        %1987 = vmatprep.subr.bf16.mxu0 0
        %1988 = vmatpush1.bf16.msra.mxu0 0
        %1989 = vmatprep.subr.bf16.mxu0 0
        %1990 = vmatpush1.bf16.msra.mxu0 0
        %1991 = vmatprep.subr.bf16.mxu0 0
        %1992 = vmatpush1.bf16.msra.mxu0 %v1887
        %1993 = vmatprep.subr.bf16.mxu0 0
        %1994 = vmatpush2.bf16.msra.mxu0 0
        %1995 = vmatprep.subr.bf16.mxu0 0
        %1996 = vmatpush2.bf16.msra.mxu0 0
        %1997 = vmatprep.subr.bf16.mxu0 0
        %1998 = vmatpush2.bf16.msra.mxu0 0
        %1999 = vmatprep.subr.bf16.mxu0 0
        %2000 = vmatpush2.bf16.msra.mxu0 0
        %2001 = vmatprep.subr.bf16.mxu0 0
        %2002 = vmatpush2.bf16.msra.mxu0 0
        %2003 = vmatprep.subr.bf16.mxu0 0
        %2004 = vmatpush2.bf16.msra.mxu0 0
        %2005 = vmatprep.subr.bf16.mxu0 0
        %2006 = vmatpush2.bf16.msra.mxu0 0
        %2007 = vmatprep.subr.bf16.mxu0 0
        %2008 = vmatpush2.bf16.msra.mxu0 0
        %2009 = vmatprep.mubr.bf16.mxu0 0
        %2010 = vmatmul.mubr.bf16.gmra.mxu0 %v1972
        %v2011 = vpop.f32.mrf.mxu0
        %v2012 = vadd.f32 %v1947, %v2011
        %v2013 = vpop.f32.mrf.mxu0
        %v2014 = vpop.f32.mrf.mxu0
        %v2015 = vadd.f32 %v1950, %v2014
        %v2016 = vpop.f32.mrf.mxu0
        %2017 = vmatprep.mubr.bf16.mxu0 0
        %2018 = vmatmul.mubr.bf16.gmra.mxu0 %v1975
        %v2019 = vpop.f32.mrf.mxu0
        %v2020 = vadd.f32 %v1955, %v2019
        %v2021 = vpop.f32.mrf.mxu0
        %v2022 = vpop.f32.mrf.mxu0
        %v2023 = vadd.f32 %v1958, %v2022
        %v2024 = vpop.f32.mrf.mxu0
        %2025 = vdwg.mxu0
        %v2026 = vld [vmem:[%s1017] sm:$0xf]
        %v2027 = vld [vmem:[%s1017 + $0x4] sm:$0xf]
        %v2028 = vld [vmem:[%s1017 + $0x8] sm:$0xf]
        %v2029 = vld [vmem:[%s1017 + $0xc] sm:$0xf]
        %v2030 = vld [vmem:[%s1027] sm:$0xf]
        %v2031 = vld [vmem:[%s1027 + $0x4] sm:$0xf]
        %v2032 = vld [vmem:[%s1027 + $0x8] sm:$0xf]
        %v2033 = vld [vmem:[%s1027 + $0xc] sm:$0xf]
        %v2038 = vunpack.c.l.b16 %v2030
        %v2039 = vunpack.c.l.b16 %v2031
        %v2040 = vunpack.c.l.b16 %v2032
        %v2041 = vunpack.c.l.b16 %v2033
        %v2042 = vpack.c.b16 %v2039, %v2038
        %v2043 = vpack.c.b16 %v2041, %v2040
        %v2045 = vsel %vm1229, %v2042, 0
        %v2048 = vsel %vm1229, %v2043, 0
        %2050 = vmatprep.subr.bf16.mxu0 0
        %2051 = vmatpush1.bf16.msra.mxu0 0
        %2052 = vmatprep.subr.bf16.mxu0 0
        %2053 = vmatpush1.bf16.msra.mxu0 0
        %2054 = vmatprep.subr.bf16.mxu0 0
        %2055 = vmatpush1.bf16.msra.mxu0 0
        %2056 = vmatprep.subr.bf16.mxu0 0
        %2057 = vmatpush1.bf16.msra.mxu0 0
        %2058 = vmatprep.subr.bf16.mxu0 0
        %2059 = vmatpush1.bf16.msra.mxu0 0
        %2060 = vmatprep.subr.bf16.mxu0 0
        %2061 = vmatpush1.bf16.msra.mxu0 0
        %2062 = vmatprep.subr.bf16.mxu0 0
        %2063 = vmatpush1.bf16.msra.mxu0 %v1240
        %2064 = vmatprep.subr.bf16.mxu0 0
        %2065 = vmatpush1.bf16.msra.mxu0 %v1226
        %2066 = vmatprep.subr.bf16.mxu0 0
        %2067 = vmatpush2.bf16.msra.mxu0 0
        %2068 = vmatprep.subr.bf16.mxu0 0
        %2069 = vmatpush2.bf16.msra.mxu0 0
        %2070 = vmatprep.subr.bf16.mxu0 0
        %2071 = vmatpush2.bf16.msra.mxu0 0
        %2072 = vmatprep.subr.bf16.mxu0 0
        %2073 = vmatpush2.bf16.msra.mxu0 0
        %2074 = vmatprep.subr.bf16.mxu0 0
        %2075 = vmatpush2.bf16.msra.mxu0 0
        %2076 = vmatprep.subr.bf16.mxu0 0
        %2077 = vmatpush2.bf16.msra.mxu0 0
        %2078 = vmatprep.subr.bf16.mxu0 0
        %2079 = vmatpush2.bf16.msra.mxu0 0
        %2080 = vmatprep.subr.bf16.mxu0 0
        %2081 = vmatpush2.bf16.msra.mxu0 0
        %2082 = vmatprep.mubr.bf16.mxu0 0
        %2083 = vmatmul.mubr.bf16.gmra.mxu0 %v2045
        %v2084 = vpop.f32.mrf.mxu0
        %v2085 = vadd.f32 0.0, %v2084
        %v2086 = vpop.f32.mrf.mxu0
        %v2087 = vpop.f32.mrf.mxu0
        %v2088 = vadd.f32 0.0, %v2087
        %v2089 = vpop.f32.mrf.mxu0
        %2090 = vmatprep.mubr.bf16.mxu0 0
        %2091 = vmatmul.mubr.bf16.gmra.mxu0 %v2048
        %v2092 = vpop.f32.mrf.mxu0
        %v2093 = vadd.f32 0.0, %v2092
        %v2094 = vpop.f32.mrf.mxu0
        %v2095 = vpop.f32.mrf.mxu0
        %v2096 = vadd.f32 0.0, %v2095
        %v2097 = vpop.f32.mrf.mxu0
        %2098 = vdwg.mxu0
        %v2103 = vunpack.c.l.b16 %v2026
        %v2104 = vunpack.c.l.b16 %v2027
        %v2105 = vunpack.c.l.b16 %v2028
        %v2106 = vunpack.c.l.b16 %v2029
        %v2107 = vpack.c.b16 %v2104, %v2103
        %v2108 = vpack.c.b16 %v2106, %v2105
        %v2110 = vsel %vm1301, %v2107, 0
        %v2113 = vsel %vm1301, %v2108, 0
        %2115 = vmatprep.subr.bf16.mxu0 0
        %2116 = vmatpush1.bf16.msra.mxu0 0
        %2117 = vmatprep.subr.bf16.mxu0 0
        %2118 = vmatpush1.bf16.msra.mxu0 0
        %2119 = vmatprep.subr.bf16.mxu0 0
        %2120 = vmatpush1.bf16.msra.mxu0 0
        %2121 = vmatprep.subr.bf16.mxu0 0
        %2122 = vmatpush1.bf16.msra.mxu0 0
        %2123 = vmatprep.subr.bf16.mxu0 0
        %2124 = vmatpush1.bf16.msra.mxu0 0
        %2125 = vmatprep.subr.bf16.mxu0 0
        %2126 = vmatpush1.bf16.msra.mxu0 0
        %2127 = vmatprep.subr.bf16.mxu0 0
        %2128 = vmatpush1.bf16.msra.mxu0 0
        %2129 = vmatprep.subr.bf16.mxu0 0
        %2130 = vmatpush1.bf16.msra.mxu0 %v1887
        %2131 = vmatprep.subr.bf16.mxu0 0
        %2132 = vmatpush2.bf16.msra.mxu0 0
        %2133 = vmatprep.subr.bf16.mxu0 0
        %2134 = vmatpush2.bf16.msra.mxu0 0
        %2135 = vmatprep.subr.bf16.mxu0 0
        %2136 = vmatpush2.bf16.msra.mxu0 0
        %2137 = vmatprep.subr.bf16.mxu0 0
        %2138 = vmatpush2.bf16.msra.mxu0 0
        %2139 = vmatprep.subr.bf16.mxu0 0
        %2140 = vmatpush2.bf16.msra.mxu0 0
        %2141 = vmatprep.subr.bf16.mxu0 0
        %2142 = vmatpush2.bf16.msra.mxu0 0
        %2143 = vmatprep.subr.bf16.mxu0 0
        %2144 = vmatpush2.bf16.msra.mxu0 0
        %2145 = vmatprep.subr.bf16.mxu0 0
        %2146 = vmatpush2.bf16.msra.mxu0 0
        %2147 = vmatprep.mubr.bf16.mxu0 0
        %2148 = vmatmul.mubr.bf16.gmra.mxu0 %v2110
        %v2149 = vpop.f32.mrf.mxu0
        %v2150 = vadd.f32 %v2085, %v2149
        %v2151 = vpop.f32.mrf.mxu0
        %v2152 = vpop.f32.mrf.mxu0
        %v2153 = vadd.f32 %v2088, %v2152
        %v2154 = vpop.f32.mrf.mxu0
        %2155 = vmatprep.mubr.bf16.mxu0 0
        %2156 = vmatmul.mubr.bf16.gmra.mxu0 %v2113
        %v2157 = vpop.f32.mrf.mxu0
        %v2158 = vadd.f32 %v2093, %v2157
        %v2159 = vpop.f32.mrf.mxu0
        %v2160 = vpop.f32.mrf.mxu0
        %v2161 = vadd.f32 %v2096, %v2160
        %v2162 = vpop.f32.mrf.mxu0
        %2163 = vdwg.mxu0
        %v2164 = vxor.u32 %v2150, 2147483648
        %v2165 = vxor.u32 %v2153, 2147483648
        %v2166 = vxor.u32 %v2158, 2147483648
        %v2167 = vxor.u32 %v2161, 2147483648
        %v2168 = vmul.f32 %v2164, 1.442695
        %v2169 = vpow.pop %v2168
        %v2170 = vmul.f32 %v2165, 1.442695
        %v2171 = vpow.pop %v2170
        %v2172 = vmul.f32 %v2166, 1.442695
        %v2173 = vpow.pop %v2172
        %v2174 = vmul.f32 %v2167, 1.442695
        %v2175 = vpow.pop %v2174
        %v2176 = vadd.f32 %v2169, 1.0
        %v2177 = vadd.f32 %v2171, 1.0
        %v2178 = vadd.f32 %v2173, 1.0
        %v2179 = vadd.f32 %v2175, 1.0
        %v2180 = vrcp.pop %v2176
        %v2181 = vmul.f32 1.0, %v2180
        %v2182 = vrcp.pop %v2177
        %v2183 = vmul.f32 1.0, %v2182
        %v2184 = vrcp.pop %v2178
        %v2185 = vmul.f32 1.0, %v2184
        %v2186 = vrcp.pop %v2179
        %v2187 = vmul.f32 1.0, %v2186
        %v2188 = vmul.f32 %v2012, %v2181
        %v2189 = vmul.f32 %v2015, %v2183
        %v2190 = vmul.f32 %v2020, %v2185
        %v2191 = vmul.f32 %v2023, %v2187
        %v2192 = vld [vmem:[%s1032] sm:$0xff]
        %v2193 = vld [vmem:[%s1032 + $0x8] sm:$0xff]
        %v2194 = vld [vmem:[%s1032 + $0x10] sm:$0xff]
        %v2195 = vld [vmem:[%s1032 + $0x18] sm:$0xff]
        %2197 = vset.pattern.permute.xlu0 3
        %2198 = vperm.xlu0 %2197, %v2192
        %v2199 = vpop.permute.xlu0 %2198
        %2202 = vset.pattern.permute.xlu0 3
        %2203 = vperm.xlu0 %2202, %v2193
        %v2204 = vpop.permute.xlu0 %2203
        %2207 = vset.pattern.permute.xlu0 3
        %2208 = vperm.xlu0 %2207, %v2194
        %v2209 = vpop.permute.xlu0 %2208
        %2212 = vset.pattern.permute.xlu0 3
        %2213 = vperm.xlu0 %2212, %v2195
        %v2214 = vpop.permute.xlu0 %2213
        %v2216 = vmul.f32 %v2188, %v2199
        %v2217 = vmul.f32 %v2189, %v2204
        %v2218 = vmul.f32 %v2190, %v2209
        %v2219 = vmul.f32 %v2191, %v2214
        %2220 = vrot.lane.b32.xlu0 %v2188, 3
        %v2221 = vpop.permute.xlu0 %2220
        %2222 = vrot.lane.b32.xlu0 %v2189, 3
        %v2223 = vpop.permute.xlu0 %2222
        %2224 = vrot.lane.b32.xlu0 %v2190, 3
        %v2225 = vpop.permute.xlu0 %2224
        %2226 = vrot.lane.b32.xlu0 %v2191, 3
        %v2227 = vpop.permute.xlu0 %2226
        %v2228 = vsel %vm1560, %v2221, 0.0
        %v2229 = vsel %vm1560, %v2223, 0.0
        %v2230 = vsel %vm1560, %v2225, 0.0
        %v2231 = vsel %vm1560, %v2227, 0.0
        %2232 = vset.pattern.permute.xlu0 0
        %2233 = vperm.xlu0 %2232, %v2192
        %v2234 = vpop.permute.xlu0 %2233
        %2236 = vset.pattern.permute.xlu0 0
        %2237 = vperm.xlu0 %2236, %v2193
        %v2238 = vpop.permute.xlu0 %2237
        %2240 = vset.pattern.permute.xlu0 0
        %2241 = vperm.xlu0 %2240, %v2194
        %v2242 = vpop.permute.xlu0 %2241
        %2244 = vset.pattern.permute.xlu0 0
        %2245 = vperm.xlu0 %2244, %v2195
        %v2246 = vpop.permute.xlu0 %2245
        %v2248 = vmul.f32 %v2228, %v2234
        %v2249 = vmul.f32 %v2229, %v2238
        %v2250 = vmul.f32 %v2230, %v2242
        %v2251 = vmul.f32 %v2231, %v2246
        %v2252 = vadd.f32 %v2216, %v2248
        %v2253 = vadd.f32 %v2217, %v2249
        %v2254 = vadd.f32 %v2218, %v2250
        %v2255 = vadd.f32 %v2219, %v2251
        %2256 = vrot.lane.b32.xlu0 %v2188, 2
        %v2257 = vpop.permute.xlu0 %2256
        %2258 = vrot.lane.b32.xlu0 %v2189, 2
        %v2259 = vpop.permute.xlu0 %2258
        %2260 = vrot.lane.b32.xlu0 %v2190, 2
        %v2261 = vpop.permute.xlu0 %2260
        %2262 = vrot.lane.b32.xlu0 %v2191, 2
        %v2263 = vpop.permute.xlu0 %2262
        %v2264 = vsel %vm1598, %v2257, 0.0
        %v2265 = vsel %vm1598, %v2259, 0.0
        %v2266 = vsel %vm1598, %v2261, 0.0
        %v2267 = vsel %vm1598, %v2263, 0.0
        %2268 = vset.pattern.permute.xlu0 1
        %2269 = vperm.xlu0 %2268, %v2192
        %v2270 = vpop.permute.xlu0 %2269
        %2272 = vset.pattern.permute.xlu0 1
        %2273 = vperm.xlu0 %2272, %v2193
        %v2274 = vpop.permute.xlu0 %2273
        %2276 = vset.pattern.permute.xlu0 1
        %2277 = vperm.xlu0 %2276, %v2194
        %v2278 = vpop.permute.xlu0 %2277
        %2280 = vset.pattern.permute.xlu0 1
        %2281 = vperm.xlu0 %2280, %v2195
        %v2282 = vpop.permute.xlu0 %2281
        %v2284 = vmul.f32 %v2264, %v2270
        %v2285 = vmul.f32 %v2265, %v2274
        %v2286 = vmul.f32 %v2266, %v2278
        %v2287 = vmul.f32 %v2267, %v2282
        %v2288 = vadd.f32 %v2252, %v2284
        %v2289 = vadd.f32 %v2253, %v2285
        %v2290 = vadd.f32 %v2254, %v2286
        %v2291 = vadd.f32 %v2255, %v2287
        %2292 = vrot.lane.b32.xlu0 %v2188, 1
        %v2293 = vpop.permute.xlu0 %2292
        %2294 = vrot.lane.b32.xlu0 %v2189, 1
        %v2295 = vpop.permute.xlu0 %2294
        %2296 = vrot.lane.b32.xlu0 %v2190, 1
        %v2297 = vpop.permute.xlu0 %2296
        %2298 = vrot.lane.b32.xlu0 %v2191, 1
        %v2299 = vpop.permute.xlu0 %2298
        %v2300 = vsel %vm1636, %v2293, 0.0
        %v2301 = vsel %vm1636, %v2295, 0.0
        %v2302 = vsel %vm1636, %v2297, 0.0
        %v2303 = vsel %vm1636, %v2299, 0.0
        %2304 = vset.pattern.permute.xlu0 2
        %2305 = vperm.xlu0 %2304, %v2192
        %v2306 = vpop.permute.xlu0 %2305
        %2308 = vset.pattern.permute.xlu0 2
        %2309 = vperm.xlu0 %2308, %v2193
        %v2310 = vpop.permute.xlu0 %2309
        %2312 = vset.pattern.permute.xlu0 2
        %2313 = vperm.xlu0 %2312, %v2194
        %v2314 = vpop.permute.xlu0 %2313
        %2316 = vset.pattern.permute.xlu0 2
        %2317 = vperm.xlu0 %2316, %v2195
        %v2318 = vpop.permute.xlu0 %2317
        %v2320 = vmul.f32 %v2300, %v2306
        %v2321 = vmul.f32 %v2301, %v2310
        %v2322 = vmul.f32 %v2302, %v2314
        %v2323 = vmul.f32 %v2303, %v2318
        %v2324 = vadd.f32 %v2288, %v2320
        %v2325 = vadd.f32 %v2289, %v2321
        %v2326 = vadd.f32 %v2290, %v2322
        %v2327 = vadd.f32 %v2291, %v2323
        %2328 = vrot.lane.b32.xlu0 %v2188, 127
        %v2329 = vpop.permute.xlu0 %2328
        %2330 = vrot.lane.b32.xlu0 %v2189, 127
        %v2331 = vpop.permute.xlu0 %2330
        %2332 = vrot.lane.b32.xlu0 %v2190, 127
        %v2333 = vpop.permute.xlu0 %2332
        %2334 = vrot.lane.b32.xlu0 %v2191, 127
        %v2335 = vpop.permute.xlu0 %2334
        %v2336 = vsel %vm1674, %v2329, 0.0
        %v2337 = vsel %vm1674, %v2331, 0.0
        %v2338 = vsel %vm1674, %v2333, 0.0
        %v2339 = vsel %vm1674, %v2335, 0.0
        %2340 = vset.pattern.permute.xlu0 4
        %2341 = vperm.xlu0 %2340, %v2192
        %v2342 = vpop.permute.xlu0 %2341
        %2344 = vset.pattern.permute.xlu0 4
        %2345 = vperm.xlu0 %2344, %v2193
        %v2346 = vpop.permute.xlu0 %2345
        %2348 = vset.pattern.permute.xlu0 4
        %2349 = vperm.xlu0 %2348, %v2194
        %v2350 = vpop.permute.xlu0 %2349
        %2352 = vset.pattern.permute.xlu0 4
        %2353 = vperm.xlu0 %2352, %v2195
        %v2354 = vpop.permute.xlu0 %2353
        %v2356 = vmul.f32 %v2336, %v2342
        %v2357 = vmul.f32 %v2337, %v2346
        %v2358 = vmul.f32 %v2338, %v2350
        %v2359 = vmul.f32 %v2339, %v2354
        %v2360 = vadd.f32 %v2324, %v2356
        %v2361 = vadd.f32 %v2325, %v2357
        %v2362 = vadd.f32 %v2326, %v2358
        %v2363 = vadd.f32 %v2327, %v2359
        %2364 = vrot.lane.b32.xlu0 %v2188, 126
        %v2365 = vpop.permute.xlu0 %2364
        %2366 = vrot.lane.b32.xlu0 %v2189, 126
        %v2367 = vpop.permute.xlu0 %2366
        %2368 = vrot.lane.b32.xlu0 %v2190, 126
        %v2369 = vpop.permute.xlu0 %2368
        %2370 = vrot.lane.b32.xlu0 %v2191, 126
        %v2371 = vpop.permute.xlu0 %2370
        %v2372 = vsel %vm1712, %v2365, 0.0
        %v2373 = vsel %vm1712, %v2367, 0.0
        %v2374 = vsel %vm1712, %v2369, 0.0
        %v2375 = vsel %vm1712, %v2371, 0.0
        %2376 = vset.pattern.permute.xlu0 5
        %2377 = vperm.xlu0 %2376, %v2192
        %v2378 = vpop.permute.xlu0 %2377
        %2380 = vset.pattern.permute.xlu0 5
        %2381 = vperm.xlu0 %2380, %v2193
        %v2382 = vpop.permute.xlu0 %2381
        %2384 = vset.pattern.permute.xlu0 5
        %2385 = vperm.xlu0 %2384, %v2194
        %v2386 = vpop.permute.xlu0 %2385
        %2388 = vset.pattern.permute.xlu0 5
        %2389 = vperm.xlu0 %2388, %v2195
        %v2390 = vpop.permute.xlu0 %2389
        %v2392 = vmul.f32 %v2372, %v2378
        %v2393 = vmul.f32 %v2373, %v2382
        %v2394 = vmul.f32 %v2374, %v2386
        %v2395 = vmul.f32 %v2375, %v2390
        %v2396 = vadd.f32 %v2360, %v2392
        %v2397 = vadd.f32 %v2361, %v2393
        %v2398 = vadd.f32 %v2362, %v2394
        %v2399 = vadd.f32 %v2363, %v2395
        %2400 = vrot.lane.b32.xlu0 %v2188, 125
        %v2401 = vpop.permute.xlu0 %2400
        %2402 = vrot.lane.b32.xlu0 %v2189, 125
        %v2403 = vpop.permute.xlu0 %2402
        %2404 = vrot.lane.b32.xlu0 %v2190, 125
        %v2405 = vpop.permute.xlu0 %2404
        %2406 = vrot.lane.b32.xlu0 %v2191, 125
        %v2407 = vpop.permute.xlu0 %2406
        %v2408 = vsel %vm1750, %v2401, 0.0
        %v2409 = vsel %vm1750, %v2403, 0.0
        %v2410 = vsel %vm1750, %v2405, 0.0
        %v2411 = vsel %vm1750, %v2407, 0.0
        %2412 = vset.pattern.permute.xlu0 6
        %2413 = vperm.xlu0 %2412, %v2192
        %v2414 = vpop.permute.xlu0 %2413
        %2416 = vset.pattern.permute.xlu0 6
        %2417 = vperm.xlu0 %2416, %v2193
        %v2418 = vpop.permute.xlu0 %2417
        %2420 = vset.pattern.permute.xlu0 6
        %2421 = vperm.xlu0 %2420, %v2194
        %v2422 = vpop.permute.xlu0 %2421
        %2424 = vset.pattern.permute.xlu0 6
        %2425 = vperm.xlu0 %2424, %v2195
        %v2426 = vpop.permute.xlu0 %2425
        %v2428 = vmul.f32 %v2408, %v2414
        %v2429 = vmul.f32 %v2409, %v2418
        %v2430 = vmul.f32 %v2410, %v2422
        %v2431 = vmul.f32 %v2411, %v2426
        %v2432 = vadd.f32 %v2396, %v2428
        %v2433 = vadd.f32 %v2397, %v2429
        %v2434 = vadd.f32 %v2398, %v2430
        %v2435 = vadd.f32 %v2399, %v2431
        %v2436 = vld [vmem:[%s1037] sm:$0xff]
        %v2437 = vld [vmem:[%s1037 + $0x8] sm:$0xff]
        %v2438 = vld [vmem:[%s1037 + $0x10] sm:$0xff]
        %v2439 = vld [vmem:[%s1037 + $0x18] sm:$0xff]
        %2441 = vset.pattern.permute.xlu0 0
        %2442 = vperm.xlu0 %2441, %v2436
        %v2443 = vpop.permute.xlu0 %2442
        %2446 = vset.pattern.permute.xlu0 0
        %2447 = vperm.xlu0 %2446, %v2437
        %v2448 = vpop.permute.xlu0 %2447
        %2451 = vset.pattern.permute.xlu0 0
        %2452 = vperm.xlu0 %2451, %v2438
        %v2453 = vpop.permute.xlu0 %2452
        %2456 = vset.pattern.permute.xlu0 0
        %2457 = vperm.xlu0 %2456, %v2439
        %v2458 = vpop.permute.xlu0 %2457
        %v2460 = vadd.f32 %v2432, %v2443
        %v2461 = vadd.f32 %v2433, %v2448
        %v2462 = vadd.f32 %v2434, %v2453
        %v2463 = vadd.f32 %v2435, %v2458
        %v2464 = vxor.u32 %v2462, 2147483648
        %v2465 = vxor.u32 %v2463, 2147483648
        %v2466 = vmul.f32 %v2464, 1.442695
        %v2467 = vpow.pop %v2466
        %v2468 = vmul.f32 %v2465, 1.442695
        %v2469 = vpow.pop %v2468
        %v2470 = vadd.f32 %v2467, 1.0
        %v2471 = vadd.f32 %v2469, 1.0
        %v2472 = vrcp.pop %v2470
        %v2473 = vmul.f32 1.0, %v2472
        %v2474 = vrcp.pop %v2471
        %v2475 = vmul.f32 1.0, %v2474
        %v2476 = vmul.f32 %v2460, %v2473
        %v2477 = vmul.f32 %v2461, %v2475
        %v2478 = vld [vmem:[%s1042] sm:$0xf]
        %v2479 = vld [vmem:[%s1042 + $0x4] sm:$0xf]
        %v2480 = vpack.c.bf16 %v2477, %v2476
        %v2481 = vld [vmem:[%s1047] sm:$0xff]
        %v2482 = vld [vmem:[%s1047 + $0x8] sm:$0xff]
        %2484 = vset.pattern.permute.xlu0 0
        %2485 = vperm.xlu0 %2484, %v2481
        %v2486 = vpop.permute.xlu0 %2485
        %2489 = vset.pattern.permute.xlu0 0
        %2490 = vperm.xlu0 %2489, %v2482
        %v2491 = vpop.permute.xlu0 %2490
        %v2495 = vunpack.c.l.b16 %v2478
        %v2496 = vunpack.c.l.b16 %v2479
        %v2497 = vpack.c.b16 %v2496, %v2495
        %v2499 = vsel %vm1301, %v2497, 0
        %2501 = vmatprep.subr.bf16.mxu0 0
        %2502 = vmatpush1.bf16.msra.mxu0 0
        %2503 = vmatprep.subr.bf16.mxu0 0
        %2504 = vmatpush1.bf16.msra.mxu0 0
        %2505 = vmatprep.subr.bf16.mxu0 0
        %2506 = vmatpush1.bf16.msra.mxu0 0
        %2507 = vmatprep.subr.bf16.mxu0 0
        %2508 = vmatpush1.bf16.msra.mxu0 0
        %2509 = vmatprep.subr.bf16.mxu0 0
        %2510 = vmatpush1.bf16.msra.mxu0 0
        %2511 = vmatprep.subr.bf16.mxu0 0
        %2512 = vmatpush1.bf16.msra.mxu0 0
        %2513 = vmatprep.subr.bf16.mxu0 0
        %2514 = vmatpush1.bf16.msra.mxu0 0
        %2515 = vmatprep.subr.bf16.mxu0 0
        %2516 = vmatpush1.bf16.msra.mxu0 %v2480
        %2517 = vmatprep.subr.bf16.mxu0 0
        %2518 = vmatpush2.bf16.msra.mxu0 0
        %2519 = vmatprep.subr.bf16.mxu0 0
        %2520 = vmatpush2.bf16.msra.mxu0 0
        %2521 = vmatprep.subr.bf16.mxu0 0
        %2522 = vmatpush2.bf16.msra.mxu0 0
        %2523 = vmatprep.subr.bf16.mxu0 0
        %2524 = vmatpush2.bf16.msra.mxu0 0
        %2525 = vmatprep.subr.bf16.mxu0 0
        %2526 = vmatpush2.bf16.msra.mxu0 0
        %2527 = vmatprep.subr.bf16.mxu0 0
        %2528 = vmatpush2.bf16.msra.mxu0 0
        %2529 = vmatprep.subr.bf16.mxu0 0
        %2530 = vmatpush2.bf16.msra.mxu0 0
        %2531 = vmatprep.subr.bf16.mxu0 0
        %2532 = vmatpush2.bf16.msra.mxu0 0
        %2533 = vmatprep.mubr.bf16.mxu0 0
        %2534 = vmatmul.mubr.bf16.gmra.mxu0 %v2499
        %v2535 = vpop.f32.mrf.mxu0
        %v2536 = vadd.f32 %v2486, %v2535
        %v2537 = vpop.f32.mrf.mxu0
        %v2538 = vpop.f32.mrf.mxu0
        %v2539 = vadd.f32 %v2491, %v2538
        %v2540 = vpop.f32.mrf.mxu0
        %2541 = vdwg.mxu0
        %v2542 = vadd.f32 %v1197, %v2536
        %v2543 = vadd.f32 %v1198, %v2539
        %2544 = vst [vmem:[#allocation2] sm:$0xff] %v2542
        %2545 = vst [vmem:[#allocation2 + $0x8] sm:$0xff] %v2543
        %2546 = vst [vmem:[#allocation3] sm:$0xff] %v1885
        %2547 = vst [vmem:[#allocation3 + $0x8] sm:$0xff] %v1886
        %p2548 = scmp.eq.s32.totalorder %s40, 1
        // Predicated region
        $region117: #{tpu_custom_call.1} parent=111 // pred_check
          %p2549 = pneg %p2548
        $region118: #{tpu_custom_call.1} parent=111 // pred_check_branch
          %2551 = sbr.rel (%p2549) target = $region120
        $region119: #{tpu_custom_call.1} parent=111 // pred_region
          %v2552 = vld [vmem:[%s4] sm:$0xf]
          %v2553 = vpack.c.bf16 %v2543, %v2542
          %v2554 = vld [vmem:[%s5] sm:$0xf]
          %v2556 = vsel %vm1301, %v2554, 0
          %2558 = vmatprep.subr.bf16.mxu0 0
          %2559 = vmatpush1.bf16.msra.mxu0 0
          %2560 = vmatprep.subr.bf16.mxu0 0
          %2561 = vmatpush1.bf16.msra.mxu0 0
          %2562 = vmatprep.subr.bf16.mxu0 0
          %2563 = vmatpush1.bf16.msra.mxu0 0
          %2564 = vmatprep.subr.bf16.mxu0 0
          %2565 = vmatpush1.bf16.msra.mxu0 0
          %2566 = vmatprep.subr.bf16.mxu0 0
          %2567 = vmatpush1.bf16.msra.mxu0 0
          %2568 = vmatprep.subr.bf16.mxu0 0
          %2569 = vmatpush1.bf16.msra.mxu0 0
          %2570 = vmatprep.subr.bf16.mxu0 0
          %2571 = vmatpush1.bf16.msra.mxu0 0
          %2572 = vmatprep.subr.bf16.mxu0 0
          %2573 = vmatpush1.bf16.msra.mxu0 %v1887
          %2574 = vmatprep.subr.bf16.mxu0 0
          %2575 = vmatpush2.bf16.msra.mxu0 0
          %2576 = vmatprep.subr.bf16.mxu0 0
          %2577 = vmatpush2.bf16.msra.mxu0 0
          %2578 = vmatprep.subr.bf16.mxu0 0
          %2579 = vmatpush2.bf16.msra.mxu0 0
          %2580 = vmatprep.subr.bf16.mxu0 0
          %2581 = vmatpush2.bf16.msra.mxu0 0
          %2582 = vmatprep.subr.bf16.mxu0 0
          %2583 = vmatpush2.bf16.msra.mxu0 0
          %2584 = vmatprep.subr.bf16.mxu0 0
          %2585 = vmatpush2.bf16.msra.mxu0 0
          %2586 = vmatprep.subr.bf16.mxu0 0
          %2587 = vmatpush2.bf16.msra.mxu0 0
          %2588 = vmatprep.subr.bf16.mxu0 0
          %2589 = vmatpush2.bf16.msra.mxu0 0
          %2590 = vmatprep.mubr.bf16.mxu0 0
          %2591 = vmatmul.mubr.bf16.gmra.mxu0 %v2556
          %v2592 = vpop.f32.mrf.mxu0
          %v2593 = vadd.f32 0.0, %v2592
          %v2594 = vpop.f32.mrf.mxu0
          %v2595 = vpop.f32.mrf.mxu0
          %v2596 = vpop.f32.mrf.mxu0
          %2597 = vdwg.mxu0
          %v2599 = vsel %vm1301, %v2552, 0
          %2601 = vmatprep.subr.bf16.mxu0 0
          %2602 = vmatpush1.bf16.msra.mxu0 0
          %2603 = vmatprep.subr.bf16.mxu0 0
          %2604 = vmatpush1.bf16.msra.mxu0 0
          %2605 = vmatprep.subr.bf16.mxu0 0
          %2606 = vmatpush1.bf16.msra.mxu0 0
          %2607 = vmatprep.subr.bf16.mxu0 0
          %2608 = vmatpush1.bf16.msra.mxu0 0
          %2609 = vmatprep.subr.bf16.mxu0 0
          %2610 = vmatpush1.bf16.msra.mxu0 0
          %2611 = vmatprep.subr.bf16.mxu0 0
          %2612 = vmatpush1.bf16.msra.mxu0 0
          %2613 = vmatprep.subr.bf16.mxu0 0
          %2614 = vmatpush1.bf16.msra.mxu0 0
          %2615 = vmatprep.subr.bf16.mxu0 0
          %2616 = vmatpush1.bf16.msra.mxu0 %v2553
          %2617 = vmatprep.subr.bf16.mxu0 0
          %2618 = vmatpush2.bf16.msra.mxu0 0
          %2619 = vmatprep.subr.bf16.mxu0 0
          %2620 = vmatpush2.bf16.msra.mxu0 0
          %2621 = vmatprep.subr.bf16.mxu0 0
          %2622 = vmatpush2.bf16.msra.mxu0 0
          %2623 = vmatprep.subr.bf16.mxu0 0
          %2624 = vmatpush2.bf16.msra.mxu0 0
          %2625 = vmatprep.subr.bf16.mxu0 0
          %2626 = vmatpush2.bf16.msra.mxu0 0
          %2627 = vmatprep.subr.bf16.mxu0 0
          %2628 = vmatpush2.bf16.msra.mxu0 0
          %2629 = vmatprep.subr.bf16.mxu0 0
          %2630 = vmatpush2.bf16.msra.mxu0 0
          %2631 = vmatprep.subr.bf16.mxu0 0
          %2632 = vmatpush2.bf16.msra.mxu0 0
          %2633 = vmatprep.mubr.bf16.mxu0 0
          %2634 = vmatmul.mubr.bf16.gmra.mxu0 %v2599
          %v2635 = vpop.f32.mrf.mxu0
          %v2636 = vadd.f32 %v2593, %v2635
          %v2637 = vpop.f32.mrf.mxu0
          %v2638 = vpop.f32.mrf.mxu0
          %v2639 = vpop.f32.mrf.mxu0
          %2640 = vdwg.mxu0
          %v2641 = vld [vmem:[%s6] sm:$0xff]
          %2643 = vset.pattern.permute.xlu0 0
          %2644 = vperm.xlu0 %2643, %v2641
          %v2645 = vpop.permute.xlu0 %2644
          %v2647 = vadd.f32 %v2636, %v2645
          %2648 = vst [vmem:[#allocation4] sm:$0xff] %v2647
        $region120: #{tpu_custom_call.1} parent=111 // pred_fallthru
          _
        // Predicated region
        $region121: #{tpu_custom_call.1} parent=111 // pred_check
          %p2649 = pneg %p638
        $region122: #{tpu_custom_call.1} parent=111 // pred_check_branch
          %2651 = sbr.rel (%p2649) target = $region124
        $region123: #{tpu_custom_call.1} parent=111 // pred_region
          %s2653 = ssub.s32 128, 128
          %2654 = vsyncadd [#allocation5], %s2653
          %s2655 = smul.addr %s39, 128
          %s2656 = scalar_lea.hbm %s23, %s2655
          %s2658 = sshll.u32 [#allocation4], 4
          %s2659 = int_to_ptr.vmem [resolvable:$true] %s2658
          %2661 = dma.vmem_to_hbm [thread:$0]  %s2659, 128, %s2656, [#allocation5]
        $region124: #{tpu_custom_call.1} parent=111 // pred_fallthru
          _
        // Predicated region
        $region125: #{tpu_custom_call.1} parent=111 // pred_check
          %p2662 = pneg %p638
        $region126: #{tpu_custom_call.1} parent=111 // pred_check_branch
          %2664 = sbr.rel (%p2662) target = $region128
        $region127: #{tpu_custom_call.1} parent=111 // pred_region
          %2665 = dma.done [#allocation5], 128
        $region128: #{tpu_custom_call.1} parent=111 // pred_fallthru
          _
      $region112: #{tpu_custom_call.1} parent=5 // pred_fallthru
        _
      %p2666 = scmp.le.s32.totalorder 2, %s30
      // Predicated region
      $region129: #{tpu_custom_call.1} parent=5 // pred_check
        %p2667 = pneg %p2666
      $region130: #{tpu_custom_call.1} parent=5 // pred_check_branch
        %2669 = sbr.rel (%p2667) target = $region132
      $region131: #{tpu_custom_call.1} parent=5 // pred_region
        %s2670 = ssub.s32 %s30, 2
      $region132: #{tpu_custom_call.1} parent=5 // pred_fallthru
        _
    $region6: #{tpu_custom_call.1} parent=1 // loop_footer
      %s34 = sadd.s32 1, %s30
    $region7: #{tpu_custom_call.1} parent=1 // loop_footer_branch
      %29 = sbr.rel target = $region3
    $region8: #{tpu_custom_call.1} parent=1 // loop_exit
      _
    %2671 = vsyncpa [#allocation5], 1
    %s2672 = scalar_lea.sflag [#allocation5], 1
    %2673 = vsyncpa %s2672, 1

</llo_original>
